<compile_context>
chip_gen: v6e
topology: v6e:2x2x1
jax: 0.10.0
libtpu: 0.0.40
codegen_flags: <defaults>
</compile_context>

<pallas_src>
import jax
import jax.numpy as jnp
from jax.experimental import pallas as pl
from jax.experimental.pallas import tpu as pltpu


def _round_up(x, m):
    return (x + m - 1) // m * m


def _pick_row_tile(h, w, target_rows=512):
    """Largest divisor of H whose row tile covers <= target_rows output pixels and
    keeps the flattened tile sublane-aligned when H is actually split."""
    for th in range(h, 0, -1):
        if h % th:
            continue
        if th * w <= target_rows and (th == h or (th * w) % 8 == 0):
            return th
    return h


def _pick_cin_chunk(cin, target=512):
    """Cin reduction chunk: full Cin if small, else the largest multiple of 128
    dividing Cin that is <= target (BlockSpec lane rule for partial last dims)."""
    if cin <= target:
        return cin
    for ck in range(target, 0, -128):
        if cin % ck == 0:
            return ck
    return cin


def fcn_head_kernel(x_ref, w1_ref, shift_ref, w2_ref, b2_ref, o_ref, acc_ref):
    # x_ref:     (1, 1, TH+2, W+2, CK)  bf16  one batch, one row tile (with halo), one Cin chunk
    # w1_ref:    (9, CK, Cmid_p)        bf16  3x3 weights, tap-major, BN scale pre-folded
    # shift_ref: (1, Cmid_p)            f32   folded BN shift (beta - mean*scale)
    # w2_ref:    (Cmid_p, Cout_p)       bf16  1x1 conv weights (lane-dense for the MXU)
    # b2_ref:    (1, Cout_p)            f32   1x1 conv bias
    # o_ref:     (1, TH*W, Cout)        bf16  output (only the real Cout channels stored)
    # acc_ref:   (TH*W, Cmid_p)         f32   VMEM scratch, persists across the Cin-chunk axis
    k = pl.program_id(2)
    nk = pl.num_programs(2)

    _, _, thp2, wp2, ck = x_ref.shape
    th, w = thp2 - 2, wp2 - 2

    @pl.when(k == 0)
    def _():
        acc_ref[...] = jnp.zeros_like(acc_ref)

    # 3x3 conv (+ folded BN scale) as nine per-tap MXU matmuls accumulated in f32.
    # No im2col buffer is ever materialized; each tap is a shifted window load.
    for tap in range(9):
        dy, dx = tap // 3, tap % 3
        lhs = x_ref[0, 0, dy:dy + th, dx:dx + w, :].reshape(th * w, ck)
        acc_ref[...] += jnp.dot(lhs, w1_ref[tap],
                                preferred_element_type=jnp.float32)

    @pl.when(k == nk - 1)
    def _():
        # BN shift + ReLU in f32.  Dropout2d(0.1) is the identity at inference.
        h = jnp.maximum(acc_ref[...] + shift_ref[0], 0.0)
        # 1x1 conv with bias; compute lane-dense (Cout padded), store only real Cout.
        out = jnp.dot(h.astype(w2_ref.dtype), w2_ref[...],
                      preferred_element_type=jnp.float32) + b2_ref[0]
        cout = o_ref.shape[-1]
        o_ref[0] = out[:, :cout].astype(o_ref.dtype)


def fcn_head_forward(x_nchw, w1, bn_gamma, bn_beta, bn_mean, bn_var, w2, b2,
                     eps=1e-5, row_tile=None, cin_chunk=None):
    """x_nchw: (N, Cin, H, W); w1: (Cmid, Cin, 3, 3); w2: (Cout, Cmid, 1, 1)."""
    N, Cin, H, W = x_nchw.shape
    Cmid = w1.shape[0]
    Cout = w2.shape[0]
    Cmid_p = _round_up(Cmid, 128)
    Cout_p = _round_up(Cout, 128)

    # --- tiling choices (halve row_tile target on v7x for its 64 MiB VMEM) ---
    if row_tile is None:
        row_tile = _pick_row_tile(H, W)
    TH = row_tile
    if H % TH != 0 or (H // TH > 1 and (TH * W) % 8 != 0):
        TH = H                      # fall back: one row tile per batch element
    T = H // TH

    if cin_chunk is None:
        cin_chunk = _pick_cin_chunk(Cin)
    CK = cin_chunk
    if Cin % CK != 0 or (CK != Cin and CK % 128 != 0):
        CK = Cin                    # fall back: whole Cin per step
    KC = Cin // CK

    # --- glue: NCHW -> NHWC, 1-pixel halo pad, overlapping row tiles, bf16 ---
    x_nhwc = jnp.transpose(x_nchw, (0, 2, 3, 1))
    x_pad = jnp.pad(x_nhwc, ((0, 0), (1, 1), (1, 1), (0, 0))).astype(jnp.bfloat16)
    # Wrapper-side halo duplication: tile t covers padded rows [t*TH, t*TH + TH + 2).
    x_tiles = jnp.stack([x_pad[:, t * TH:t * TH + TH + 2] for t in range(T)], axis=1)
    # x_tiles: (N, T, TH+2, W+2, Cin)

    # --- fold inference BatchNorm: scale into the (bias-free) 3x3 weights ---
    inv_std = 1.0 / jnp.sqrt(bn_var + eps)
    scale = bn_gamma * inv_std                       # (Cmid,)
    shift = bn_beta - bn_mean * scale                # (Cmid,)

    # 3x3 weights -> (tap, Cin, Cmid_p), tap = kh*3 + kw, scaled, padded, bf16.
    w1_k = jnp.transpose(w1, (2, 3, 1, 0)).reshape(9, Cin, Cmid) * scale[None, None, :]
    w1_k = jnp.pad(w1_k, ((0, 0), (0, 0), (0, Cmid_p - Cmid))).astype(jnp.bfloat16)
    shift_k = jnp.pad(shift, (0, Cmid_p - Cmid)).reshape(1, Cmid_p).astype(jnp.float32)

    # 1x1 weights -> (Cmid_p, Cout_p) bf16 (lane-dense for the MXU); bias f32.
    w2_k = jnp.transpose(w2.reshape(Cout, Cmid), (1, 0))
    w2_k = jnp.pad(w2_k, ((0, Cmid_p - Cmid), (0, Cout_p - Cout))).astype(jnp.bfloat16)
    b2_k = jnp.pad(b2, (0, Cout_p - Cout)).reshape(1, Cout_p).astype(jnp.float32)

    out_flat = pl.pallas_call(
        fcn_head_kernel,
        out_shape=jax.ShapeDtypeStruct((N, H * W, Cout), jnp.bfloat16),
        grid=(N, T, KC),
        in_specs=[
            pl.BlockSpec((1, 1, TH + 2, W + 2, CK), lambda b, t, k: (b, t, 0, 0, k)),
            pl.BlockSpec((9, CK, Cmid_p), lambda b, t, k: (0, k, 0)),
            pl.BlockSpec((1, Cmid_p), lambda b, t, k: (0, 0)),
            pl.BlockSpec((Cmid_p, Cout_p), lambda b, t, k: (0, 0)),
            pl.BlockSpec((1, Cout_p), lambda b, t, k: (0, 0)),
        ],
        out_specs=pl.BlockSpec((1, TH * W, Cout), lambda b, t, k: (b, t, 0)),
        scratch_shapes=[pltpu.VMEM((TH * W, Cmid_p), jnp.float32)],
        compiler_params=pltpu.CompilerParams(
            # batch and row-tile axes are independent (megacore / v7x 2-TC sharding);
            # the Cin-chunk reduction is last and "arbitrary".
            dimension_semantics=("parallel", "parallel", "arbitrary"),
            vmem_limit_bytes=48 * 1024 * 1024),
    )(x_tiles, w1_k, shift_k, w2_k, b2_k)

    # Restore NCHW (required by the module interface) and the input dtype.
    out = out_flat.reshape(N, H, W, Cout)
    return jnp.transpose(out, (0, 3, 1, 2)).astype(x_nchw.dtype)


def _reference(x, w1, bn_gamma, bn_beta, bn_mean, bn_var, w2, b2, eps=1e-5):
    # Pure-JAX f32 reference (NCHW convs), mirrors the PyTorch forward at inference.
    y = jax.lax.conv_general_dilated(
        x, w1, window_strides=(1, 1), padding=((1, 1), (1, 1)),
        dimension_numbers=("NCHW", "OIHW", "NCHW"))
    scale = (bn_gamma / jnp.sqrt(bn_var + eps)).reshape(1, -1, 1, 1)
    shift = (bn_beta - bn_mean * bn_gamma / jnp.sqrt(bn_var + eps)).reshape(1, -1, 1, 1)
    y = jnp.maximum(y * scale + shift, 0.0)
    y = jax.lax.conv_general_dilated(
        y, w2, window_strides=(1, 1), padding=((0, 0), (0, 0)),
        dimension_numbers=("NCHW", "OIHW", "NCHW"))
    return y + b2.reshape(1, -1, 1, 1)


if __name__ == "__main__":
    # Small, module-consistent shapes: in_channels=16 -> inter_channels=4.
    N, Cin, H, W = 2, 16, 16, 16
    Cout = 8
    Cmid = Cin // 4

    key = jax.random.PRNGKey(0)
    kx, kw1, kw2, kg, kb, km, kv, kbias = jax.random.split(key, 8)

    x = jax.random.normal(kx, (N, Cin, H, W), dtype=jnp.float32)

    # kaiming_normal_(a=1): gain = sqrt(2/(1+1)) = 1, std = 1/sqrt(fan_in).
    w1 = jax.random.normal(kw1, (Cmid, Cin, 3, 3), jnp.float32) / jnp.sqrt(Cin * 9.0)
    w2 = jax.random.normal(kw2, (Cout, Cmid, 1, 1), jnp.float32) / jnp.sqrt(Cmid * 1.0)
    b2 = 0.1 * jax.random.normal(kbias, (Cout,), jnp.float32)

    # Mildly randomized BatchNorm running stats (inference mode) to exercise folding.
    bn_gamma = 1.0 + 0.1 * jax.random.normal(kg, (Cmid,), jnp.float32)
    bn_beta = 0.1 * jax.random.normal(kb, (Cmid,), jnp.float32)
    bn_mean = 0.1 * jax.random.normal(km, (Cmid,), jnp.float32)
    bn_var = 1.0 + 0.1 * jnp.abs(jax.random.normal(kv, (Cmid,), jnp.float32))

    # row_tile=8 -> two halo'd row tiles per batch element, grid = (2, 2, 1).
    out = fcn_head_forward(x, w1, bn_gamma, bn_beta, bn_mean, bn_var, w2, b2,
                           row_tile=8)
    out = jax.block_until_ready(out)

    ref = _reference(x, w1, bn_gamma, bn_beta, bn_mean, bn_var, w2, b2)
    assert out.shape == (N, Cout, H, W)
    # bf16 MXU operands + bf16 output store (f32 accumulation) vs pure-f32 reference.
    assert jnp.allclose(out, ref, atol=5e-2, rtol=5e-2)

    print("KERNEL_OK")
</pallas_src>

<mosaic_0001>
module attributes {stable_mosaic.version = 11 : i64} {
  func.func @fcn_head_kernel(%arg0: i32, %arg1: i32, %arg2: i32, %arg3: memref<1x1x10x18x16xbf16, #tpu.memory_space<vmem>>, %arg4: memref<9x16x128xbf16, #tpu.memory_space<vmem>>, %arg5: memref<1x128xf32, #tpu.memory_space<vmem>>, %arg6: memref<128x128xbf16, #tpu.memory_space<vmem>>, %arg7: memref<1x128xf32, #tpu.memory_space<vmem>>, %arg8: memref<1x128x8xbf16, #tpu.memory_space<vmem>>, %arg9: memref<128x128xf32, #tpu.memory_space<vmem>>) attributes {dimension_semantics = [#tpu.dimension_semantics<parallel>, #tpu.dimension_semantics<parallel>, #tpu.dimension_semantics<arbitrary>], iteration_bounds = array<i64: 2, 2, 1>, scalar_prefetch = 0 : i64, scratch_operands = 1 : i64, tpu.core_type = #tpu.core_type<tc>, window_params = [{transform_indices = @transform_0, window_bounds = array<i64: 1, 1, 10, 18, 16>}, {transform_indices = @transform_1, window_bounds = array<i64: 9, 16, 128>}, {pipeline_mode = #tpu.pipeline_mode<synchronous>, transform_indices = @transform_2, window_bounds = array<i64: 1, 128>}, {pipeline_mode = #tpu.pipeline_mode<synchronous>, transform_indices = @transform_3, window_bounds = array<i64: 128, 128>}, {pipeline_mode = #tpu.pipeline_mode<synchronous>, transform_indices = @transform_4, window_bounds = array<i64: 1, 128>}, {transform_indices = @transform_5, window_bounds = array<i64: 1, 128, 8>}]} {
    %c0_i32 = arith.constant 0 : i32
    %0 = arith.cmpi eq, %arg2, %c0_i32 : i32
    %1 = arith.extui %0 : i1 to i32
    %c0_i32_0 = arith.constant 0 : i32
    %2 = arith.cmpi ne, %1, %c0_i32_0 : i32
    scf.if %2 {
      %cst_110 = arith.constant 0.000000e+00 : f32
      %87 = vector.broadcast %cst_110 : f32 to vector<128x128xf32>
      %c0_111 = arith.constant 0 : index
      %c0_112 = arith.constant 0 : index
      %88 = vector.load %arg9[%c0_111, %c0_112] : memref<128x128xf32, #tpu.memory_space<vmem>>, vector<128x128xf32>
      tpu.vector_store %arg9[%c0_111, %c0_112], %87 {strides = array<i32>} : memref<128x128xf32, #tpu.memory_space<vmem>>, vector<128x128xf32>,
    } else {
    }
    %c0 = arith.constant 0 : index
    %c0_1 = arith.constant 0 : index
    %c0_2 = arith.constant 0 : index
    %c0_3 = arith.constant 0 : index
    %c0_4 = arith.constant 0 : index
    %3 = vector.load %arg3[%c0, %c0_1, %c0_2, %c0_3, %c0_4] : memref<1x1x10x18x16xbf16, #tpu.memory_space<vmem>>, vector<1x1x8x16x16xbf16>
    %4 = vector.shape_cast %3 : vector<1x1x8x16x16xbf16> to vector<8x16x16xbf16>
    %5 = vector.shape_cast %4 : vector<8x16x16xbf16> to vector<128x16xbf16>
    %c0_5 = arith.constant 0 : index
    %c0_6 = arith.constant 0 : index
    %6 = vector.load %arg9[%c0_5, %c0_6] : memref<128x128xf32, #tpu.memory_space<vmem>>, vector<128x128xf32>
    %c0_7 = arith.constant 0 : index
    %c0_8 = arith.constant 0 : index
    %c0_9 = arith.constant 0 : index
    %7 = vector.load %arg4[%c0_7, %c0_8, %c0_9] : memref<9x16x128xbf16, #tpu.memory_space<vmem>>, vector<1x16x128xbf16>
    %8 = vector.shape_cast %7 : vector<1x16x128xbf16> to vector<16x128xbf16>
    %cst = arith.constant dense<0.000000e+00> : vector<128x128xf32>
    %9 = tpu.matmul %5, %8, %cst {dimension_numbers = #tpu.dot_dimension_numbers<[1], [0], [0], [1], [0, 0, 1, 1], [], []>} : vector<128x16xbf16>, vector<16x128xbf16>, vector<128x128xf32> -> vector<128x128xf32>
    %10 = arith.addf %6, %9 : vector<128x128xf32>
    %c0_10 = arith.constant 0 : index
    %c0_11 = arith.constant 0 : index
    %11 = vector.load %arg9[%c0_10, %c0_11] : memref<128x128xf32, #tpu.memory_space<vmem>>, vector<128x128xf32>
    tpu.vector_store %arg9[%c0_10, %c0_11], %10 {strides = array<i32>} : memref<128x128xf32, #tpu.memory_space<vmem>>, vector<128x128xf32>,
    %c0_12 = arith.constant 0 : index
    %c0_13 = arith.constant 0 : index
    %c0_14 = arith.constant 0 : index
    %c1 = arith.constant 1 : index
    %c0_15 = arith.constant 0 : index
    %12 = vector.load %arg3[%c0_12, %c0_13, %c0_14, %c1, %c0_15] : memref<1x1x10x18x16xbf16, #tpu.memory_space<vmem>>, vector<1x1x8x16x16xbf16>
    %13 = vector.shape_cast %12 : vector<1x1x8x16x16xbf16> to vector<8x16x16xbf16>
    %14 = vector.shape_cast %13 : vector<8x16x16xbf16> to vector<128x16xbf16>
    %c0_16 = arith.constant 0 : index
    %c0_17 = arith.constant 0 : index
    %15 = vector.load %arg9[%c0_16, %c0_17] : memref<128x128xf32, #tpu.memory_space<vmem>>, vector<128x128xf32>
    %c1_18 = arith.constant 1 : index
    %c0_19 = arith.constant 0 : index
    %c0_20 = arith.constant 0 : index
    %16 = vector.load %arg4[%c1_18, %c0_19, %c0_20] : memref<9x16x128xbf16, #tpu.memory_space<vmem>>, vector<1x16x128xbf16>
    %17 = vector.shape_cast %16 : vector<1x16x128xbf16> to vector<16x128xbf16>
    %cst_21 = arith.constant dense<0.000000e+00> : vector<128x128xf32>
    %18 = tpu.matmul %14, %17, %cst_21 {dimension_numbers = #tpu.dot_dimension_numbers<[1], [0], [0], [1], [0, 0, 1, 1], [], []>} : vector<128x16xbf16>, vector<16x128xbf16>, vector<128x128xf32> -> vector<128x128xf32>
    %19 = arith.addf %15, %18 : vector<128x128xf32>
    %c0_22 = arith.constant 0 : index
    %c0_23 = arith.constant 0 : index
    %20 = vector.load %arg9[%c0_22, %c0_23] : memref<128x128xf32, #tpu.memory_space<vmem>>, vector<128x128xf32>
    tpu.vector_store %arg9[%c0_22, %c0_23], %19 {strides = array<i32>} : memref<128x128xf32, #tpu.memory_space<vmem>>, vector<128x128xf32>,
    %c0_24 = arith.constant 0 : index
    %c0_25 = arith.constant 0 : index
    %c0_26 = arith.constant 0 : index
    %c2 = arith.constant 2 : index
    %c0_27 = arith.constant 0 : index
    %21 = vector.load %arg3[%c0_24, %c0_25, %c0_26, %c2, %c0_27] : memref<1x1x10x18x16xbf16, #tpu.memory_space<vmem>>, vector<1x1x8x16x16xbf16>
    %22 = vector.shape_cast %21 : vector<1x1x8x16x16xbf16> to vector<8x16x16xbf16>
    %23 = vector.shape_cast %22 : vector<8x16x16xbf16> to vector<128x16xbf16>
    %c0_28 = arith.constant 0 : index
    %c0_29 = arith.constant 0 : index
    %24 = vector.load %arg9[%c0_28, %c0_29] : memref<128x128xf32, #tpu.memory_space<vmem>>, vector<128x128xf32>
    %c2_30 = arith.constant 2 : index
    %c0_31 = arith.constant 0 : index
    %c0_32 = arith.constant 0 : index
    %25 = vector.load %arg4[%c2_30, %c0_31, %c0_32] : memref<9x16x128xbf16, #tpu.memory_space<vmem>>, vector<1x16x128xbf16>
    %26 = vector.shape_cast %25 : vector<1x16x128xbf16> to vector<16x128xbf16>
    %cst_33 = arith.constant dense<0.000000e+00> : vector<128x128xf32>
    %27 = tpu.matmul %23, %26, %cst_33 {dimension_numbers = #tpu.dot_dimension_numbers<[1], [0], [0], [1], [0, 0, 1, 1], [], []>} : vector<128x16xbf16>, vector<16x128xbf16>, vector<128x128xf32> -> vector<128x128xf32>
    %28 = arith.addf %24, %27 : vector<128x128xf32>
    %c0_34 = arith.constant 0 : index
    %c0_35 = arith.constant 0 : index
    %29 = vector.load %arg9[%c0_34, %c0_35] : memref<128x128xf32, #tpu.memory_space<vmem>>, vector<128x128xf32>
    tpu.vector_store %arg9[%c0_34, %c0_35], %28 {strides = array<i32>} : memref<128x128xf32, #tpu.memory_space<vmem>>, vector<128x128xf32>,
    %c0_36 = arith.constant 0 : index
    %c0_37 = arith.constant 0 : index
    %c1_38 = arith.constant 1 : index
    %c0_39 = arith.constant 0 : index
    %c0_40 = arith.constant 0 : index
    %30 = vector.load %arg3[%c0_36, %c0_37, %c1_38, %c0_39, %c0_40] : memref<1x1x10x18x16xbf16, #tpu.memory_space<vmem>>, vector<1x1x8x16x16xbf16>
    %31 = vector.shape_cast %30 : vector<1x1x8x16x16xbf16> to vector<8x16x16xbf16>
    %32 = vector.shape_cast %31 : vector<8x16x16xbf16> to vector<128x16xbf16>
    %c0_41 = arith.constant 0 : index
    %c0_42 = arith.constant 0 : index
    %33 = vector.load %arg9[%c0_41, %c0_42] : memref<128x128xf32, #tpu.memory_space<vmem>>, vector<128x128xf32>
    %c3 = arith.constant 3 : index
    %c0_43 = arith.constant 0 : index
    %c0_44 = arith.constant 0 : index
    %34 = vector.load %arg4[%c3, %c0_43, %c0_44] : memref<9x16x128xbf16, #tpu.memory_space<vmem>>, vector<1x16x128xbf16>
    %35 = vector.shape_cast %34 : vector<1x16x128xbf16> to vector<16x128xbf16>
    %cst_45 = arith.constant dense<0.000000e+00> : vector<128x128xf32>
    %36 = tpu.matmul %32, %35, %cst_45 {dimension_numbers = #tpu.dot_dimension_numbers<[1], [0], [0], [1], [0, 0, 1, 1], [], []>} : vector<128x16xbf16>, vector<16x128xbf16>, vector<128x128xf32> -> vector<128x128xf32>
    %37 = arith.addf %33, %36 : vector<128x128xf32>
    %c0_46 = arith.constant 0 : index
    %c0_47 = arith.constant 0 : index
    %38 = vector.load %arg9[%c0_46, %c0_47] : memref<128x128xf32, #tpu.memory_space<vmem>>, vector<128x128xf32>
    tpu.vector_store %arg9[%c0_46, %c0_47], %37 {strides = array<i32>} : memref<128x128xf32, #tpu.memory_space<vmem>>, vector<128x128xf32>,
    %c0_48 = arith.constant 0 : index
    %c0_49 = arith.constant 0 : index
    %c1_50 = arith.constant 1 : index
    %c1_51 = arith.constant 1 : index
    %c0_52 = arith.constant 0 : index
    %39 = vector.load %arg3[%c0_48, %c0_49, %c1_50, %c1_51, %c0_52] : memref<1x1x10x18x16xbf16, #tpu.memory_space<vmem>>, vector<1x1x8x16x16xbf16>
    %40 = vector.shape_cast %39 : vector<1x1x8x16x16xbf16> to vector<8x16x16xbf16>
    %41 = vector.shape_cast %40 : vector<8x16x16xbf16> to vector<128x16xbf16>
    %c0_53 = arith.constant 0 : index
    %c0_54 = arith.constant 0 : index
    %42 = vector.load %arg9[%c0_53, %c0_54] : memref<128x128xf32, #tpu.memory_space<vmem>>, vector<128x128xf32>
    %c4 = arith.constant 4 : index
    %c0_55 = arith.constant 0 : index
    %c0_56 = arith.constant 0 : index
    %43 = vector.load %arg4[%c4, %c0_55, %c0_56] : memref<9x16x128xbf16, #tpu.memory_space<vmem>>, vector<1x16x128xbf16>
    %44 = vector.shape_cast %43 : vector<1x16x128xbf16> to vector<16x128xbf16>
    %cst_57 = arith.constant dense<0.000000e+00> : vector<128x128xf32>
    %45 = tpu.matmul %41, %44, %cst_57 {dimension_numbers = #tpu.dot_dimension_numbers<[1], [0], [0], [1], [0, 0, 1, 1], [], []>} : vector<128x16xbf16>, vector<16x128xbf16>, vector<128x128xf32> -> vector<128x128xf32>
    %46 = arith.addf %42, %45 : vector<128x128xf32>
    %c0_58 = arith.constant 0 : index
    %c0_59 = arith.constant 0 : index
    %47 = vector.load %arg9[%c0_58, %c0_59] : memref<128x128xf32, #tpu.memory_space<vmem>>, vector<128x128xf32>
    tpu.vector_store %arg9[%c0_58, %c0_59], %46 {strides = array<i32>} : memref<128x128xf32, #tpu.memory_space<vmem>>, vector<128x128xf32>,
    %c0_60 = arith.constant 0 : index
    %c0_61 = arith.constant 0 : index
    %c1_62 = arith.constant 1 : index
    %c2_63 = arith.constant 2 : index
    %c0_64 = arith.constant 0 : index
    %48 = vector.load %arg3[%c0_60, %c0_61, %c1_62, %c2_63, %c0_64] : memref<1x1x10x18x16xbf16, #tpu.memory_space<vmem>>, vector<1x1x8x16x16xbf16>
    %49 = vector.shape_cast %48 : vector<1x1x8x16x16xbf16> to vector<8x16x16xbf16>
    %50 = vector.shape_cast %49 : vector<8x16x16xbf16> to vector<128x16xbf16>
    %c0_65 = arith.constant 0 : index
    %c0_66 = arith.constant 0 : index
    %51 = vector.load %arg9[%c0_65, %c0_66] : memref<128x128xf32, #tpu.memory_space<vmem>>, vector<128x128xf32>
    %c5 = arith.constant 5 : index
    %c0_67 = arith.constant 0 : index
    %c0_68 = arith.constant 0 : index
    %52 = vector.load %arg4[%c5, %c0_67, %c0_68] : memref<9x16x128xbf16, #tpu.memory_space<vmem>>, vector<1x16x128xbf16>
    %53 = vector.shape_cast %52 : vector<1x16x128xbf16> to vector<16x128xbf16>
    %cst_69 = arith.constant dense<0.000000e+00> : vector<128x128xf32>
    %54 = tpu.matmul %50, %53, %cst_69 {dimension_numbers = #tpu.dot_dimension_numbers<[1], [0], [0], [1], [0, 0, 1, 1], [], []>} : vector<128x16xbf16>, vector<16x128xbf16>, vector<128x128xf32> -> vector<128x128xf32>
    %55 = arith.addf %51, %54 : vector<128x128xf32>
    %c0_70 = arith.constant 0 : index
    %c0_71 = arith.constant 0 : index
    %56 = vector.load %arg9[%c0_70, %c0_71] : memref<128x128xf32, #tpu.memory_space<vmem>>, vector<128x128xf32>
    tpu.vector_store %arg9[%c0_70, %c0_71], %55 {strides = array<i32>} : memref<128x128xf32, #tpu.memory_space<vmem>>, vector<128x128xf32>,
    %c0_72 = arith.constant 0 : index
    %c0_73 = arith.constant 0 : index
    %c2_74 = arith.constant 2 : index
    %c0_75 = arith.constant 0 : index
    %c0_76 = arith.constant 0 : index
    %57 = vector.load %arg3[%c0_72, %c0_73, %c2_74, %c0_75, %c0_76] : memref<1x1x10x18x16xbf16, #tpu.memory_space<vmem>>, vector<1x1x8x16x16xbf16>
    %58 = vector.shape_cast %57 : vector<1x1x8x16x16xbf16> to vector<8x16x16xbf16>
    %59 = vector.shape_cast %58 : vector<8x16x16xbf16> to vector<128x16xbf16>
    %c0_77 = arith.constant 0 : index
    %c0_78 = arith.constant 0 : index
    %60 = vector.load %arg9[%c0_77, %c0_78] : memref<128x128xf32, #tpu.memory_space<vmem>>, vector<128x128xf32>
    %c6 = arith.constant 6 : index
    %c0_79 = arith.constant 0 : index
    %c0_80 = arith.constant 0 : index
    %61 = vector.load %arg4[%c6, %c0_79, %c0_80] : memref<9x16x128xbf16, #tpu.memory_space<vmem>>, vector<1x16x128xbf16>
    %62 = vector.shape_cast %61 : vector<1x16x128xbf16> to vector<16x128xbf16>
    %cst_81 = arith.constant dense<0.000000e+00> : vector<128x128xf32>
    %63 = tpu.matmul %59, %62, %cst_81 {dimension_numbers = #tpu.dot_dimension_numbers<[1], [0], [0], [1], [0, 0, 1, 1], [], []>} : vector<128x16xbf16>, vector<16x128xbf16>, vector<128x128xf32> -> vector<128x128xf32>
    %64 = arith.addf %60, %63 : vector<128x128xf32>
    %c0_82 = arith.constant 0 : index
    %c0_83 = arith.constant 0 : index
    %65 = vector.load %arg9[%c0_82, %c0_83] : memref<128x128xf32, #tpu.memory_space<vmem>>, vector<128x128xf32>
    tpu.vector_store %arg9[%c0_82, %c0_83], %64 {strides = array<i32>} : memref<128x128xf32, #tpu.memory_space<vmem>>, vector<128x128xf32>,
    %c0_84 = arith.constant 0 : index
    %c0_85 = arith.constant 0 : index
    %c2_86 = arith.constant 2 : index
    %c1_87 = arith.constant 1 : index
    %c0_88 = arith.constant 0 : index
    %66 = vector.load %arg3[%c0_84, %c0_85, %c2_86, %c1_87, %c0_88] : memref<1x1x10x18x16xbf16, #tpu.memory_space<vmem>>, vector<1x1x8x16x16xbf16>
    %67 = vector.shape_cast %66 : vector<1x1x8x16x16xbf16> to vector<8x16x16xbf16>
    %68 = vector.shape_cast %67 : vector<8x16x16xbf16> to vector<128x16xbf16>
    %c0_89 = arith.constant 0 : index
    %c0_90 = arith.constant 0 : index
    %69 = vector.load %arg9[%c0_89, %c0_90] : memref<128x128xf32, #tpu.memory_space<vmem>>, vector<128x128xf32>
    %c7 = arith.constant 7 : index
    %c0_91 = arith.constant 0 : index
    %c0_92 = arith.constant 0 : index
    %70 = vector.load %arg4[%c7, %c0_91, %c0_92] : memref<9x16x128xbf16, #tpu.memory_space<vmem>>, vector<1x16x128xbf16>
    %71 = vector.shape_cast %70 : vector<1x16x128xbf16> to vector<16x128xbf16>
    %cst_93 = arith.constant dense<0.000000e+00> : vector<128x128xf32>
    %72 = tpu.matmul %68, %71, %cst_93 {dimension_numbers = #tpu.dot_dimension_numbers<[1], [0], [0], [1], [0, 0, 1, 1], [], []>} : vector<128x16xbf16>, vector<16x128xbf16>, vector<128x128xf32> -> vector<128x128xf32>
    %73 = arith.addf %69, %72 : vector<128x128xf32>
    %c0_94 = arith.constant 0 : index
    %c0_95 = arith.constant 0 : index
    %74 = vector.load %arg9[%c0_94, %c0_95] : memref<128x128xf32, #tpu.memory_space<vmem>>, vector<128x128xf32>
    tpu.vector_store %arg9[%c0_94, %c0_95], %73 {strides = array<i32>} : memref<128x128xf32, #tpu.memory_space<vmem>>, vector<128x128xf32>,
    %c0_96 = arith.constant 0 : index
    %c0_97 = arith.constant 0 : index
    %c2_98 = arith.constant 2 : index
    %c2_99 = arith.constant 2 : index
    %c0_100 = arith.constant 0 : index
    %75 = vector.load %arg3[%c0_96, %c0_97, %c2_98, %c2_99, %c0_100] : memref<1x1x10x18x16xbf16, #tpu.memory_space<vmem>>, vector<1x1x8x16x16xbf16>
    %76 = vector.shape_cast %75 : vector<1x1x8x16x16xbf16> to vector<8x16x16xbf16>
    %77 = vector.shape_cast %76 : vector<8x16x16xbf16> to vector<128x16xbf16>
    %c0_101 = arith.constant 0 : index
    %c0_102 = arith.constant 0 : index
    %78 = vector.load %arg9[%c0_101, %c0_102] : memref<128x128xf32, #tpu.memory_space<vmem>>, vector<128x128xf32>
    %c8 = arith.constant 8 : index
    %c0_103 = arith.constant 0 : index
    %c0_104 = arith.constant 0 : index
    %79 = vector.load %arg4[%c8, %c0_103, %c0_104] : memref<9x16x128xbf16, #tpu.memory_space<vmem>>, vector<1x16x128xbf16>
    %80 = vector.shape_cast %79 : vector<1x16x128xbf16> to vector<16x128xbf16>
    %cst_105 = arith.constant dense<0.000000e+00> : vector<128x128xf32>
    %81 = tpu.matmul %77, %80, %cst_105 {dimension_numbers = #tpu.dot_dimension_numbers<[1], [0], [0], [1], [0, 0, 1, 1], [], []>} : vector<128x16xbf16>, vector<16x128xbf16>, vector<128x128xf32> -> vector<128x128xf32>
    %82 = arith.addf %78, %81 : vector<128x128xf32>
    %c0_106 = arith.constant 0 : index
    %c0_107 = arith.constant 0 : index
    %83 = vector.load %arg9[%c0_106, %c0_107] : memref<128x128xf32, #tpu.memory_space<vmem>>, vector<128x128xf32>
    tpu.vector_store %arg9[%c0_106, %c0_107], %82 {strides = array<i32>} : memref<128x128xf32, #tpu.memory_space<vmem>>, vector<128x128xf32>,
    %c0_i32_108 = arith.constant 0 : i32
    %84 = arith.cmpi eq, %arg2, %c0_i32_108 : i32
    %85 = arith.extui %84 : i1 to i32
    %c0_i32_109 = arith.constant 0 : i32
    %86 = arith.cmpi ne, %85, %c0_i32_109 : i32
    scf.if %86 {
      %c0_110 = arith.constant 0 : index
      %c0_111 = arith.constant 0 : index
      %87 = vector.load %arg9[%c0_110, %c0_111] : memref<128x128xf32, #tpu.memory_space<vmem>>, vector<128x128xf32>
      %c0_112 = arith.constant 0 : index
      %c0_113 = arith.constant 0 : index
      %88 = vector.load %arg5[%c0_112, %c0_113] : memref<1x128xf32, #tpu.memory_space<vmem>>, vector<1x128xf32>
      %89 = vector.shape_cast %88 : vector<1x128xf32> to vector<128xf32>
      %90 = vector.shape_cast %89 : vector<128xf32> to vector<1x128xf32>
      %91 = vector.broadcast %90 : vector<1x128xf32> to vector<128x128xf32>
      %92 = arith.addf %87, %91 : vector<128x128xf32>
      %cst_114 = arith.constant 0.000000e+00 : f32
      %93 = vector.broadcast %cst_114 : f32 to vector<128x128xf32>
      %94 = arith.maximumf %92, %93 : vector<128x128xf32>
      %95 = arith.truncf %94 : vector<128x128xf32> to vector<128x128xbf16>
      %c0_115 = arith.constant 0 : index
      %c0_116 = arith.constant 0 : index
      %96 = vector.load %arg6[%c0_115, %c0_116] : memref<128x128xbf16, #tpu.memory_space<vmem>>, vector<128x128xbf16>
      %cst_117 = arith.constant dense<0.000000e+00> : vector<128x128xf32>
      %97 = tpu.matmul %95, %96, %cst_117 {dimension_numbers = #tpu.dot_dimension_numbers<[1], [0], [0], [1], [0, 0, 1, 1], [], []>} : vector<128x128xbf16>, vector<128x128xbf16>, vector<128x128xf32> -> vector<128x128xf32>
      %c0_118 = arith.constant 0 : index
      %c0_119 = arith.constant 0 : index
      %98 = vector.load %arg7[%c0_118, %c0_119] : memref<1x128xf32, #tpu.memory_space<vmem>>, vector<1x128xf32>
      %99 = vector.shape_cast %98 : vector<1x128xf32> to vector<128xf32>
      %100 = vector.shape_cast %99 : vector<128xf32> to vector<1x128xf32>
      %101 = vector.broadcast %100 : vector<1x128xf32> to vector<128x128xf32>
      %102 = arith.addf %97, %101 : vector<128x128xf32>
      %103 = vector.extract_strided_slice %102 {offsets = [0, 0], sizes = [128, 8], strides = [1, 1]} : vector<128x128xf32> to vector<128x8xf32>
      %104 = arith.truncf %103 : vector<128x8xf32> to vector<128x8xbf16>
      %c0_120 = arith.constant 0 : index
      %c0_121 = arith.constant 0 : index
      %c0_122 = arith.constant 0 : index
      %105 = vector.load %arg8[%c0_120, %c0_121, %c0_122] : memref<1x128x8xbf16, #tpu.memory_space<vmem>>, vector<1x128x8xbf16>
      %106 = vector.shape_cast %105 : vector<1x128x8xbf16> to vector<128x8xbf16>
      %107 = vector.shape_cast %104 : vector<128x8xbf16> to vector<1x128x8xbf16>
      tpu.vector_store %arg8[%c0_120, %c0_121, %c0_122], %107 {strides = array<i32>} : memref<1x128x8xbf16, #tpu.memory_space<vmem>>, vector<1x128x8xbf16>,
    } else {
    }
    return
  }
  func.func @transform_0(%arg0: i32, %arg1: i32, %arg2: i32) -> (i32, i32, i32, i32, i32) {
    %c0_i32 = arith.constant 0 : i32
    %c0_i32_0 = arith.constant 0 : i32
    %c0_i32_1 = arith.constant 0 : i32
    return %arg0, %arg1, %c0_i32, %c0_i32_0, %arg2 : i32, i32, i32, i32, i32
  }
  func.func @transform_1(%arg0: i32, %arg1: i32, %arg2: i32) -> (i32, i32, i32) {
    %c0_i32 = arith.constant 0 : i32
    %c0_i32_0 = arith.constant 0 : i32
    %c0_i32_1 = arith.constant 0 : i32
    return %c0_i32, %arg2, %c0_i32_0 : i32, i32, i32
  }
  func.func @transform_2(%arg0: i32, %arg1: i32, %arg2: i32) -> (i32, i32) {
    %c0_i32 = arith.constant 0 : i32
    %c0_i32_0 = arith.constant 0 : i32
    %c0_i32_1 = arith.constant 0 : i32
    return %c0_i32, %c0_i32_0 : i32, i32
  }
  func.func @transform_3(%arg0: i32, %arg1: i32, %arg2: i32) -> (i32, i32) {
    %c0_i32 = arith.constant 0 : i32
    %c0_i32_0 = arith.constant 0 : i32
    %c0_i32_1 = arith.constant 0 : i32
    return %c0_i32, %c0_i32_0 : i32, i32
  }
  func.func @transform_4(%arg0: i32, %arg1: i32, %arg2: i32) -> (i32, i32) {
    %c0_i32 = arith.constant 0 : i32
    %c0_i32_0 = arith.constant 0 : i32
    %c0_i32_1 = arith.constant 0 : i32
    return %c0_i32, %c0_i32_0 : i32, i32
  }
  func.func @transform_5(%arg0: i32, %arg1: i32, %arg2: i32) -> (i32, i32, i32) {
    %c0_i32 = arith.constant 0 : i32
    %c0_i32_0 = arith.constant 0 : i32
    return %arg0, %arg1, %c0_i32 : i32, i32, i32
  }
}

</mosaic_0001>

<llo_original>
// kernel: tpu_custom_call.1
$region0: #{tpu_custom_call.1}
  #allocation0 [shape = 'u32[]', space=smem, size = 0x4, offset = 0x4, fixed_abs, tag = 'smem constant byte address 0x4 - core index']
  #allocation1 [shape = 'u32[144,128]{1,0:T(1,128)}', space=vmem, size = 0x12000, scoped, tag = 'internal scratch']
  #allocation2 [shape = 'f32[128,128]{1,0:T(8,128)}', space=vmem, size = 0x10000, scoped, tag = 'scratch operand']
  %s0 = inlined_call_operand.vmem [shape: bf16[2,2,10,18,16], index: 0, kind: input, shape index: {}]
  %s1 = inlined_call_operand.vmem [shape: bf16[9,16,128], index: 1, kind: input, shape index: {}]
  %s2 = inlined_call_operand.vmem [shape: f32[1,128], index: 2, kind: input, shape index: {}]
  %s3 = inlined_call_operand.vmem [shape: bf16[128,128], index: 3, kind: input, shape index: {}]
  %s4 = inlined_call_operand.vmem [shape: f32[1,128], index: 4, kind: input, shape index: {}]
  %s5 = inlined_call_operand.vmem [shape: bf16[2,256,8], index: 5, kind: output, shape index: {}]
  %s6 = sld [smem:[#allocation0]]
  $region61: #{tpu_custom_call.1} parent=0
    _
  %s8 = ssub.s32 1, %s6
  %s9 = scalar_select 0, %s8, %s6
  loop: start=0, step=1, limit=6
  $region2: #{tpu_custom_call.1} parent=0 // loop_pre_header
    _
  $region3: #{tpu_custom_call.1} parent=0 // loop_header
    %s11 = sphi 0, %s15
    %p12 = scmp.ge.s32.totalorder %s11, 6
    %s18 = sphi 0, %s37
    %s19 = sphi 0, %s33
    %s20 = sphi 0, %s29
    %s21 = sphi 0, %s18
    %s22 = sphi 0, %s19
    %s23 = sphi 0, %s20
    %s24 = sphi 0, %s21
    %s25 = sphi 0, %s22
    %s26 = sphi 0, %s23
    %s44 = sphi 0, %s46
    %s47 = sphi 0, %s44
    %s48 = sphi 0, %s47
    %s64 = sphi 0, %s48
    %s70 = sphi 0, %s72
    %s73 = sphi 0, %s70
    %s74 = sphi 0, %s73
    %s90 = sphi 0, %s74
    %s94 = sphi 0, %s94
    %s96 = sphi 0, %s94
    %s97 = sphi 0, %s96
    %s111 = sphi 0, %s97
    %s115 = sphi 0, %s115
    %s117 = sphi 0, %s115
    %s118 = sphi 0, %s117
    %s132 = sphi 0, %s118
    %s136 = sphi 0, %s136
    %s138 = sphi 0, %s136
    %s139 = sphi 0, %s138
    %s153 = sphi 0, %s139
    %s161 = sphi 0, %s163
    %s164 = sphi 0, %s161
    %s165 = sphi 0, %s164
    %s181 = sphi 0, %s165
  $region4: #{tpu_custom_call.1} parent=0 // loop_header_branch
    %14 = sbr.rel (%p12) target = $region8
  $region5: #{tpu_custom_call.1} parent=0 // loop_body
    %s16 = ssub.s32 %s11, 1
    %s17 = ssub.s32 %s11, 2
    %s27 = sadd.s32 1, %s20
    %p28 = scmp.ge.s32.totalorder %s27, 1
    %s29 = scalar_select %p28, 0, %s27
    %s30 = sadd.s32 1, %s19
    %s31 = scalar_select %p28, %s30, %s19
    %p32 = scmp.ge.s32.totalorder %s31, 2
    %s33 = scalar_select %p32, 0, %s31
    %s34 = sadd.s32 1, %s18
    %s35 = scalar_select %p32, %s34, %s18
    %p36 = scmp.ge.s32.totalorder %s35, 2
    %s37 = scalar_select %p36, 0, %s35
    %s38 = ssub.s32 %s18, %s37
    %s39 = ssub.s32 %s19, %s33
    %s40 = sor.u32 %s38, %s39
    %s41 = ssub.s32 %s20, %s29
    %s42 = sor.u32 %s40, %s41
    %p43 = scmp.eq.s32.totalorder %s42, 0
    %s45 = sadd.s32 %s44, 1
    %s46 = scalar_select %p43, %s44, %s45
    %p49 = pneg %p43
    %p50 = scmp.eq.s32.totalorder %s11, 3
    %p51 = por %p49, %p50
    %p52 = scmp.ne.s32.totalorder %s44, %s47
    %p53 = scmp.eq.s32.totalorder %s11, 0
    %p54 = por %p52, %p53
    %p55 = scmp.ne.s32.totalorder %s44, %s47
    %p56 = scmp.eq.s32.totalorder %s16, 3
    %p57 = por %p55, %p56
    %p58 = scmp.ne.s32.totalorder %s47, %s48
    %p59 = scmp.eq.s32.totalorder %s16, 0
    %p60 = por %p58, %p59
    %p61 = scmp.ne.s32.totalorder %s47, %s48
    %p62 = scmp.eq.s32.totalorder %s17, 3
    %p63 = por %p61, %p62
    %p65 = scmp.ne.s32.totalorder %s48, %s64
    %p66 = scmp.eq.s32.totalorder %s17, 0
    %p67 = por %p65, %p66
    %s68 = ssub.s32 %s20, %s29
    %p69 = scmp.eq.s32.totalorder %s68, 0
    %s71 = sadd.s32 %s70, 1
    %s72 = scalar_select %p69, %s70, %s71
    %p75 = pneg %p69
    %p76 = scmp.eq.s32.totalorder %s11, 3
    %p77 = por %p75, %p76
    %p78 = scmp.ne.s32.totalorder %s70, %s73
    %p79 = scmp.eq.s32.totalorder %s11, 0
    %p80 = por %p78, %p79
    %p81 = scmp.ne.s32.totalorder %s70, %s73
    %p82 = scmp.eq.s32.totalorder %s16, 3
    %p83 = por %p81, %p82
    %p84 = scmp.ne.s32.totalorder %s73, %s74
    %p85 = scmp.eq.s32.totalorder %s16, 0
    %p86 = por %p84, %p85
    %p87 = scmp.ne.s32.totalorder %s73, %s74
    %p88 = scmp.eq.s32.totalorder %s17, 3
    %p89 = por %p87, %p88
    %p91 = scmp.ne.s32.totalorder %s74, %s90
    %p92 = scmp.eq.s32.totalorder %s17, 0
    %p93 = por %p91, %p92
    %s95 = sadd.s32 %s94, 1
    %p98 = scmp.eq.s32.totalorder %s11, 3
    %p99 = scmp.ne.s32.totalorder %s94, %s96
    %p100 = scmp.eq.s32.totalorder %s11, 0
    %p101 = por %p99, %p100
    %p102 = scmp.ne.s32.totalorder %s94, %s96
    %p103 = scmp.eq.s32.totalorder %s16, 3
    %p104 = por %p102, %p103
    %p105 = scmp.ne.s32.totalorder %s96, %s97
    %p106 = scmp.eq.s32.totalorder %s16, 0
    %p107 = por %p105, %p106
    %p108 = scmp.ne.s32.totalorder %s96, %s97
    %p109 = scmp.eq.s32.totalorder %s17, 3
    %p110 = por %p108, %p109
    %p112 = scmp.ne.s32.totalorder %s97, %s111
    %p113 = scmp.eq.s32.totalorder %s17, 0
    %p114 = por %p112, %p113
    %s116 = sadd.s32 %s115, 1
    %p119 = scmp.eq.s32.totalorder %s11, 3
    %p120 = scmp.ne.s32.totalorder %s115, %s117
    %p121 = scmp.eq.s32.totalorder %s11, 0
    %p122 = por %p120, %p121
    %p123 = scmp.ne.s32.totalorder %s115, %s117
    %p124 = scmp.eq.s32.totalorder %s16, 3
    %p125 = por %p123, %p124
    %p126 = scmp.ne.s32.totalorder %s117, %s118
    %p127 = scmp.eq.s32.totalorder %s16, 0
    %p128 = por %p126, %p127
    %p129 = scmp.ne.s32.totalorder %s117, %s118
    %p130 = scmp.eq.s32.totalorder %s17, 3
    %p131 = por %p129, %p130
    %p133 = scmp.ne.s32.totalorder %s118, %s132
    %p134 = scmp.eq.s32.totalorder %s17, 0
    %p135 = por %p133, %p134
    %s137 = sadd.s32 %s136, 1
    %p140 = scmp.eq.s32.totalorder %s11, 3
    %p141 = scmp.ne.s32.totalorder %s136, %s138
    %p142 = scmp.eq.s32.totalorder %s11, 0
    %p143 = por %p141, %p142
    %p144 = scmp.ne.s32.totalorder %s136, %s138
    %p145 = scmp.eq.s32.totalorder %s16, 3
    %p146 = por %p144, %p145
    %p147 = scmp.ne.s32.totalorder %s138, %s139
    %p148 = scmp.eq.s32.totalorder %s16, 0
    %p149 = por %p147, %p148
    %p150 = scmp.ne.s32.totalorder %s138, %s139
    %p151 = scmp.eq.s32.totalorder %s17, 3
    %p152 = por %p150, %p151
    %p154 = scmp.ne.s32.totalorder %s139, %s153
    %p155 = scmp.eq.s32.totalorder %s17, 0
    %p156 = por %p154, %p155
    %s157 = ssub.s32 %s18, %s37
    %s158 = ssub.s32 %s19, %s33
    %s159 = sor.u32 %s157, %s158
    %p160 = scmp.eq.s32.totalorder %s159, 0
    %s162 = sadd.s32 %s161, 1
    %s163 = scalar_select %p160, %s161, %s162
    %p166 = pneg %p160
    %p167 = scmp.eq.s32.totalorder %s11, 3
    %p168 = por %p166, %p167
    %p169 = scmp.ne.s32.totalorder %s161, %s164
    %p170 = scmp.eq.s32.totalorder %s11, 0
    %p171 = por %p169, %p170
    %p172 = scmp.ne.s32.totalorder %s161, %s164
    %p173 = scmp.eq.s32.totalorder %s16, 3
    %p174 = por %p172, %p173
    %p175 = scmp.ne.s32.totalorder %s164, %s165
    %p176 = scmp.eq.s32.totalorder %s16, 0
    %p177 = por %p175, %p176
    %p178 = scmp.ne.s32.totalorder %s164, %s165
    %p179 = scmp.eq.s32.totalorder %s17, 3
    %p180 = por %p178, %p179
    %p182 = scmp.ne.s32.totalorder %s165, %s181
    %p183 = scmp.eq.s32.totalorder %s17, 0
    %p184 = por %p182, %p183
    %p185 = scmp.le.s32.totalorder 1, %s11
    %p186 = scmp.lt.s32.totalorder %s11, 5
    %p187 = pnand %p185, %p186
    %p188 = pneg %p187
    // Predicated region
    $region9: #{tpu_custom_call.1} parent=5 // pred_check
      _
    $region10: #{tpu_custom_call.1} parent=5 // pred_check_branch
      %190 = sbr.rel (%p187) target = $region12
    $region11: #{tpu_custom_call.1} parent=5 // pred_region
      %s191 = ssub.s32 %s11, 1
      // Predicated region
      $region13: #{tpu_custom_call.1} parent=11 // pred_check
        %p192 = pneg %p86
      $region14: #{tpu_custom_call.1} parent=11 // pred_check_branch
        %194 = sbr.rel (%p192) target = $region16
      $region15: #{tpu_custom_call.1} parent=11 // pred_region
        %s195 = smul.u32 2, %s23
        %p196 = scmp.lt.s32.totalorder %s195, 1
        %s197 = scalar_select %p196, %s195, 1
        %s198 = smul.addr %s197, 4
        %s199 = scalar_lea.vmem %s1, %s198
        %s200 = smul.u32 2, %s23
      $region16: #{tpu_custom_call.1} parent=11 // pred_fallthru
        _
      // Predicated region
      $region17: #{tpu_custom_call.1} parent=11 // pred_check
        %p201 = pneg %p107
      $region18: #{tpu_custom_call.1} parent=11 // pred_check_branch
        %203 = sbr.rel (%p201) target = $region20
      $region19: #{tpu_custom_call.1} parent=11 // pred_region
        _
      $region20: #{tpu_custom_call.1} parent=11 // pred_fallthru
        _
      // Predicated region
      $region21: #{tpu_custom_call.1} parent=11 // pred_check
        %p204 = pneg %p128
      $region22: #{tpu_custom_call.1} parent=11 // pred_check_branch
        %206 = sbr.rel (%p204) target = $region24
      $region23: #{tpu_custom_call.1} parent=11 // pred_region
        _
      $region24: #{tpu_custom_call.1} parent=11 // pred_fallthru
        _
      // Predicated region
      $region25: #{tpu_custom_call.1} parent=11 // pred_check
        %p207 = pneg %p149
      $region26: #{tpu_custom_call.1} parent=11 // pred_check_branch
        %209 = sbr.rel (%p207) target = $region28
      $region27: #{tpu_custom_call.1} parent=11 // pred_region
        _
      $region28: #{tpu_custom_call.1} parent=11 // pred_fallthru
        _
    $region12: #{tpu_custom_call.1} parent=5 // pred_fallthru
      _
    %p210 = scmp.lt.s32.totalorder %s11, 4
    // Predicated region
    $region29: #{tpu_custom_call.1} parent=5 // pred_check
      %p211 = pneg %p210
    $region30: #{tpu_custom_call.1} parent=5 // pred_check_branch
      %213 = sbr.rel (%p211) target = $region32
    $region31: #{tpu_custom_call.1} parent=5 // pred_region
      // Predicated region
      $region33: #{tpu_custom_call.1} parent=31 // pred_check
        %p214 = pneg %p54
      $region34: #{tpu_custom_call.1} parent=31 // pred_check_branch
        %216 = sbr.rel (%p214) target = $region36
      $region35: #{tpu_custom_call.1} parent=31 // pred_region
        %p217 = scmp.lt.s32.totalorder %s18, 1
        %s218 = scalar_select %p217, %s18, 1
        %p219 = scmp.lt.s32.totalorder %s19, 1
        %s220 = scalar_select %p219, %s19, 1
        %p221 = scmp.lt.s32.totalorder %s20, 0
        %s222 = scalar_select %p221, %s20, 0
        %s223 = smul.addr %s220, 30
        %s224 = sadd.s32 %s222, %s223
        %s225 = smul.addr %s218, 60
        %s226 = sadd.s32 %s224, %s225
        %s227 = smul.addr %s226, 4
        %s228 = scalar_lea.vmem %s0, %s227
      $region36: #{tpu_custom_call.1} parent=31 // pred_fallthru
        _
    $region32: #{tpu_custom_call.1} parent=5 // pred_fallthru
      _
    %p229 = scmp.le.s32.totalorder 1, %s11
    %p230 = scmp.lt.s32.totalorder %s11, 5
    %p231 = pnand %p229, %p230
    %p232 = pneg %p231
    // Predicated region
    $region37: #{tpu_custom_call.1} parent=5 // pred_check
      _
    $region38: #{tpu_custom_call.1} parent=5 // pred_check_branch
      %234 = sbr.rel (%p231) target = $region40
    $region39: #{tpu_custom_call.1} parent=5 // pred_region
      %s235 = ssub.s32 %s11, 1
      %p236 = scmp.lt.s32.totalorder %s21, 1
      %s237 = scalar_select %p236, %s21, 1
      %p238 = scmp.lt.s32.totalorder %s22, 1
      %s239 = scalar_select %p238, %s22, 1
      %p240 = scmp.lt.s32.totalorder %s23, 0
      %s241 = scalar_select %p240, %s23, 0
      %s242 = smul.addr %s239, 30
      %s243 = sadd.s32 %s241, %s242
      %s244 = smul.addr %s237, 60
      %s245 = sadd.s32 %s243, %s244
      %s246 = smul.addr %s245, 4
      %s247 = scalar_lea.vmem %s0, %s246
      %p248 = pneg %p60
      %p249 = pneg %p57
      %s250 = smul.u32 2, %s23
      %p251 = scmp.lt.s32.totalorder %s250, 1
      %s252 = scalar_select %p251, %s250, 1
      %s253 = smul.addr %s252, 4
      %s254 = scalar_lea.vmem %s1, %s253
      %p255 = pneg %p86
      %p256 = pneg %p83
      %p257 = pneg %p107
      %p258 = pneg %p104
      %p259 = pneg %p128
      %p260 = pneg %p125
      %p261 = pneg %p149
      %p262 = pneg %p146
      %p263 = pneg %p177
      %p264 = pneg %p174
      %s265 = smul.u32 16, %s22
      %p266 = scmp.lt.s32.totalorder %s21, 1
      %s267 = scalar_select %p266, %s21, 1
      %p268 = scmp.lt.s32.totalorder %s265, 31
      %s269 = scalar_select %p268, %s265, 31
      %s270 = smul.addr %s267, 32
      %s271 = sadd.s32 %s269, %s270
      %s272 = smul.addr %s271, 4
      %s273 = scalar_lea.vmem %s5, %s272
      %p274 = scmp.lt.s32.totalorder %s21, 1
      %s275 = scalar_select %p274, %s21, 1
      %p276 = scmp.lt.s32.totalorder %s22, 1
      %s277 = scalar_select %p276, %s22, 1
      %p278 = scmp.lt.s32.totalorder %s23, 0
      %s279 = scalar_select %p278, %s23, 0
      %s280 = smul.addr %s277, 30
      %s281 = sadd.s32 %s279, %s280
      %s282 = smul.addr %s275, 60
      %s283 = sadd.s32 %s281, %s282
      %s284 = smul.addr %s283, 4
      %s285 = scalar_lea.vmem %s0, %s284
      %s286 = smul.u32 2, %s23
      %p287 = scmp.lt.s32.totalorder %s286, 1
      %s288 = scalar_select %p287, %s286, 1
      %s289 = smul.addr %s288, 4
      %s290 = scalar_lea.vmem %s1, %s289
      %s291 = smul.u32 2, %s23
      %s292 = smul.u32 16, %s22
      %p293 = scmp.lt.s32.totalorder %s21, 1
      %s294 = scalar_select %p293, %s21, 1
      %p295 = scmp.lt.s32.totalorder %s292, 31
      %s296 = scalar_select %p295, %s292, 31
      %s297 = smul.addr %s294, 32
      %s298 = sadd.s32 %s296, %s297
      %s299 = smul.addr %s298, 4
      %s300 = scalar_lea.vmem %s5, %s299
      %s301 = smul.u32 16, %s22
      %p303 = scmp.eq.s32.totalorder %s23, 0
      // Predicated region
      $region41: #{tpu_custom_call.1} parent=39 // pred_check
        %p304 = pneg %p303
      $region42: #{tpu_custom_call.1} parent=39 // pred_check_branch
        %306 = sbr.rel (%p304) target = $region44
      $region43: #{tpu_custom_call.1} parent=39 // pred_region
        %307 = vst [vmem:[#allocation2] sm:$0xff] 0.0
        %308 = vst [vmem:[#allocation2 + $0x8] sm:$0xff] 0.0
        %309 = vst [vmem:[#allocation2 + $0x10] sm:$0xff] 0.0
        %310 = vst [vmem:[#allocation2 + $0x18] sm:$0xff] 0.0
        %311 = vst [vmem:[#allocation2 + $0x20] sm:$0xff] 0.0
        %312 = vst [vmem:[#allocation2 + $0x28] sm:$0xff] 0.0
        %313 = vst [vmem:[#allocation2 + $0x30] sm:$0xff] 0.0
        %314 = vst [vmem:[#allocation2 + $0x38] sm:$0xff] 0.0
        %315 = vst [vmem:[#allocation2 + $0x40] sm:$0xff] 0.0
        %316 = vst [vmem:[#allocation2 + $0x48] sm:$0xff] 0.0
        %317 = vst [vmem:[#allocation2 + $0x50] sm:$0xff] 0.0
        %318 = vst [vmem:[#allocation2 + $0x58] sm:$0xff] 0.0
        %319 = vst [vmem:[#allocation2 + $0x60] sm:$0xff] 0.0
        %320 = vst [vmem:[#allocation2 + $0x68] sm:$0xff] 0.0
        %321 = vst [vmem:[#allocation2 + $0x70] sm:$0xff] 0.0
        %322 = vst [vmem:[#allocation2 + $0x78] sm:$0xff] 0.0
      $region44: #{tpu_custom_call.1} parent=39 // pred_fallthru
        _
      %v323 = vld [vmem:[%s285] sm:$0xf]
      %v324 = vld [vmem:[%s285 + $0x4] sm:$0xf]
      %v325 = vld [vmem:[%s285 + $0xc] sm:$0xf]
      %v326 = vld [vmem:[%s285 + $0x10] sm:$0xf]
      %v327 = vld [vmem:[%s285 + $0x18] sm:$0xf]
      %v328 = vld [vmem:[%s285 + $0x1c] sm:$0xf]
      %v329 = vld [vmem:[%s285 + $0x24] sm:$0xf]
      %v330 = vld [vmem:[%s285 + $0x28] sm:$0xf]
      %v331 = vld [vmem:[%s285 + $0x30] sm:$0xf]
      %v332 = vld [vmem:[%s285 + $0x34] sm:$0xf]
      %v333 = vld [vmem:[%s285 + $0x3c] sm:$0xf]
      %v334 = vld [vmem:[%s285 + $0x40] sm:$0xf]
      %v335 = vld [vmem:[%s285 + $0x48] sm:$0xf]
      %v336 = vld [vmem:[%s285 + $0x4c] sm:$0xf]
      %v337 = vld [vmem:[%s285 + $0x54] sm:$0xf]
      %v338 = vld [vmem:[%s285 + $0x58] sm:$0xf]
      %v339 = vld [vmem:[#allocation2] sm:$0xff]
      %v340 = vld [vmem:[#allocation2 + $0x8] sm:$0xff]
      %v341 = vld [vmem:[#allocation2 + $0x10] sm:$0xff]
      %v342 = vld [vmem:[#allocation2 + $0x18] sm:$0xff]
      %v343 = vld [vmem:[#allocation2 + $0x20] sm:$0xff]
      %v344 = vld [vmem:[#allocation2 + $0x28] sm:$0xff]
      %v345 = vld [vmem:[#allocation2 + $0x30] sm:$0xff]
      %v346 = vld [vmem:[#allocation2 + $0x38] sm:$0xff]
      %v347 = vld [vmem:[#allocation2 + $0x40] sm:$0xff]
      %v348 = vld [vmem:[#allocation2 + $0x48] sm:$0xff]
      %v349 = vld [vmem:[#allocation2 + $0x50] sm:$0xff]
      %v350 = vld [vmem:[#allocation2 + $0x58] sm:$0xff]
      %v351 = vld [vmem:[#allocation2 + $0x60] sm:$0xff]
      %v352 = vld [vmem:[#allocation2 + $0x68] sm:$0xff]
      %v353 = vld [vmem:[#allocation2 + $0x70] sm:$0xff]
      %v354 = vld [vmem:[#allocation2 + $0x78] sm:$0xff]
      %v355 = vld [vmem:[%s290] sm:$0xf]
      %v356 = vld [vmem:[%s290 + $0x4] sm:$0xf]
      %v373 = vunpack.c.l.b16 %v323
      %v374 = vunpack.c.l.b16 %v324
      %v375 = vunpack.c.l.b16 %v325
      %v376 = vunpack.c.l.b16 %v326
      %v377 = vunpack.c.l.b16 %v327
      %v378 = vunpack.c.l.b16 %v328
      %v379 = vunpack.c.l.b16 %v329
      %v380 = vunpack.c.l.b16 %v330
      %v381 = vunpack.c.l.b16 %v331
      %v382 = vunpack.c.l.b16 %v332
      %v383 = vunpack.c.l.b16 %v333
      %v384 = vunpack.c.l.b16 %v334
      %v385 = vunpack.c.l.b16 %v335
      %v386 = vunpack.c.l.b16 %v336
      %v387 = vunpack.c.l.b16 %v337
      %v388 = vunpack.c.l.b16 %v338
      %v389 = vpack.c.b16 %v374, %v373
      %v390 = vpack.c.b16 %v376, %v375
      %v391 = vpack.c.b16 %v378, %v377
      %v392 = vpack.c.b16 %v380, %v379
      %v393 = vpack.c.b16 %v382, %v381
      %v394 = vpack.c.b16 %v384, %v383
      %v395 = vpack.c.b16 %v386, %v385
      %v396 = vpack.c.b16 %v388, %v387
      %v399 = vunpack.c.l.b16 %v355
      %v400 = vunpack.c.l.b16 %v356
      %v401 = vpack.c.b16 %v400, %v399
      %vm403 = vcmask 130048
      %v405 = vsel %vm403, %v389, 0
      %v408 = vsel %vm403, %v390, 0
      %v411 = vsel %vm403, %v391, 0
      %v414 = vsel %vm403, %v392, 0
      %v417 = vsel %vm403, %v393, 0
      %v420 = vsel %vm403, %v394, 0
      %v423 = vsel %vm403, %v395, 0
      %v426 = vsel %vm403, %v396, 0
      %428 = vmatprep.subr.bf16.mxu0 0
      %429 = vmatpush1.bf16.msra.mxu0 0
      %430 = vmatprep.subr.bf16.mxu0 0
      %431 = vmatpush1.bf16.msra.mxu0 0
      %432 = vmatprep.subr.bf16.mxu0 0
      %433 = vmatpush1.bf16.msra.mxu0 0
      %434 = vmatprep.subr.bf16.mxu0 0
      %435 = vmatpush1.bf16.msra.mxu0 0
      %436 = vmatprep.subr.bf16.mxu0 0
      %437 = vmatpush1.bf16.msra.mxu0 0
      %438 = vmatprep.subr.bf16.mxu0 0
      %439 = vmatpush1.bf16.msra.mxu0 0
      %440 = vmatprep.subr.bf16.mxu0 0
      %441 = vmatpush1.bf16.msra.mxu0 0
      %442 = vmatprep.subr.bf16.mxu0 0
      %443 = vmatpush1.bf16.msra.mxu0 %v401
      %444 = vmatprep.subr.bf16.mxu0 0
      %445 = vmatpush2.bf16.msra.mxu0 0
      %446 = vmatprep.subr.bf16.mxu0 0
      %447 = vmatpush2.bf16.msra.mxu0 0
      %448 = vmatprep.subr.bf16.mxu0 0
      %449 = vmatpush2.bf16.msra.mxu0 0
      %450 = vmatprep.subr.bf16.mxu0 0
      %451 = vmatpush2.bf16.msra.mxu0 0
      %452 = vmatprep.subr.bf16.mxu0 0
      %453 = vmatpush2.bf16.msra.mxu0 0
      %454 = vmatprep.subr.bf16.mxu0 0
      %455 = vmatpush2.bf16.msra.mxu0 0
      %456 = vmatprep.subr.bf16.mxu0 0
      %457 = vmatpush2.bf16.msra.mxu0 0
      %458 = vmatprep.subr.bf16.mxu0 0
      %459 = vmatpush2.bf16.msra.mxu0 0
      %460 = vmatprep.mubr.bf16.mxu0 0
      %461 = vmatmul.mubr.bf16.gmra.mxu0 %v405
      %v462 = vpop.f32.mrf.mxu0
      %v463 = vadd.f32 0.0, %v462
      %v464 = vpop.f32.mrf.mxu0
      %v465 = vpop.f32.mrf.mxu0
      %v466 = vadd.f32 0.0, %v465
      %v467 = vpop.f32.mrf.mxu0
      %468 = vmatprep.mubr.bf16.mxu0 0
      %469 = vmatmul.mubr.bf16.gmra.mxu0 %v408
      %v470 = vpop.f32.mrf.mxu0
      %v471 = vadd.f32 0.0, %v470
      %v472 = vpop.f32.mrf.mxu0
      %v473 = vpop.f32.mrf.mxu0
      %v474 = vadd.f32 0.0, %v473
      %v475 = vpop.f32.mrf.mxu0
      %476 = vmatprep.mubr.bf16.mxu0 0
      %477 = vmatmul.mubr.bf16.gmra.mxu0 %v411
      %v478 = vpop.f32.mrf.mxu0
      %v479 = vadd.f32 0.0, %v478
      %v480 = vpop.f32.mrf.mxu0
      %v481 = vpop.f32.mrf.mxu0
      %v482 = vadd.f32 0.0, %v481
      %v483 = vpop.f32.mrf.mxu0
      %484 = vmatprep.mubr.bf16.mxu0 0
      %485 = vmatmul.mubr.bf16.gmra.mxu0 %v414
      %v486 = vpop.f32.mrf.mxu0
      %v487 = vadd.f32 0.0, %v486
      %v488 = vpop.f32.mrf.mxu0
      %v489 = vpop.f32.mrf.mxu0
      %v490 = vadd.f32 0.0, %v489
      %v491 = vpop.f32.mrf.mxu0
      %492 = vmatprep.mubr.bf16.mxu0 0
      %493 = vmatmul.mubr.bf16.gmra.mxu0 %v417
      %v494 = vpop.f32.mrf.mxu0
      %v495 = vadd.f32 0.0, %v494
      %v496 = vpop.f32.mrf.mxu0
      %v497 = vpop.f32.mrf.mxu0
      %v498 = vadd.f32 0.0, %v497
      %v499 = vpop.f32.mrf.mxu0
      %500 = vmatprep.mubr.bf16.mxu0 0
      %501 = vmatmul.mubr.bf16.gmra.mxu0 %v420
      %v502 = vpop.f32.mrf.mxu0
      %v503 = vadd.f32 0.0, %v502
      %v504 = vpop.f32.mrf.mxu0
      %v505 = vpop.f32.mrf.mxu0
      %v506 = vadd.f32 0.0, %v505
      %v507 = vpop.f32.mrf.mxu0
      %508 = vmatprep.mubr.bf16.mxu0 0
      %509 = vmatmul.mubr.bf16.gmra.mxu0 %v423
      %v510 = vpop.f32.mrf.mxu0
      %v511 = vadd.f32 0.0, %v510
      %v512 = vpop.f32.mrf.mxu0
      %v513 = vpop.f32.mrf.mxu0
      %v514 = vadd.f32 0.0, %v513
      %v515 = vpop.f32.mrf.mxu0
      %516 = vmatprep.mubr.bf16.mxu0 0
      %517 = vmatmul.mubr.bf16.gmra.mxu0 %v426
      %v518 = vpop.f32.mrf.mxu0
      %v519 = vadd.f32 0.0, %v518
      %v520 = vpop.f32.mrf.mxu0
      %v521 = vpop.f32.mrf.mxu0
      %v522 = vadd.f32 0.0, %v521
      %v523 = vpop.f32.mrf.mxu0
      %524 = vdwg.mxu0
      %v525 = vadd.f32 %v339, %v463
      %v526 = vadd.f32 %v340, %v466
      %v527 = vadd.f32 %v341, %v471
      %v528 = vadd.f32 %v342, %v474
      %v529 = vadd.f32 %v343, %v479
      %v530 = vadd.f32 %v344, %v482
      %v531 = vadd.f32 %v345, %v487
      %v532 = vadd.f32 %v346, %v490
      %v533 = vadd.f32 %v347, %v495
      %v534 = vadd.f32 %v348, %v498
      %v535 = vadd.f32 %v349, %v503
      %v536 = vadd.f32 %v350, %v506
      %v537 = vadd.f32 %v351, %v511
      %v538 = vadd.f32 %v352, %v514
      %v539 = vadd.f32 %v353, %v519
      %v540 = vadd.f32 %v354, %v522
      %541 = vst [vmem:[#allocation2] sm:$0xff] %v525
      %542 = vst [vmem:[#allocation2 + $0x8] sm:$0xff] %v526
      %543 = vst [vmem:[#allocation2 + $0x10] sm:$0xff] %v527
      %544 = vst [vmem:[#allocation2 + $0x18] sm:$0xff] %v528
      %545 = vst [vmem:[#allocation2 + $0x20] sm:$0xff] %v529
      %546 = vst [vmem:[#allocation2 + $0x28] sm:$0xff] %v530
      %547 = vst [vmem:[#allocation2 + $0x30] sm:$0xff] %v531
      %548 = vst [vmem:[#allocation2 + $0x38] sm:$0xff] %v532
      %549 = vst [vmem:[#allocation2 + $0x40] sm:$0xff] %v533
      %550 = vst [vmem:[#allocation2 + $0x48] sm:$0xff] %v534
      %551 = vst [vmem:[#allocation2 + $0x50] sm:$0xff] %v535
      %552 = vst [vmem:[#allocation2 + $0x58] sm:$0xff] %v536
      %553 = vst [vmem:[#allocation2 + $0x60] sm:$0xff] %v537
      %554 = vst [vmem:[#allocation2 + $0x68] sm:$0xff] %v538
      %555 = vst [vmem:[#allocation2 + $0x70] sm:$0xff] %v539
      %556 = vst [vmem:[#allocation2 + $0x78] sm:$0xff] %v540
      %v557 = vld [vmem:[%s285] sm:$0xf]
      %v558 = vld [vmem:[%s285 + $0x4] sm:$0xf]
      %v559 = vld [vmem:[%s285 + $0x8] sm:$0x1]
      %v560 = vld [vmem:[%s285 + $0xc] sm:$0xf]
      %v561 = vld [vmem:[%s285 + $0x10] sm:$0xf]
      %v562 = vld [vmem:[%s285 + $0x14] sm:$0x1]
      %v563 = vld [vmem:[%s285 + $0x18] sm:$0xf]
      %v564 = vld [vmem:[%s285 + $0x1c] sm:$0xf]
      %v565 = vld [vmem:[%s285 + $0x20] sm:$0x1]
      %v566 = vld [vmem:[%s285 + $0x24] sm:$0xf]
      %v567 = vld [vmem:[%s285 + $0x28] sm:$0xf]
      %v568 = vld [vmem:[%s285 + $0x2c] sm:$0x1]
      %v569 = vld [vmem:[%s285 + $0x30] sm:$0xf]
      %v570 = vld [vmem:[%s285 + $0x34] sm:$0xf]
      %v571 = vld [vmem:[%s285 + $0x38] sm:$0x1]
      %v572 = vld [vmem:[%s285 + $0x3c] sm:$0xf]
      %v573 = vld [vmem:[%s285 + $0x40] sm:$0xf]
      %v574 = vld [vmem:[%s285 + $0x44] sm:$0x1]
      %v575 = vld [vmem:[%s285 + $0x48] sm:$0xf]
      %v576 = vld [vmem:[%s285 + $0x4c] sm:$0xf]
      %v577 = vld [vmem:[%s285 + $0x50] sm:$0x1]
      %v578 = vld [vmem:[%s285 + $0x54] sm:$0xf]
      %v579 = vld [vmem:[%s285 + $0x58] sm:$0xf]
      %v580 = vld [vmem:[%s285 + $0x5c] sm:$0x1]
      %vm581 = vsmask.f32 3328
      %vm582 = vsmask.f32 7440
      %vm583 = vmor %vm581, %vm582
      %v585 = vshrl.u32 %v557, 16
      %v587 = vrot.slane %v585, 4
      %v588 = vshll.u32 %v557, 16
      %v590 = vrot.slane %v588, 5
      %v591 = vor.u32 %v587, %v590
      %v592 = vrot.slane %v591, 4
      %v594 = vshll.u32 %v558, 16
      %v596 = vrot.slane %v594, 5
      %v597 = vsel %vm583, %v592, %v596
      %v598 = vshrl.u32 %v558, 16
      %v600 = vrot.slane %v598, 4
      %v601 = vor.u32 %v600, %v596
      %v602 = vrot.slane %v601, 4
      %v604 = vshll.u32 %v559, 16
      %v606 = vrot.slane %v604, 5
      %v607 = vsel %vm583, %v602, %v606
      %v609 = vshrl.u32 %v560, 16
      %v611 = vrot.slane %v609, 4
      %v612 = vshll.u32 %v560, 16
      %v614 = vrot.slane %v612, 5
      %v615 = vor.u32 %v611, %v614
      %v616 = vrot.slane %v615, 4
      %v618 = vshll.u32 %v561, 16
      %v620 = vrot.slane %v618, 5
      %v621 = vsel %vm583, %v616, %v620
      %v622 = vshrl.u32 %v561, 16
      %v624 = vrot.slane %v622, 4
      %v625 = vor.u32 %v624, %v620
      %v626 = vrot.slane %v625, 4
      %v628 = vshll.u32 %v562, 16
      %v630 = vrot.slane %v628, 5
      %v631 = vsel %vm583, %v626, %v630
      %v633 = vshrl.u32 %v563, 16
      %v635 = vrot.slane %v633, 4
      %v636 = vshll.u32 %v563, 16
      %v638 = vrot.slane %v636, 5
      %v639 = vor.u32 %v635, %v638
      %v640 = vrot.slane %v639, 4
      %v642 = vshll.u32 %v564, 16
      %v644 = vrot.slane %v642, 5
      %v645 = vsel %vm583, %v640, %v644
      %v646 = vshrl.u32 %v564, 16
      %v648 = vrot.slane %v646, 4
      %v649 = vor.u32 %v648, %v644
      %v650 = vrot.slane %v649, 4
      %v652 = vshll.u32 %v565, 16
      %v654 = vrot.slane %v652, 5
      %v655 = vsel %vm583, %v650, %v654
      %v657 = vshrl.u32 %v566, 16
      %v659 = vrot.slane %v657, 4
      %v660 = vshll.u32 %v566, 16
      %v662 = vrot.slane %v660, 5
      %v663 = vor.u32 %v659, %v662
      %v664 = vrot.slane %v663, 4
      %v666 = vshll.u32 %v567, 16
      %v668 = vrot.slane %v666, 5
      %v669 = vsel %vm583, %v664, %v668
      %v670 = vshrl.u32 %v567, 16
      %v672 = vrot.slane %v670, 4
      %v673 = vor.u32 %v672, %v668
      %v674 = vrot.slane %v673, 4
      %v676 = vshll.u32 %v568, 16
      %v678 = vrot.slane %v676, 5
      %v679 = vsel %vm583, %v674, %v678
      %v681 = vshrl.u32 %v569, 16
      %v683 = vrot.slane %v681, 4
      %v684 = vshll.u32 %v569, 16
      %v686 = vrot.slane %v684, 5
      %v687 = vor.u32 %v683, %v686
      %v688 = vrot.slane %v687, 4
      %v690 = vshll.u32 %v570, 16
      %v692 = vrot.slane %v690, 5
      %v693 = vsel %vm583, %v688, %v692
      %v694 = vshrl.u32 %v570, 16
      %v696 = vrot.slane %v694, 4
      %v697 = vor.u32 %v696, %v692
      %v698 = vrot.slane %v697, 4
      %v700 = vshll.u32 %v571, 16
      %v702 = vrot.slane %v700, 5
      %v703 = vsel %vm583, %v698, %v702
      %v705 = vshrl.u32 %v572, 16
      %v707 = vrot.slane %v705, 4
      %v708 = vshll.u32 %v572, 16
      %v710 = vrot.slane %v708, 5
      %v711 = vor.u32 %v707, %v710
      %v712 = vrot.slane %v711, 4
      %v714 = vshll.u32 %v573, 16
      %v716 = vrot.slane %v714, 5
      %v717 = vsel %vm583, %v712, %v716
      %v718 = vshrl.u32 %v573, 16
      %v720 = vrot.slane %v718, 4
      %v721 = vor.u32 %v720, %v716
      %v722 = vrot.slane %v721, 4
      %v724 = vshll.u32 %v574, 16
      %v726 = vrot.slane %v724, 5
      %v727 = vsel %vm583, %v722, %v726
      %v729 = vshrl.u32 %v575, 16
      %v731 = vrot.slane %v729, 4
      %v732 = vshll.u32 %v575, 16
      %v734 = vrot.slane %v732, 5
      %v735 = vor.u32 %v731, %v734
      %v736 = vrot.slane %v735, 4
      %v738 = vshll.u32 %v576, 16
      %v740 = vrot.slane %v738, 5
      %v741 = vsel %vm583, %v736, %v740
      %v742 = vshrl.u32 %v576, 16
      %v744 = vrot.slane %v742, 4
      %v745 = vor.u32 %v744, %v740
      %v746 = vrot.slane %v745, 4
      %v748 = vshll.u32 %v577, 16
      %v750 = vrot.slane %v748, 5
      %v751 = vsel %vm583, %v746, %v750
      %v753 = vshrl.u32 %v578, 16
      %v755 = vrot.slane %v753, 4
      %v756 = vshll.u32 %v578, 16
      %v758 = vrot.slane %v756, 5
      %v759 = vor.u32 %v755, %v758
      %v760 = vrot.slane %v759, 4
      %v762 = vshll.u32 %v579, 16
      %v764 = vrot.slane %v762, 5
      %v765 = vsel %vm583, %v760, %v764
      %v766 = vshrl.u32 %v579, 16
      %v768 = vrot.slane %v766, 4
      %v769 = vor.u32 %v768, %v764
      %v770 = vrot.slane %v769, 4
      %v772 = vshll.u32 %v580, 16
      %v774 = vrot.slane %v772, 5
      %v775 = vsel %vm583, %v770, %v774
      %v776 = vld [vmem:[#allocation2] sm:$0xff]
      %v777 = vld [vmem:[#allocation2 + $0x8] sm:$0xff]
      %v778 = vld [vmem:[#allocation2 + $0x10] sm:$0xff]
      %v779 = vld [vmem:[#allocation2 + $0x18] sm:$0xff]
      %v780 = vld [vmem:[#allocation2 + $0x20] sm:$0xff]
      %v781 = vld [vmem:[#allocation2 + $0x28] sm:$0xff]
      %v782 = vld [vmem:[#allocation2 + $0x30] sm:$0xff]
      %v783 = vld [vmem:[#allocation2 + $0x38] sm:$0xff]
      %v784 = vld [vmem:[#allocation2 + $0x40] sm:$0xff]
      %v785 = vld [vmem:[#allocation2 + $0x48] sm:$0xff]
      %v786 = vld [vmem:[#allocation2 + $0x50] sm:$0xff]
      %v787 = vld [vmem:[#allocation2 + $0x58] sm:$0xff]
      %v788 = vld [vmem:[#allocation2 + $0x60] sm:$0xff]
      %v789 = vld [vmem:[#allocation2 + $0x68] sm:$0xff]
      %v790 = vld [vmem:[#allocation2 + $0x70] sm:$0xff]
      %v791 = vld [vmem:[#allocation2 + $0x78] sm:$0xff]
      %s792 = scalar_lea.vmem %s290, 8
      %v793 = vld [vmem:[%s792] sm:$0xf]
      %v794 = vld [vmem:[%s792 + $0x4] sm:$0xf]
      %v795 = vunpack.c.l.b16 %v597
      %v796 = vunpack.c.l.b16 %v607
      %v797 = vunpack.c.l.b16 %v621
      %v798 = vunpack.c.l.b16 %v631
      %v799 = vunpack.c.l.b16 %v645
      %v800 = vunpack.c.l.b16 %v655
      %v801 = vunpack.c.l.b16 %v669
      %v802 = vunpack.c.l.b16 %v679
      %v803 = vunpack.c.l.b16 %v693
      %v804 = vunpack.c.l.b16 %v703
      %v805 = vunpack.c.l.b16 %v717
      %v806 = vunpack.c.l.b16 %v727
      %v807 = vunpack.c.l.b16 %v741
      %v808 = vunpack.c.l.b16 %v751
      %v809 = vunpack.c.l.b16 %v765
      %v810 = vunpack.c.l.b16 %v775
      %v811 = vpack.c.b16 %v796, %v795
      %v812 = vpack.c.b16 %v798, %v797
      %v813 = vpack.c.b16 %v800, %v799
      %v814 = vpack.c.b16 %v802, %v801
      %v815 = vpack.c.b16 %v804, %v803
      %v816 = vpack.c.b16 %v806, %v805
      %v817 = vpack.c.b16 %v808, %v807
      %v818 = vpack.c.b16 %v810, %v809
      %v821 = vunpack.c.l.b16 %v793
      %v822 = vunpack.c.l.b16 %v794
      %v823 = vpack.c.b16 %v822, %v821
      %v826 = vsel %vm403, %v811, 0
      %v829 = vsel %vm403, %v812, 0
      %v832 = vsel %vm403, %v813, 0
      %v835 = vsel %vm403, %v814, 0
      %v838 = vsel %vm403, %v815, 0
      %v841 = vsel %vm403, %v816, 0
      %v844 = vsel %vm403, %v817, 0
      %v847 = vsel %vm403, %v818, 0
      %849 = vmatprep.subr.bf16.mxu0 0
      %850 = vmatpush1.bf16.msra.mxu0 0
      %851 = vmatprep.subr.bf16.mxu0 0
      %852 = vmatpush1.bf16.msra.mxu0 0
      %853 = vmatprep.subr.bf16.mxu0 0
      %854 = vmatpush1.bf16.msra.mxu0 0
      %855 = vmatprep.subr.bf16.mxu0 0
      %856 = vmatpush1.bf16.msra.mxu0 0
      %857 = vmatprep.subr.bf16.mxu0 0
      %858 = vmatpush1.bf16.msra.mxu0 0
      %859 = vmatprep.subr.bf16.mxu0 0
      %860 = vmatpush1.bf16.msra.mxu0 0
      %861 = vmatprep.subr.bf16.mxu0 0
      %862 = vmatpush1.bf16.msra.mxu0 0
      %863 = vmatprep.subr.bf16.mxu0 0
      %864 = vmatpush1.bf16.msra.mxu0 %v823
      %865 = vmatprep.subr.bf16.mxu0 0
      %866 = vmatpush2.bf16.msra.mxu0 0
      %867 = vmatprep.subr.bf16.mxu0 0
      %868 = vmatpush2.bf16.msra.mxu0 0
      %869 = vmatprep.subr.bf16.mxu0 0
      %870 = vmatpush2.bf16.msra.mxu0 0
      %871 = vmatprep.subr.bf16.mxu0 0
      %872 = vmatpush2.bf16.msra.mxu0 0
      %873 = vmatprep.subr.bf16.mxu0 0
      %874 = vmatpush2.bf16.msra.mxu0 0
      %875 = vmatprep.subr.bf16.mxu0 0
      %876 = vmatpush2.bf16.msra.mxu0 0
      %877 = vmatprep.subr.bf16.mxu0 0
      %878 = vmatpush2.bf16.msra.mxu0 0
      %879 = vmatprep.subr.bf16.mxu0 0
      %880 = vmatpush2.bf16.msra.mxu0 0
      %881 = vmatprep.mubr.bf16.mxu0 0
      %882 = vmatmul.mubr.bf16.gmra.mxu0 %v826
      %v883 = vpop.f32.mrf.mxu0
      %v884 = vadd.f32 0.0, %v883
      %v885 = vpop.f32.mrf.mxu0
      %v886 = vpop.f32.mrf.mxu0
      %v887 = vadd.f32 0.0, %v886
      %v888 = vpop.f32.mrf.mxu0
      %889 = vmatprep.mubr.bf16.mxu0 0
      %890 = vmatmul.mubr.bf16.gmra.mxu0 %v829
      %v891 = vpop.f32.mrf.mxu0
      %v892 = vadd.f32 0.0, %v891
      %v893 = vpop.f32.mrf.mxu0
      %v894 = vpop.f32.mrf.mxu0
      %v895 = vadd.f32 0.0, %v894
      %v896 = vpop.f32.mrf.mxu0
      %897 = vmatprep.mubr.bf16.mxu0 0
      %898 = vmatmul.mubr.bf16.gmra.mxu0 %v832
      %v899 = vpop.f32.mrf.mxu0
      %v900 = vadd.f32 0.0, %v899
      %v901 = vpop.f32.mrf.mxu0
      %v902 = vpop.f32.mrf.mxu0
      %v903 = vadd.f32 0.0, %v902
      %v904 = vpop.f32.mrf.mxu0
      %905 = vmatprep.mubr.bf16.mxu0 0
      %906 = vmatmul.mubr.bf16.gmra.mxu0 %v835
      %v907 = vpop.f32.mrf.mxu0
      %v908 = vadd.f32 0.0, %v907
      %v909 = vpop.f32.mrf.mxu0
      %v910 = vpop.f32.mrf.mxu0
      %v911 = vadd.f32 0.0, %v910
      %v912 = vpop.f32.mrf.mxu0
      %913 = vmatprep.mubr.bf16.mxu0 0
      %914 = vmatmul.mubr.bf16.gmra.mxu0 %v838
      %v915 = vpop.f32.mrf.mxu0
      %v916 = vadd.f32 0.0, %v915
      %v917 = vpop.f32.mrf.mxu0
      %v918 = vpop.f32.mrf.mxu0
      %v919 = vadd.f32 0.0, %v918
      %v920 = vpop.f32.mrf.mxu0
      %921 = vmatprep.mubr.bf16.mxu0 0
      %922 = vmatmul.mubr.bf16.gmra.mxu0 %v841
      %v923 = vpop.f32.mrf.mxu0
      %v924 = vadd.f32 0.0, %v923
      %v925 = vpop.f32.mrf.mxu0
      %v926 = vpop.f32.mrf.mxu0
      %v927 = vadd.f32 0.0, %v926
      %v928 = vpop.f32.mrf.mxu0
      %929 = vmatprep.mubr.bf16.mxu0 0
      %930 = vmatmul.mubr.bf16.gmra.mxu0 %v844
      %v931 = vpop.f32.mrf.mxu0
      %v932 = vadd.f32 0.0, %v931
      %v933 = vpop.f32.mrf.mxu0
      %v934 = vpop.f32.mrf.mxu0
      %v935 = vadd.f32 0.0, %v934
      %v936 = vpop.f32.mrf.mxu0
      %937 = vmatprep.mubr.bf16.mxu0 0
      %938 = vmatmul.mubr.bf16.gmra.mxu0 %v847
      %v939 = vpop.f32.mrf.mxu0
      %v940 = vadd.f32 0.0, %v939
      %v941 = vpop.f32.mrf.mxu0
      %v942 = vpop.f32.mrf.mxu0
      %v943 = vadd.f32 0.0, %v942
      %v944 = vpop.f32.mrf.mxu0
      %945 = vdwg.mxu0
      %v946 = vadd.f32 %v776, %v884
      %v947 = vadd.f32 %v777, %v887
      %v948 = vadd.f32 %v778, %v892
      %v949 = vadd.f32 %v779, %v895
      %v950 = vadd.f32 %v780, %v900
      %v951 = vadd.f32 %v781, %v903
      %v952 = vadd.f32 %v782, %v908
      %v953 = vadd.f32 %v783, %v911
      %v954 = vadd.f32 %v784, %v916
      %v955 = vadd.f32 %v785, %v919
      %v956 = vadd.f32 %v786, %v924
      %v957 = vadd.f32 %v787, %v927
      %v958 = vadd.f32 %v788, %v932
      %v959 = vadd.f32 %v789, %v935
      %v960 = vadd.f32 %v790, %v940
      %v961 = vadd.f32 %v791, %v943
      %962 = vst [vmem:[#allocation2] sm:$0xff] %v946
      %963 = vst [vmem:[#allocation2 + $0x8] sm:$0xff] %v947
      %964 = vst [vmem:[#allocation2 + $0x10] sm:$0xff] %v948
      %965 = vst [vmem:[#allocation2 + $0x18] sm:$0xff] %v949
      %966 = vst [vmem:[#allocation2 + $0x20] sm:$0xff] %v950
      %967 = vst [vmem:[#allocation2 + $0x28] sm:$0xff] %v951
      %968 = vst [vmem:[#allocation2 + $0x30] sm:$0xff] %v952
      %969 = vst [vmem:[#allocation2 + $0x38] sm:$0xff] %v953
      %970 = vst [vmem:[#allocation2 + $0x40] sm:$0xff] %v954
      %971 = vst [vmem:[#allocation2 + $0x48] sm:$0xff] %v955
      %972 = vst [vmem:[#allocation2 + $0x50] sm:$0xff] %v956
      %973 = vst [vmem:[#allocation2 + $0x58] sm:$0xff] %v957
      %974 = vst [vmem:[#allocation2 + $0x60] sm:$0xff] %v958
      %975 = vst [vmem:[#allocation2 + $0x68] sm:$0xff] %v959
      %976 = vst [vmem:[#allocation2 + $0x70] sm:$0xff] %v960
      %977 = vst [vmem:[#allocation2 + $0x78] sm:$0xff] %v961
      %v978 = vld [vmem:[%s285] sm:$0xe]
      %v979 = vld [vmem:[%s285 + $0x4] sm:$0xf]
      %v980 = vld [vmem:[%s285 + $0x8] sm:$0x1]
      %v981 = vld [vmem:[%s285 + $0xc] sm:$0xe]
      %v982 = vld [vmem:[%s285 + $0x10] sm:$0xf]
      %v983 = vld [vmem:[%s285 + $0x14] sm:$0x1]
      %v984 = vld [vmem:[%s285 + $0x18] sm:$0xe]
      %v985 = vld [vmem:[%s285 + $0x1c] sm:$0xf]
      %v986 = vld [vmem:[%s285 + $0x20] sm:$0x1]
      %v987 = vld [vmem:[%s285 + $0x24] sm:$0xe]
      %v988 = vld [vmem:[%s285 + $0x28] sm:$0xf]
      %v989 = vld [vmem:[%s285 + $0x2c] sm:$0x1]
      %v990 = vld [vmem:[%s285 + $0x30] sm:$0xe]
      %v991 = vld [vmem:[%s285 + $0x34] sm:$0xf]
      %v992 = vld [vmem:[%s285 + $0x38] sm:$0x1]
      %v993 = vld [vmem:[%s285 + $0x3c] sm:$0xe]
      %v994 = vld [vmem:[%s285 + $0x40] sm:$0xf]
      %v995 = vld [vmem:[%s285 + $0x44] sm:$0x1]
      %v996 = vld [vmem:[%s285 + $0x48] sm:$0xe]
      %v997 = vld [vmem:[%s285 + $0x4c] sm:$0xf]
      %v998 = vld [vmem:[%s285 + $0x50] sm:$0x1]
      %v999 = vld [vmem:[%s285 + $0x54] sm:$0xe]
      %v1000 = vld [vmem:[%s285 + $0x58] sm:$0xf]
      %v1001 = vld [vmem:[%s285 + $0x5c] sm:$0x1]
      %vm1026 = vcmask 1042432
      %vm1027 = vcmask 1046532
      %vm1028 = vmor %vm1026, %vm1027
      %v1029 = vrot.slane %v978, 5
      %v1030 = vrot.slane %v1029, 4
      %v1031 = vrot.slane %v979, 5
      %v1032 = vsel %vm1028, %v1030, %v1031
      %v1033 = vrot.slane %v1031, 4
      %v1034 = vrot.slane %v980, 5
      %v1035 = vsel %vm1028, %v1033, %v1034
      %v1036 = vrot.slane %v981, 5
      %v1037 = vrot.slane %v1036, 4
      %v1038 = vrot.slane %v982, 5
      %v1039 = vsel %vm1028, %v1037, %v1038
      %v1040 = vrot.slane %v1038, 4
      %v1041 = vrot.slane %v983, 5
      %v1042 = vsel %vm1028, %v1040, %v1041
      %v1043 = vrot.slane %v984, 5
      %v1044 = vrot.slane %v1043, 4
      %v1045 = vrot.slane %v985, 5
      %v1046 = vsel %vm1028, %v1044, %v1045
      %v1047 = vrot.slane %v1045, 4
      %v1048 = vrot.slane %v986, 5
      %v1049 = vsel %vm1028, %v1047, %v1048
      %v1050 = vrot.slane %v987, 5
      %v1051 = vrot.slane %v1050, 4
      %v1052 = vrot.slane %v988, 5
      %v1053 = vsel %vm1028, %v1051, %v1052
      %v1054 = vrot.slane %v1052, 4
      %v1055 = vrot.slane %v989, 5
      %v1056 = vsel %vm1028, %v1054, %v1055
      %v1057 = vrot.slane %v990, 5
      %v1058 = vrot.slane %v1057, 4
      %v1059 = vrot.slane %v991, 5
      %v1060 = vsel %vm1028, %v1058, %v1059
      %v1061 = vrot.slane %v1059, 4
      %v1062 = vrot.slane %v992, 5
      %v1063 = vsel %vm1028, %v1061, %v1062
      %v1064 = vrot.slane %v993, 5
      %v1065 = vrot.slane %v1064, 4
      %v1066 = vrot.slane %v994, 5
      %v1067 = vsel %vm1028, %v1065, %v1066
      %v1068 = vrot.slane %v1066, 4
      %v1069 = vrot.slane %v995, 5
      %v1070 = vsel %vm1028, %v1068, %v1069
      %v1071 = vrot.slane %v996, 5
      %v1072 = vrot.slane %v1071, 4
      %v1073 = vrot.slane %v997, 5
      %v1074 = vsel %vm1028, %v1072, %v1073
      %v1075 = vrot.slane %v1073, 4
      %v1076 = vrot.slane %v998, 5
      %v1077 = vsel %vm1028, %v1075, %v1076
      %v1078 = vrot.slane %v999, 5
      %v1079 = vrot.slane %v1078, 4
      %v1080 = vrot.slane %v1000, 5
      %v1081 = vsel %vm1028, %v1079, %v1080
      %v1082 = vrot.slane %v1080, 4
      %v1083 = vrot.slane %v1001, 5
      %v1084 = vsel %vm1028, %v1082, %v1083
      %v1085 = vld [vmem:[#allocation2] sm:$0xff]
      %v1086 = vld [vmem:[#allocation2 + $0x8] sm:$0xff]
      %v1087 = vld [vmem:[#allocation2 + $0x10] sm:$0xff]
      %v1088 = vld [vmem:[#allocation2 + $0x18] sm:$0xff]
      %v1089 = vld [vmem:[#allocation2 + $0x20] sm:$0xff]
      %v1090 = vld [vmem:[#allocation2 + $0x28] sm:$0xff]
      %v1091 = vld [vmem:[#allocation2 + $0x30] sm:$0xff]
      %v1092 = vld [vmem:[#allocation2 + $0x38] sm:$0xff]
      %v1093 = vld [vmem:[#allocation2 + $0x40] sm:$0xff]
      %v1094 = vld [vmem:[#allocation2 + $0x48] sm:$0xff]
      %v1095 = vld [vmem:[#allocation2 + $0x50] sm:$0xff]
      %v1096 = vld [vmem:[#allocation2 + $0x58] sm:$0xff]
      %v1097 = vld [vmem:[#allocation2 + $0x60] sm:$0xff]
      %v1098 = vld [vmem:[#allocation2 + $0x68] sm:$0xff]
      %v1099 = vld [vmem:[#allocation2 + $0x70] sm:$0xff]
      %v1100 = vld [vmem:[#allocation2 + $0x78] sm:$0xff]
      %s1101 = scalar_lea.vmem %s290, 16
      %v1102 = vld [vmem:[%s1101] sm:$0xf]
      %v1103 = vld [vmem:[%s1101 + $0x4] sm:$0xf]
      %v1104 = vunpack.c.l.b16 %v1032
      %v1105 = vunpack.c.l.b16 %v1035
      %v1106 = vunpack.c.l.b16 %v1039
      %v1107 = vunpack.c.l.b16 %v1042
      %v1108 = vunpack.c.l.b16 %v1046
      %v1109 = vunpack.c.l.b16 %v1049
      %v1110 = vunpack.c.l.b16 %v1053
      %v1111 = vunpack.c.l.b16 %v1056
      %v1112 = vunpack.c.l.b16 %v1060
      %v1113 = vunpack.c.l.b16 %v1063
      %v1114 = vunpack.c.l.b16 %v1067
      %v1115 = vunpack.c.l.b16 %v1070
      %v1116 = vunpack.c.l.b16 %v1074
      %v1117 = vunpack.c.l.b16 %v1077
      %v1118 = vunpack.c.l.b16 %v1081
      %v1119 = vunpack.c.l.b16 %v1084
      %v1120 = vpack.c.b16 %v1105, %v1104
      %v1121 = vpack.c.b16 %v1107, %v1106
      %v1122 = vpack.c.b16 %v1109, %v1108
      %v1123 = vpack.c.b16 %v1111, %v1110
      %v1124 = vpack.c.b16 %v1113, %v1112
      %v1125 = vpack.c.b16 %v1115, %v1114
      %v1126 = vpack.c.b16 %v1117, %v1116
      %v1127 = vpack.c.b16 %v1119, %v1118
      %v1130 = vunpack.c.l.b16 %v1102
      %v1131 = vunpack.c.l.b16 %v1103
      %v1132 = vpack.c.b16 %v1131, %v1130
      %v1135 = vsel %vm403, %v1120, 0
      %v1138 = vsel %vm403, %v1121, 0
      %v1141 = vsel %vm403, %v1122, 0
      %v1144 = vsel %vm403, %v1123, 0
      %v1147 = vsel %vm403, %v1124, 0
      %v1150 = vsel %vm403, %v1125, 0
      %v1153 = vsel %vm403, %v1126, 0
      %v1156 = vsel %vm403, %v1127, 0
      %1158 = vmatprep.subr.bf16.mxu0 0
      %1159 = vmatpush1.bf16.msra.mxu0 0
      %1160 = vmatprep.subr.bf16.mxu0 0
      %1161 = vmatpush1.bf16.msra.mxu0 0
      %1162 = vmatprep.subr.bf16.mxu0 0
      %1163 = vmatpush1.bf16.msra.mxu0 0
      %1164 = vmatprep.subr.bf16.mxu0 0
      %1165 = vmatpush1.bf16.msra.mxu0 0
      %1166 = vmatprep.subr.bf16.mxu0 0
      %1167 = vmatpush1.bf16.msra.mxu0 0
      %1168 = vmatprep.subr.bf16.mxu0 0
      %1169 = vmatpush1.bf16.msra.mxu0 0
      %1170 = vmatprep.subr.bf16.mxu0 0
      %1171 = vmatpush1.bf16.msra.mxu0 0
      %1172 = vmatprep.subr.bf16.mxu0 0
      %1173 = vmatpush1.bf16.msra.mxu0 %v1132
      %1174 = vmatprep.subr.bf16.mxu0 0
      %1175 = vmatpush2.bf16.msra.mxu0 0
      %1176 = vmatprep.subr.bf16.mxu0 0
      %1177 = vmatpush2.bf16.msra.mxu0 0
      %1178 = vmatprep.subr.bf16.mxu0 0
      %1179 = vmatpush2.bf16.msra.mxu0 0
      %1180 = vmatprep.subr.bf16.mxu0 0
      %1181 = vmatpush2.bf16.msra.mxu0 0
      %1182 = vmatprep.subr.bf16.mxu0 0
      %1183 = vmatpush2.bf16.msra.mxu0 0
      %1184 = vmatprep.subr.bf16.mxu0 0
      %1185 = vmatpush2.bf16.msra.mxu0 0
      %1186 = vmatprep.subr.bf16.mxu0 0
      %1187 = vmatpush2.bf16.msra.mxu0 0
      %1188 = vmatprep.subr.bf16.mxu0 0
      %1189 = vmatpush2.bf16.msra.mxu0 0
      %1190 = vmatprep.mubr.bf16.mxu0 0
      %1191 = vmatmul.mubr.bf16.gmra.mxu0 %v1135
      %v1192 = vpop.f32.mrf.mxu0
      %v1193 = vadd.f32 0.0, %v1192
      %v1194 = vpop.f32.mrf.mxu0
      %v1195 = vpop.f32.mrf.mxu0
      %v1196 = vadd.f32 0.0, %v1195
      %v1197 = vpop.f32.mrf.mxu0
      %1198 = vmatprep.mubr.bf16.mxu0 0
      %1199 = vmatmul.mubr.bf16.gmra.mxu0 %v1138
      %v1200 = vpop.f32.mrf.mxu0
      %v1201 = vadd.f32 0.0, %v1200
      %v1202 = vpop.f32.mrf.mxu0
      %v1203 = vpop.f32.mrf.mxu0
      %v1204 = vadd.f32 0.0, %v1203
      %v1205 = vpop.f32.mrf.mxu0
      %1206 = vmatprep.mubr.bf16.mxu0 0
      %1207 = vmatmul.mubr.bf16.gmra.mxu0 %v1141
      %v1208 = vpop.f32.mrf.mxu0
      %v1209 = vadd.f32 0.0, %v1208
      %v1210 = vpop.f32.mrf.mxu0
      %v1211 = vpop.f32.mrf.mxu0
      %v1212 = vadd.f32 0.0, %v1211
      %v1213 = vpop.f32.mrf.mxu0
      %1214 = vmatprep.mubr.bf16.mxu0 0
      %1215 = vmatmul.mubr.bf16.gmra.mxu0 %v1144
      %v1216 = vpop.f32.mrf.mxu0
      %v1217 = vadd.f32 0.0, %v1216
      %v1218 = vpop.f32.mrf.mxu0
      %v1219 = vpop.f32.mrf.mxu0
      %v1220 = vadd.f32 0.0, %v1219
      %v1221 = vpop.f32.mrf.mxu0
      %1222 = vmatprep.mubr.bf16.mxu0 0
      %1223 = vmatmul.mubr.bf16.gmra.mxu0 %v1147
      %v1224 = vpop.f32.mrf.mxu0
      %v1225 = vadd.f32 0.0, %v1224
      %v1226 = vpop.f32.mrf.mxu0
      %v1227 = vpop.f32.mrf.mxu0
      %v1228 = vadd.f32 0.0, %v1227
      %v1229 = vpop.f32.mrf.mxu0
      %1230 = vmatprep.mubr.bf16.mxu0 0
      %1231 = vmatmul.mubr.bf16.gmra.mxu0 %v1150
      %v1232 = vpop.f32.mrf.mxu0
      %v1233 = vadd.f32 0.0, %v1232
      %v1234 = vpop.f32.mrf.mxu0
      %v1235 = vpop.f32.mrf.mxu0
      %v1236 = vadd.f32 0.0, %v1235
      %v1237 = vpop.f32.mrf.mxu0
      %1238 = vmatprep.mubr.bf16.mxu0 0
      %1239 = vmatmul.mubr.bf16.gmra.mxu0 %v1153
      %v1240 = vpop.f32.mrf.mxu0
      %v1241 = vadd.f32 0.0, %v1240
      %v1242 = vpop.f32.mrf.mxu0
      %v1243 = vpop.f32.mrf.mxu0
      %v1244 = vadd.f32 0.0, %v1243
      %v1245 = vpop.f32.mrf.mxu0
      %1246 = vmatprep.mubr.bf16.mxu0 0
      %1247 = vmatmul.mubr.bf16.gmra.mxu0 %v1156
      %v1248 = vpop.f32.mrf.mxu0
      %v1249 = vadd.f32 0.0, %v1248
      %v1250 = vpop.f32.mrf.mxu0
      %v1251 = vpop.f32.mrf.mxu0
      %v1252 = vadd.f32 0.0, %v1251
      %v1253 = vpop.f32.mrf.mxu0
      %1254 = vdwg.mxu0
      %v1255 = vadd.f32 %v1085, %v1193
      %v1256 = vadd.f32 %v1086, %v1196
      %v1257 = vadd.f32 %v1087, %v1201
      %v1258 = vadd.f32 %v1088, %v1204
      %v1259 = vadd.f32 %v1089, %v1209
      %v1260 = vadd.f32 %v1090, %v1212
      %v1261 = vadd.f32 %v1091, %v1217
      %v1262 = vadd.f32 %v1092, %v1220
      %v1263 = vadd.f32 %v1093, %v1225
      %v1264 = vadd.f32 %v1094, %v1228
      %v1265 = vadd.f32 %v1095, %v1233
      %v1266 = vadd.f32 %v1096, %v1236
      %v1267 = vadd.f32 %v1097, %v1241
      %v1268 = vadd.f32 %v1098, %v1244
      %v1269 = vadd.f32 %v1099, %v1249
      %v1270 = vadd.f32 %v1100, %v1252
      %1271 = vst [vmem:[#allocation2] sm:$0xff] %v1255
      %1272 = vst [vmem:[#allocation2 + $0x8] sm:$0xff] %v1256
      %1273 = vst [vmem:[#allocation2 + $0x10] sm:$0xff] %v1257
      %1274 = vst [vmem:[#allocation2 + $0x18] sm:$0xff] %v1258
      %1275 = vst [vmem:[#allocation2 + $0x20] sm:$0xff] %v1259
      %1276 = vst [vmem:[#allocation2 + $0x28] sm:$0xff] %v1260
      %1277 = vst [vmem:[#allocation2 + $0x30] sm:$0xff] %v1261
      %1278 = vst [vmem:[#allocation2 + $0x38] sm:$0xff] %v1262
      %1279 = vst [vmem:[#allocation2 + $0x40] sm:$0xff] %v1263
      %1280 = vst [vmem:[#allocation2 + $0x48] sm:$0xff] %v1264
      %1281 = vst [vmem:[#allocation2 + $0x50] sm:$0xff] %v1265
      %1282 = vst [vmem:[#allocation2 + $0x58] sm:$0xff] %v1266
      %1283 = vst [vmem:[#allocation2 + $0x60] sm:$0xff] %v1267
      %1284 = vst [vmem:[#allocation2 + $0x68] sm:$0xff] %v1268
      %1285 = vst [vmem:[#allocation2 + $0x70] sm:$0xff] %v1269
      %1286 = vst [vmem:[#allocation2 + $0x78] sm:$0xff] %v1270
      %s1287 = scalar_lea.vmem %s285, 12
      %v1288 = vld [vmem:[%s1287] sm:$0xf]
      %v1289 = vld [vmem:[%s1287 + $0x4] sm:$0xf]
      %v1290 = vld [vmem:[%s1287 + $0xc] sm:$0xf]
      %v1291 = vld [vmem:[%s1287 + $0x10] sm:$0xf]
      %v1292 = vld [vmem:[%s1287 + $0x18] sm:$0xf]
      %v1293 = vld [vmem:[%s1287 + $0x1c] sm:$0xf]
      %v1294 = vld [vmem:[%s1287 + $0x24] sm:$0xf]
      %v1295 = vld [vmem:[%s1287 + $0x28] sm:$0xf]
      %v1296 = vld [vmem:[%s1287 + $0x30] sm:$0xf]
      %v1297 = vld [vmem:[%s1287 + $0x34] sm:$0xf]
      %v1298 = vld [vmem:[%s1287 + $0x3c] sm:$0xf]
      %v1299 = vld [vmem:[%s1287 + $0x40] sm:$0xf]
      %v1300 = vld [vmem:[%s1287 + $0x48] sm:$0xf]
      %v1301 = vld [vmem:[%s1287 + $0x4c] sm:$0xf]
      %v1302 = vld [vmem:[%s1287 + $0x54] sm:$0xf]
      %v1303 = vld [vmem:[%s1287 + $0x58] sm:$0xf]
      %v1304 = vld [vmem:[#allocation2] sm:$0xff]
      %v1305 = vld [vmem:[#allocation2 + $0x8] sm:$0xff]
      %v1306 = vld [vmem:[#allocation2 + $0x10] sm:$0xff]
      %v1307 = vld [vmem:[#allocation2 + $0x18] sm:$0xff]
      %v1308 = vld [vmem:[#allocation2 + $0x20] sm:$0xff]
      %v1309 = vld [vmem:[#allocation2 + $0x28] sm:$0xff]
      %v1310 = vld [vmem:[#allocation2 + $0x30] sm:$0xff]
      %v1311 = vld [vmem:[#allocation2 + $0x38] sm:$0xff]
      %v1312 = vld [vmem:[#allocation2 + $0x40] sm:$0xff]
      %v1313 = vld [vmem:[#allocation2 + $0x48] sm:$0xff]
      %v1314 = vld [vmem:[#allocation2 + $0x50] sm:$0xff]
      %v1315 = vld [vmem:[#allocation2 + $0x58] sm:$0xff]
      %v1316 = vld [vmem:[#allocation2 + $0x60] sm:$0xff]
      %v1317 = vld [vmem:[#allocation2 + $0x68] sm:$0xff]
      %v1318 = vld [vmem:[#allocation2 + $0x70] sm:$0xff]
      %v1319 = vld [vmem:[#allocation2 + $0x78] sm:$0xff]
      %s1320 = scalar_lea.vmem %s290, 24
      %v1321 = vld [vmem:[%s1320] sm:$0xf]
      %v1322 = vld [vmem:[%s1320 + $0x4] sm:$0xf]
      %v1339 = vunpack.c.l.b16 %v1288
      %v1340 = vunpack.c.l.b16 %v1289
      %v1341 = vunpack.c.l.b16 %v1290
      %v1342 = vunpack.c.l.b16 %v1291
      %v1343 = vunpack.c.l.b16 %v1292
      %v1344 = vunpack.c.l.b16 %v1293
      %v1345 = vunpack.c.l.b16 %v1294
      %v1346 = vunpack.c.l.b16 %v1295
      %v1347 = vunpack.c.l.b16 %v1296
      %v1348 = vunpack.c.l.b16 %v1297
      %v1349 = vunpack.c.l.b16 %v1298
      %v1350 = vunpack.c.l.b16 %v1299
      %v1351 = vunpack.c.l.b16 %v1300
      %v1352 = vunpack.c.l.b16 %v1301
      %v1353 = vunpack.c.l.b16 %v1302
      %v1354 = vunpack.c.l.b16 %v1303
      %v1355 = vpack.c.b16 %v1340, %v1339
      %v1356 = vpack.c.b16 %v1342, %v1341
      %v1357 = vpack.c.b16 %v1344, %v1343
      %v1358 = vpack.c.b16 %v1346, %v1345
      %v1359 = vpack.c.b16 %v1348, %v1347
      %v1360 = vpack.c.b16 %v1350, %v1349
      %v1361 = vpack.c.b16 %v1352, %v1351
      %v1362 = vpack.c.b16 %v1354, %v1353
      %v1365 = vunpack.c.l.b16 %v1321
      %v1366 = vunpack.c.l.b16 %v1322
      %v1367 = vpack.c.b16 %v1366, %v1365
      %v1370 = vsel %vm403, %v1355, 0
      %v1373 = vsel %vm403, %v1356, 0
      %v1376 = vsel %vm403, %v1357, 0
      %v1379 = vsel %vm403, %v1358, 0
      %v1382 = vsel %vm403, %v1359, 0
      %v1385 = vsel %vm403, %v1360, 0
      %v1388 = vsel %vm403, %v1361, 0
      %v1391 = vsel %vm403, %v1362, 0
      %1393 = vmatprep.subr.bf16.mxu0 0
      %1394 = vmatpush1.bf16.msra.mxu0 0
      %1395 = vmatprep.subr.bf16.mxu0 0
      %1396 = vmatpush1.bf16.msra.mxu0 0
      %1397 = vmatprep.subr.bf16.mxu0 0
      %1398 = vmatpush1.bf16.msra.mxu0 0
      %1399 = vmatprep.subr.bf16.mxu0 0
      %1400 = vmatpush1.bf16.msra.mxu0 0
      %1401 = vmatprep.subr.bf16.mxu0 0
      %1402 = vmatpush1.bf16.msra.mxu0 0
      %1403 = vmatprep.subr.bf16.mxu0 0
      %1404 = vmatpush1.bf16.msra.mxu0 0
      %1405 = vmatprep.subr.bf16.mxu0 0
      %1406 = vmatpush1.bf16.msra.mxu0 0
      %1407 = vmatprep.subr.bf16.mxu0 0
      %1408 = vmatpush1.bf16.msra.mxu0 %v1367
      %1409 = vmatprep.subr.bf16.mxu0 0
      %1410 = vmatpush2.bf16.msra.mxu0 0
      %1411 = vmatprep.subr.bf16.mxu0 0
      %1412 = vmatpush2.bf16.msra.mxu0 0
      %1413 = vmatprep.subr.bf16.mxu0 0
      %1414 = vmatpush2.bf16.msra.mxu0 0
      %1415 = vmatprep.subr.bf16.mxu0 0
      %1416 = vmatpush2.bf16.msra.mxu0 0
      %1417 = vmatprep.subr.bf16.mxu0 0
      %1418 = vmatpush2.bf16.msra.mxu0 0
      %1419 = vmatprep.subr.bf16.mxu0 0
      %1420 = vmatpush2.bf16.msra.mxu0 0
      %1421 = vmatprep.subr.bf16.mxu0 0
      %1422 = vmatpush2.bf16.msra.mxu0 0
      %1423 = vmatprep.subr.bf16.mxu0 0
      %1424 = vmatpush2.bf16.msra.mxu0 0
      %1425 = vmatprep.mubr.bf16.mxu0 0
      %1426 = vmatmul.mubr.bf16.gmra.mxu0 %v1370
      %v1427 = vpop.f32.mrf.mxu0
      %v1428 = vadd.f32 0.0, %v1427
      %v1429 = vpop.f32.mrf.mxu0
      %v1430 = vpop.f32.mrf.mxu0
      %v1431 = vadd.f32 0.0, %v1430
      %v1432 = vpop.f32.mrf.mxu0
      %1433 = vmatprep.mubr.bf16.mxu0 0
      %1434 = vmatmul.mubr.bf16.gmra.mxu0 %v1373
      %v1435 = vpop.f32.mrf.mxu0
      %v1436 = vadd.f32 0.0, %v1435
      %v1437 = vpop.f32.mrf.mxu0
      %v1438 = vpop.f32.mrf.mxu0
      %v1439 = vadd.f32 0.0, %v1438
      %v1440 = vpop.f32.mrf.mxu0
      %1441 = vmatprep.mubr.bf16.mxu0 0
      %1442 = vmatmul.mubr.bf16.gmra.mxu0 %v1376
      %v1443 = vpop.f32.mrf.mxu0
      %v1444 = vadd.f32 0.0, %v1443
      %v1445 = vpop.f32.mrf.mxu0
      %v1446 = vpop.f32.mrf.mxu0
      %v1447 = vadd.f32 0.0, %v1446
      %v1448 = vpop.f32.mrf.mxu0
      %1449 = vmatprep.mubr.bf16.mxu0 0
      %1450 = vmatmul.mubr.bf16.gmra.mxu0 %v1379
      %v1451 = vpop.f32.mrf.mxu0
      %v1452 = vadd.f32 0.0, %v1451
      %v1453 = vpop.f32.mrf.mxu0
      %v1454 = vpop.f32.mrf.mxu0
      %v1455 = vadd.f32 0.0, %v1454
      %v1456 = vpop.f32.mrf.mxu0
      %1457 = vmatprep.mubr.bf16.mxu0 0
      %1458 = vmatmul.mubr.bf16.gmra.mxu0 %v1382
      %v1459 = vpop.f32.mrf.mxu0
      %v1460 = vadd.f32 0.0, %v1459
      %v1461 = vpop.f32.mrf.mxu0
      %v1462 = vpop.f32.mrf.mxu0
      %v1463 = vadd.f32 0.0, %v1462
      %v1464 = vpop.f32.mrf.mxu0
      %1465 = vmatprep.mubr.bf16.mxu0 0
      %1466 = vmatmul.mubr.bf16.gmra.mxu0 %v1385
      %v1467 = vpop.f32.mrf.mxu0
      %v1468 = vadd.f32 0.0, %v1467
      %v1469 = vpop.f32.mrf.mxu0
      %v1470 = vpop.f32.mrf.mxu0
      %v1471 = vadd.f32 0.0, %v1470
      %v1472 = vpop.f32.mrf.mxu0
      %1473 = vmatprep.mubr.bf16.mxu0 0
      %1474 = vmatmul.mubr.bf16.gmra.mxu0 %v1388
      %v1475 = vpop.f32.mrf.mxu0
      %v1476 = vadd.f32 0.0, %v1475
      %v1477 = vpop.f32.mrf.mxu0
      %v1478 = vpop.f32.mrf.mxu0
      %v1479 = vadd.f32 0.0, %v1478
      %v1480 = vpop.f32.mrf.mxu0
      %1481 = vmatprep.mubr.bf16.mxu0 0
      %1482 = vmatmul.mubr.bf16.gmra.mxu0 %v1391
      %v1483 = vpop.f32.mrf.mxu0
      %v1484 = vadd.f32 0.0, %v1483
      %v1485 = vpop.f32.mrf.mxu0
      %v1486 = vpop.f32.mrf.mxu0
      %v1487 = vadd.f32 0.0, %v1486
      %v1488 = vpop.f32.mrf.mxu0
      %1489 = vdwg.mxu0
      %v1490 = vadd.f32 %v1304, %v1428
      %v1491 = vadd.f32 %v1305, %v1431
      %v1492 = vadd.f32 %v1306, %v1436
      %v1493 = vadd.f32 %v1307, %v1439
      %v1494 = vadd.f32 %v1308, %v1444
      %v1495 = vadd.f32 %v1309, %v1447
      %v1496 = vadd.f32 %v1310, %v1452
      %v1497 = vadd.f32 %v1311, %v1455
      %v1498 = vadd.f32 %v1312, %v1460
      %v1499 = vadd.f32 %v1313, %v1463
      %v1500 = vadd.f32 %v1314, %v1468
      %v1501 = vadd.f32 %v1315, %v1471
      %v1502 = vadd.f32 %v1316, %v1476
      %v1503 = vadd.f32 %v1317, %v1479
      %v1504 = vadd.f32 %v1318, %v1484
      %v1505 = vadd.f32 %v1319, %v1487
      %1506 = vst [vmem:[#allocation2] sm:$0xff] %v1490
      %1507 = vst [vmem:[#allocation2 + $0x8] sm:$0xff] %v1491
      %1508 = vst [vmem:[#allocation2 + $0x10] sm:$0xff] %v1492
      %1509 = vst [vmem:[#allocation2 + $0x18] sm:$0xff] %v1493
      %1510 = vst [vmem:[#allocation2 + $0x20] sm:$0xff] %v1494
      %1511 = vst [vmem:[#allocation2 + $0x28] sm:$0xff] %v1495
      %1512 = vst [vmem:[#allocation2 + $0x30] sm:$0xff] %v1496
      %1513 = vst [vmem:[#allocation2 + $0x38] sm:$0xff] %v1497
      %1514 = vst [vmem:[#allocation2 + $0x40] sm:$0xff] %v1498
      %1515 = vst [vmem:[#allocation2 + $0x48] sm:$0xff] %v1499
      %1516 = vst [vmem:[#allocation2 + $0x50] sm:$0xff] %v1500
      %1517 = vst [vmem:[#allocation2 + $0x58] sm:$0xff] %v1501
      %1518 = vst [vmem:[#allocation2 + $0x60] sm:$0xff] %v1502
      %1519 = vst [vmem:[#allocation2 + $0x68] sm:$0xff] %v1503
      %1520 = vst [vmem:[#allocation2 + $0x70] sm:$0xff] %v1504
      %1521 = vst [vmem:[#allocation2 + $0x78] sm:$0xff] %v1505
      %v1522 = vld [vmem:[%s1287] sm:$0xf]
      %v1523 = vld [vmem:[%s1287 + $0x4] sm:$0xf]
      %v1524 = vld [vmem:[%s1287 + $0x8] sm:$0x1]
      %v1525 = vld [vmem:[%s1287 + $0xc] sm:$0xf]
      %v1526 = vld [vmem:[%s1287 + $0x10] sm:$0xf]
      %v1527 = vld [vmem:[%s1287 + $0x14] sm:$0x1]
      %v1528 = vld [vmem:[%s1287 + $0x18] sm:$0xf]
      %v1529 = vld [vmem:[%s1287 + $0x1c] sm:$0xf]
      %v1530 = vld [vmem:[%s1287 + $0x20] sm:$0x1]
      %v1531 = vld [vmem:[%s1287 + $0x24] sm:$0xf]
      %v1532 = vld [vmem:[%s1287 + $0x28] sm:$0xf]
      %v1533 = vld [vmem:[%s1287 + $0x2c] sm:$0x1]
      %v1534 = vld [vmem:[%s1287 + $0x30] sm:$0xf]
      %v1535 = vld [vmem:[%s1287 + $0x34] sm:$0xf]
      %v1536 = vld [vmem:[%s1287 + $0x38] sm:$0x1]
      %v1537 = vld [vmem:[%s1287 + $0x3c] sm:$0xf]
      %v1538 = vld [vmem:[%s1287 + $0x40] sm:$0xf]
      %v1539 = vld [vmem:[%s1287 + $0x44] sm:$0x1]
      %v1540 = vld [vmem:[%s1287 + $0x48] sm:$0xf]
      %v1541 = vld [vmem:[%s1287 + $0x4c] sm:$0xf]
      %v1542 = vld [vmem:[%s1287 + $0x50] sm:$0x1]
      %v1543 = vld [vmem:[%s1287 + $0x54] sm:$0xf]
      %v1544 = vld [vmem:[%s1287 + $0x58] sm:$0xf]
      %v1545 = vld [vmem:[%s1287 + $0x5c] sm:$0x1]
      %v1547 = vshrl.u32 %v1522, 16
      %v1549 = vrot.slane %v1547, 4
      %v1550 = vshll.u32 %v1522, 16
      %v1552 = vrot.slane %v1550, 5
      %v1553 = vor.u32 %v1549, %v1552
      %v1554 = vrot.slane %v1553, 4
      %v1556 = vshll.u32 %v1523, 16
      %v1558 = vrot.slane %v1556, 5
      %v1559 = vsel %vm583, %v1554, %v1558
      %v1560 = vshrl.u32 %v1523, 16
      %v1562 = vrot.slane %v1560, 4
      %v1563 = vor.u32 %v1562, %v1558
      %v1564 = vrot.slane %v1563, 4
      %v1566 = vshll.u32 %v1524, 16
      %v1568 = vrot.slane %v1566, 5
      %v1569 = vsel %vm583, %v1564, %v1568
      %v1571 = vshrl.u32 %v1525, 16
      %v1573 = vrot.slane %v1571, 4
      %v1574 = vshll.u32 %v1525, 16
      %v1576 = vrot.slane %v1574, 5
      %v1577 = vor.u32 %v1573, %v1576
      %v1578 = vrot.slane %v1577, 4
      %v1580 = vshll.u32 %v1526, 16
      %v1582 = vrot.slane %v1580, 5
      %v1583 = vsel %vm583, %v1578, %v1582
      %v1584 = vshrl.u32 %v1526, 16
      %v1586 = vrot.slane %v1584, 4
      %v1587 = vor.u32 %v1586, %v1582
      %v1588 = vrot.slane %v1587, 4
      %v1590 = vshll.u32 %v1527, 16
      %v1592 = vrot.slane %v1590, 5
      %v1593 = vsel %vm583, %v1588, %v1592
      %v1595 = vshrl.u32 %v1528, 16
      %v1597 = vrot.slane %v1595, 4
      %v1598 = vshll.u32 %v1528, 16
      %v1600 = vrot.slane %v1598, 5
      %v1601 = vor.u32 %v1597, %v1600
      %v1602 = vrot.slane %v1601, 4
      %v1604 = vshll.u32 %v1529, 16
      %v1606 = vrot.slane %v1604, 5
      %v1607 = vsel %vm583, %v1602, %v1606
      %v1608 = vshrl.u32 %v1529, 16
      %v1610 = vrot.slane %v1608, 4
      %v1611 = vor.u32 %v1610, %v1606
      %v1612 = vrot.slane %v1611, 4
      %v1614 = vshll.u32 %v1530, 16
      %v1616 = vrot.slane %v1614, 5
      %v1617 = vsel %vm583, %v1612, %v1616
      %v1619 = vshrl.u32 %v1531, 16
      %v1621 = vrot.slane %v1619, 4
      %v1622 = vshll.u32 %v1531, 16
      %v1624 = vrot.slane %v1622, 5
      %v1625 = vor.u32 %v1621, %v1624
      %v1626 = vrot.slane %v1625, 4
      %v1628 = vshll.u32 %v1532, 16
      %v1630 = vrot.slane %v1628, 5
      %v1631 = vsel %vm583, %v1626, %v1630
      %v1632 = vshrl.u32 %v1532, 16
      %v1634 = vrot.slane %v1632, 4
      %v1635 = vor.u32 %v1634, %v1630
      %v1636 = vrot.slane %v1635, 4
      %v1638 = vshll.u32 %v1533, 16
      %v1640 = vrot.slane %v1638, 5
      %v1641 = vsel %vm583, %v1636, %v1640
      %v1643 = vshrl.u32 %v1534, 16
      %v1645 = vrot.slane %v1643, 4
      %v1646 = vshll.u32 %v1534, 16
      %v1648 = vrot.slane %v1646, 5
      %v1649 = vor.u32 %v1645, %v1648
      %v1650 = vrot.slane %v1649, 4
      %v1652 = vshll.u32 %v1535, 16
      %v1654 = vrot.slane %v1652, 5
      %v1655 = vsel %vm583, %v1650, %v1654
      %v1656 = vshrl.u32 %v1535, 16
      %v1658 = vrot.slane %v1656, 4
      %v1659 = vor.u32 %v1658, %v1654
      %v1660 = vrot.slane %v1659, 4
      %v1662 = vshll.u32 %v1536, 16
      %v1664 = vrot.slane %v1662, 5
      %v1665 = vsel %vm583, %v1660, %v1664
      %v1667 = vshrl.u32 %v1537, 16
      %v1669 = vrot.slane %v1667, 4
      %v1670 = vshll.u32 %v1537, 16
      %v1672 = vrot.slane %v1670, 5
      %v1673 = vor.u32 %v1669, %v1672
      %v1674 = vrot.slane %v1673, 4
      %v1676 = vshll.u32 %v1538, 16
      %v1678 = vrot.slane %v1676, 5
      %v1679 = vsel %vm583, %v1674, %v1678
      %v1680 = vshrl.u32 %v1538, 16
      %v1682 = vrot.slane %v1680, 4
      %v1683 = vor.u32 %v1682, %v1678
      %v1684 = vrot.slane %v1683, 4
      %v1686 = vshll.u32 %v1539, 16
      %v1688 = vrot.slane %v1686, 5
      %v1689 = vsel %vm583, %v1684, %v1688
      %v1691 = vshrl.u32 %v1540, 16
      %v1693 = vrot.slane %v1691, 4
      %v1694 = vshll.u32 %v1540, 16
      %v1696 = vrot.slane %v1694, 5
      %v1697 = vor.u32 %v1693, %v1696
      %v1698 = vrot.slane %v1697, 4
      %v1700 = vshll.u32 %v1541, 16
      %v1702 = vrot.slane %v1700, 5
      %v1703 = vsel %vm583, %v1698, %v1702
      %v1704 = vshrl.u32 %v1541, 16
      %v1706 = vrot.slane %v1704, 4
      %v1707 = vor.u32 %v1706, %v1702
      %v1708 = vrot.slane %v1707, 4
      %v1710 = vshll.u32 %v1542, 16
      %v1712 = vrot.slane %v1710, 5
      %v1713 = vsel %vm583, %v1708, %v1712
      %v1715 = vshrl.u32 %v1543, 16
      %v1717 = vrot.slane %v1715, 4
      %v1718 = vshll.u32 %v1543, 16
      %v1720 = vrot.slane %v1718, 5
      %v1721 = vor.u32 %v1717, %v1720
      %v1722 = vrot.slane %v1721, 4
      %v1724 = vshll.u32 %v1544, 16
      %v1726 = vrot.slane %v1724, 5
      %v1727 = vsel %vm583, %v1722, %v1726
      %v1728 = vshrl.u32 %v1544, 16
      %v1730 = vrot.slane %v1728, 4
      %v1731 = vor.u32 %v1730, %v1726
      %v1732 = vrot.slane %v1731, 4
      %v1734 = vshll.u32 %v1545, 16
      %v1736 = vrot.slane %v1734, 5
      %v1737 = vsel %vm583, %v1732, %v1736
      %v1738 = vld [vmem:[#allocation2] sm:$0xff]
      %v1739 = vld [vmem:[#allocation2 + $0x8] sm:$0xff]
      %v1740 = vld [vmem:[#allocation2 + $0x10] sm:$0xff]
      %v1741 = vld [vmem:[#allocation2 + $0x18] sm:$0xff]
      %v1742 = vld [vmem:[#allocation2 + $0x20] sm:$0xff]
      %v1743 = vld [vmem:[#allocation2 + $0x28] sm:$0xff]
      %v1744 = vld [vmem:[#allocation2 + $0x30] sm:$0xff]
      %v1745 = vld [vmem:[#allocation2 + $0x38] sm:$0xff]
      %v1746 = vld [vmem:[#allocation2 + $0x40] sm:$0xff]
      %v1747 = vld [vmem:[#allocation2 + $0x48] sm:$0xff]
      %v1748 = vld [vmem:[#allocation2 + $0x50] sm:$0xff]
      %v1749 = vld [vmem:[#allocation2 + $0x58] sm:$0xff]
      %v1750 = vld [vmem:[#allocation2 + $0x60] sm:$0xff]
      %v1751 = vld [vmem:[#allocation2 + $0x68] sm:$0xff]
      %v1752 = vld [vmem:[#allocation2 + $0x70] sm:$0xff]
      %v1753 = vld [vmem:[#allocation2 + $0x78] sm:$0xff]
      %s1754 = scalar_lea.vmem %s290, 32
      %v1755 = vld [vmem:[%s1754] sm:$0xf]
      %v1756 = vld [vmem:[%s1754 + $0x4] sm:$0xf]
      %v1757 = vunpack.c.l.b16 %v1559
      %v1758 = vunpack.c.l.b16 %v1569
      %v1759 = vunpack.c.l.b16 %v1583
      %v1760 = vunpack.c.l.b16 %v1593
      %v1761 = vunpack.c.l.b16 %v1607
      %v1762 = vunpack.c.l.b16 %v1617
      %v1763 = vunpack.c.l.b16 %v1631
      %v1764 = vunpack.c.l.b16 %v1641
      %v1765 = vunpack.c.l.b16 %v1655
      %v1766 = vunpack.c.l.b16 %v1665
      %v1767 = vunpack.c.l.b16 %v1679
      %v1768 = vunpack.c.l.b16 %v1689
      %v1769 = vunpack.c.l.b16 %v1703
      %v1770 = vunpack.c.l.b16 %v1713
      %v1771 = vunpack.c.l.b16 %v1727
      %v1772 = vunpack.c.l.b16 %v1737
      %v1773 = vpack.c.b16 %v1758, %v1757
      %v1774 = vpack.c.b16 %v1760, %v1759
      %v1775 = vpack.c.b16 %v1762, %v1761
      %v1776 = vpack.c.b16 %v1764, %v1763
      %v1777 = vpack.c.b16 %v1766, %v1765
      %v1778 = vpack.c.b16 %v1768, %v1767
      %v1779 = vpack.c.b16 %v1770, %v1769
      %v1780 = vpack.c.b16 %v1772, %v1771
      %v1783 = vunpack.c.l.b16 %v1755
      %v1784 = vunpack.c.l.b16 %v1756
      %v1785 = vpack.c.b16 %v1784, %v1783
      %v1788 = vsel %vm403, %v1773, 0
      %v1791 = vsel %vm403, %v1774, 0
      %v1794 = vsel %vm403, %v1775, 0
      %v1797 = vsel %vm403, %v1776, 0
      %v1800 = vsel %vm403, %v1777, 0
      %v1803 = vsel %vm403, %v1778, 0
      %v1806 = vsel %vm403, %v1779, 0
      %v1809 = vsel %vm403, %v1780, 0
      %1811 = vmatprep.subr.bf16.mxu0 0
      %1812 = vmatpush1.bf16.msra.mxu0 0
      %1813 = vmatprep.subr.bf16.mxu0 0
      %1814 = vmatpush1.bf16.msra.mxu0 0
      %1815 = vmatprep.subr.bf16.mxu0 0
      %1816 = vmatpush1.bf16.msra.mxu0 0
      %1817 = vmatprep.subr.bf16.mxu0 0
      %1818 = vmatpush1.bf16.msra.mxu0 0
      %1819 = vmatprep.subr.bf16.mxu0 0
      %1820 = vmatpush1.bf16.msra.mxu0 0
      %1821 = vmatprep.subr.bf16.mxu0 0
      %1822 = vmatpush1.bf16.msra.mxu0 0
      %1823 = vmatprep.subr.bf16.mxu0 0
      %1824 = vmatpush1.bf16.msra.mxu0 0
      %1825 = vmatprep.subr.bf16.mxu0 0
      %1826 = vmatpush1.bf16.msra.mxu0 %v1785
      %1827 = vmatprep.subr.bf16.mxu0 0
      %1828 = vmatpush2.bf16.msra.mxu0 0
      %1829 = vmatprep.subr.bf16.mxu0 0
      %1830 = vmatpush2.bf16.msra.mxu0 0
      %1831 = vmatprep.subr.bf16.mxu0 0
      %1832 = vmatpush2.bf16.msra.mxu0 0
      %1833 = vmatprep.subr.bf16.mxu0 0
      %1834 = vmatpush2.bf16.msra.mxu0 0
      %1835 = vmatprep.subr.bf16.mxu0 0
      %1836 = vmatpush2.bf16.msra.mxu0 0
      %1837 = vmatprep.subr.bf16.mxu0 0
      %1838 = vmatpush2.bf16.msra.mxu0 0
      %1839 = vmatprep.subr.bf16.mxu0 0
      %1840 = vmatpush2.bf16.msra.mxu0 0
      %1841 = vmatprep.subr.bf16.mxu0 0
      %1842 = vmatpush2.bf16.msra.mxu0 0
      %1843 = vmatprep.mubr.bf16.mxu0 0
      %1844 = vmatmul.mubr.bf16.gmra.mxu0 %v1788
      %v1845 = vpop.f32.mrf.mxu0
      %v1846 = vadd.f32 0.0, %v1845
      %v1847 = vpop.f32.mrf.mxu0
      %v1848 = vpop.f32.mrf.mxu0
      %v1849 = vadd.f32 0.0, %v1848
      %v1850 = vpop.f32.mrf.mxu0
      %1851 = vmatprep.mubr.bf16.mxu0 0
      %1852 = vmatmul.mubr.bf16.gmra.mxu0 %v1791
      %v1853 = vpop.f32.mrf.mxu0
      %v1854 = vadd.f32 0.0, %v1853
      %v1855 = vpop.f32.mrf.mxu0
      %v1856 = vpop.f32.mrf.mxu0
      %v1857 = vadd.f32 0.0, %v1856
      %v1858 = vpop.f32.mrf.mxu0
      %1859 = vmatprep.mubr.bf16.mxu0 0
      %1860 = vmatmul.mubr.bf16.gmra.mxu0 %v1794
      %v1861 = vpop.f32.mrf.mxu0
      %v1862 = vadd.f32 0.0, %v1861
      %v1863 = vpop.f32.mrf.mxu0
      %v1864 = vpop.f32.mrf.mxu0
      %v1865 = vadd.f32 0.0, %v1864
      %v1866 = vpop.f32.mrf.mxu0
      %1867 = vmatprep.mubr.bf16.mxu0 0
      %1868 = vmatmul.mubr.bf16.gmra.mxu0 %v1797
      %v1869 = vpop.f32.mrf.mxu0
      %v1870 = vadd.f32 0.0, %v1869
      %v1871 = vpop.f32.mrf.mxu0
      %v1872 = vpop.f32.mrf.mxu0
      %v1873 = vadd.f32 0.0, %v1872
      %v1874 = vpop.f32.mrf.mxu0
      %1875 = vmatprep.mubr.bf16.mxu0 0
      %1876 = vmatmul.mubr.bf16.gmra.mxu0 %v1800
      %v1877 = vpop.f32.mrf.mxu0
      %v1878 = vadd.f32 0.0, %v1877
      %v1879 = vpop.f32.mrf.mxu0
      %v1880 = vpop.f32.mrf.mxu0
      %v1881 = vadd.f32 0.0, %v1880
      %v1882 = vpop.f32.mrf.mxu0
      %1883 = vmatprep.mubr.bf16.mxu0 0
      %1884 = vmatmul.mubr.bf16.gmra.mxu0 %v1803
      %v1885 = vpop.f32.mrf.mxu0
      %v1886 = vadd.f32 0.0, %v1885
      %v1887 = vpop.f32.mrf.mxu0
      %v1888 = vpop.f32.mrf.mxu0
      %v1889 = vadd.f32 0.0, %v1888
      %v1890 = vpop.f32.mrf.mxu0
      %1891 = vmatprep.mubr.bf16.mxu0 0
      %1892 = vmatmul.mubr.bf16.gmra.mxu0 %v1806
      %v1893 = vpop.f32.mrf.mxu0
      %v1894 = vadd.f32 0.0, %v1893
      %v1895 = vpop.f32.mrf.mxu0
      %v1896 = vpop.f32.mrf.mxu0
      %v1897 = vadd.f32 0.0, %v1896
      %v1898 = vpop.f32.mrf.mxu0
      %1899 = vmatprep.mubr.bf16.mxu0 0
      %1900 = vmatmul.mubr.bf16.gmra.mxu0 %v1809
      %v1901 = vpop.f32.mrf.mxu0
      %v1902 = vadd.f32 0.0, %v1901
      %v1903 = vpop.f32.mrf.mxu0
      %v1904 = vpop.f32.mrf.mxu0
      %v1905 = vadd.f32 0.0, %v1904
      %v1906 = vpop.f32.mrf.mxu0
      %1907 = vdwg.mxu0
      %v1908 = vadd.f32 %v1738, %v1846
      %v1909 = vadd.f32 %v1739, %v1849
      %v1910 = vadd.f32 %v1740, %v1854
      %v1911 = vadd.f32 %v1741, %v1857
      %v1912 = vadd.f32 %v1742, %v1862
      %v1913 = vadd.f32 %v1743, %v1865
      %v1914 = vadd.f32 %v1744, %v1870
      %v1915 = vadd.f32 %v1745, %v1873
      %v1916 = vadd.f32 %v1746, %v1878
      %v1917 = vadd.f32 %v1747, %v1881
      %v1918 = vadd.f32 %v1748, %v1886
      %v1919 = vadd.f32 %v1749, %v1889
      %v1920 = vadd.f32 %v1750, %v1894
      %v1921 = vadd.f32 %v1751, %v1897
      %v1922 = vadd.f32 %v1752, %v1902
      %v1923 = vadd.f32 %v1753, %v1905
      %1924 = vst [vmem:[#allocation2] sm:$0xff] %v1908
      %1925 = vst [vmem:[#allocation2 + $0x8] sm:$0xff] %v1909
      %1926 = vst [vmem:[#allocation2 + $0x10] sm:$0xff] %v1910
      %1927 = vst [vmem:[#allocation2 + $0x18] sm:$0xff] %v1911
      %1928 = vst [vmem:[#allocation2 + $0x20] sm:$0xff] %v1912
      %1929 = vst [vmem:[#allocation2 + $0x28] sm:$0xff] %v1913
      %1930 = vst [vmem:[#allocation2 + $0x30] sm:$0xff] %v1914
      %1931 = vst [vmem:[#allocation2 + $0x38] sm:$0xff] %v1915
      %1932 = vst [vmem:[#allocation2 + $0x40] sm:$0xff] %v1916
      %1933 = vst [vmem:[#allocation2 + $0x48] sm:$0xff] %v1917
      %1934 = vst [vmem:[#allocation2 + $0x50] sm:$0xff] %v1918
      %1935 = vst [vmem:[#allocation2 + $0x58] sm:$0xff] %v1919
      %1936 = vst [vmem:[#allocation2 + $0x60] sm:$0xff] %v1920
      %1937 = vst [vmem:[#allocation2 + $0x68] sm:$0xff] %v1921
      %1938 = vst [vmem:[#allocation2 + $0x70] sm:$0xff] %v1922
      %1939 = vst [vmem:[#allocation2 + $0x78] sm:$0xff] %v1923
      %v1940 = vld [vmem:[%s1287] sm:$0xe]
      %v1941 = vld [vmem:[%s1287 + $0x4] sm:$0xf]
      %v1942 = vld [vmem:[%s1287 + $0x8] sm:$0x1]
      %v1943 = vld [vmem:[%s1287 + $0xc] sm:$0xe]
      %v1944 = vld [vmem:[%s1287 + $0x10] sm:$0xf]
      %v1945 = vld [vmem:[%s1287 + $0x14] sm:$0x1]
      %v1946 = vld [vmem:[%s1287 + $0x18] sm:$0xe]
      %v1947 = vld [vmem:[%s1287 + $0x1c] sm:$0xf]
      %v1948 = vld [vmem:[%s1287 + $0x20] sm:$0x1]
      %v1949 = vld [vmem:[%s1287 + $0x24] sm:$0xe]
      %v1950 = vld [vmem:[%s1287 + $0x28] sm:$0xf]
      %v1951 = vld [vmem:[%s1287 + $0x2c] sm:$0x1]
      %v1952 = vld [vmem:[%s1287 + $0x30] sm:$0xe]
      %v1953 = vld [vmem:[%s1287 + $0x34] sm:$0xf]
      %v1954 = vld [vmem:[%s1287 + $0x38] sm:$0x1]
      %v1955 = vld [vmem:[%s1287 + $0x3c] sm:$0xe]
      %v1956 = vld [vmem:[%s1287 + $0x40] sm:$0xf]
      %v1957 = vld [vmem:[%s1287 + $0x44] sm:$0x1]
      %v1958 = vld [vmem:[%s1287 + $0x48] sm:$0xe]
      %v1959 = vld [vmem:[%s1287 + $0x4c] sm:$0xf]
      %v1960 = vld [vmem:[%s1287 + $0x50] sm:$0x1]
      %v1961 = vld [vmem:[%s1287 + $0x54] sm:$0xe]
      %v1962 = vld [vmem:[%s1287 + $0x58] sm:$0xf]
      %v1963 = vld [vmem:[%s1287 + $0x5c] sm:$0x1]
      %v1988 = vrot.slane %v1940, 5
      %v1989 = vrot.slane %v1988, 4
      %v1990 = vrot.slane %v1941, 5
      %v1991 = vsel %vm1028, %v1989, %v1990
      %v1992 = vrot.slane %v1990, 4
      %v1993 = vrot.slane %v1942, 5
      %v1994 = vsel %vm1028, %v1992, %v1993
      %v1995 = vrot.slane %v1943, 5
      %v1996 = vrot.slane %v1995, 4
      %v1997 = vrot.slane %v1944, 5
      %v1998 = vsel %vm1028, %v1996, %v1997
      %v1999 = vrot.slane %v1997, 4
      %v2000 = vrot.slane %v1945, 5
      %v2001 = vsel %vm1028, %v1999, %v2000
      %v2002 = vrot.slane %v1946, 5
      %v2003 = vrot.slane %v2002, 4
      %v2004 = vrot.slane %v1947, 5
      %v2005 = vsel %vm1028, %v2003, %v2004
      %v2006 = vrot.slane %v2004, 4
      %v2007 = vrot.slane %v1948, 5
      %v2008 = vsel %vm1028, %v2006, %v2007
      %v2009 = vrot.slane %v1949, 5
      %v2010 = vrot.slane %v2009, 4
      %v2011 = vrot.slane %v1950, 5
      %v2012 = vsel %vm1028, %v2010, %v2011
      %v2013 = vrot.slane %v2011, 4
      %v2014 = vrot.slane %v1951, 5
      %v2015 = vsel %vm1028, %v2013, %v2014
      %v2016 = vrot.slane %v1952, 5
      %v2017 = vrot.slane %v2016, 4
      %v2018 = vrot.slane %v1953, 5
      %v2019 = vsel %vm1028, %v2017, %v2018
      %v2020 = vrot.slane %v2018, 4
      %v2021 = vrot.slane %v1954, 5
      %v2022 = vsel %vm1028, %v2020, %v2021
      %v2023 = vrot.slane %v1955, 5
      %v2024 = vrot.slane %v2023, 4
      %v2025 = vrot.slane %v1956, 5
      %v2026 = vsel %vm1028, %v2024, %v2025
      %v2027 = vrot.slane %v2025, 4
      %v2028 = vrot.slane %v1957, 5
      %v2029 = vsel %vm1028, %v2027, %v2028
      %v2030 = vrot.slane %v1958, 5
      %v2031 = vrot.slane %v2030, 4
      %v2032 = vrot.slane %v1959, 5
      %v2033 = vsel %vm1028, %v2031, %v2032
      %v2034 = vrot.slane %v2032, 4
      %v2035 = vrot.slane %v1960, 5
      %v2036 = vsel %vm1028, %v2034, %v2035
      %v2037 = vrot.slane %v1961, 5
      %v2038 = vrot.slane %v2037, 4
      %v2039 = vrot.slane %v1962, 5
      %v2040 = vsel %vm1028, %v2038, %v2039
      %v2041 = vrot.slane %v2039, 4
      %v2042 = vrot.slane %v1963, 5
      %v2043 = vsel %vm1028, %v2041, %v2042
      %v2044 = vld [vmem:[#allocation2] sm:$0xff]
      %v2045 = vld [vmem:[#allocation2 + $0x8] sm:$0xff]
      %v2046 = vld [vmem:[#allocation2 + $0x10] sm:$0xff]
      %v2047 = vld [vmem:[#allocation2 + $0x18] sm:$0xff]
      %v2048 = vld [vmem:[#allocation2 + $0x20] sm:$0xff]
      %v2049 = vld [vmem:[#allocation2 + $0x28] sm:$0xff]
      %v2050 = vld [vmem:[#allocation2 + $0x30] sm:$0xff]
      %v2051 = vld [vmem:[#allocation2 + $0x38] sm:$0xff]
      %v2052 = vld [vmem:[#allocation2 + $0x40] sm:$0xff]
      %v2053 = vld [vmem:[#allocation2 + $0x48] sm:$0xff]
      %v2054 = vld [vmem:[#allocation2 + $0x50] sm:$0xff]
      %v2055 = vld [vmem:[#allocation2 + $0x58] sm:$0xff]
      %v2056 = vld [vmem:[#allocation2 + $0x60] sm:$0xff]
      %v2057 = vld [vmem:[#allocation2 + $0x68] sm:$0xff]
      %v2058 = vld [vmem:[#allocation2 + $0x70] sm:$0xff]
      %v2059 = vld [vmem:[#allocation2 + $0x78] sm:$0xff]
      %s2060 = scalar_lea.vmem %s290, 40
      %v2061 = vld [vmem:[%s2060] sm:$0xf]
      %v2062 = vld [vmem:[%s2060 + $0x4] sm:$0xf]
      %v2063 = vunpack.c.l.b16 %v1991
      %v2064 = vunpack.c.l.b16 %v1994
      %v2065 = vunpack.c.l.b16 %v1998
      %v2066 = vunpack.c.l.b16 %v2001
      %v2067 = vunpack.c.l.b16 %v2005
      %v2068 = vunpack.c.l.b16 %v2008
      %v2069 = vunpack.c.l.b16 %v2012
      %v2070 = vunpack.c.l.b16 %v2015
      %v2071 = vunpack.c.l.b16 %v2019
      %v2072 = vunpack.c.l.b16 %v2022
      %v2073 = vunpack.c.l.b16 %v2026
      %v2074 = vunpack.c.l.b16 %v2029
      %v2075 = vunpack.c.l.b16 %v2033
      %v2076 = vunpack.c.l.b16 %v2036
      %v2077 = vunpack.c.l.b16 %v2040
      %v2078 = vunpack.c.l.b16 %v2043
      %v2079 = vpack.c.b16 %v2064, %v2063
      %v2080 = vpack.c.b16 %v2066, %v2065
      %v2081 = vpack.c.b16 %v2068, %v2067
      %v2082 = vpack.c.b16 %v2070, %v2069
      %v2083 = vpack.c.b16 %v2072, %v2071
      %v2084 = vpack.c.b16 %v2074, %v2073
      %v2085 = vpack.c.b16 %v2076, %v2075
      %v2086 = vpack.c.b16 %v2078, %v2077
      %v2089 = vunpack.c.l.b16 %v2061
      %v2090 = vunpack.c.l.b16 %v2062
      %v2091 = vpack.c.b16 %v2090, %v2089
      %v2094 = vsel %vm403, %v2079, 0
      %v2097 = vsel %vm403, %v2080, 0
      %v2100 = vsel %vm403, %v2081, 0
      %v2103 = vsel %vm403, %v2082, 0
      %v2106 = vsel %vm403, %v2083, 0
      %v2109 = vsel %vm403, %v2084, 0
      %v2112 = vsel %vm403, %v2085, 0
      %v2115 = vsel %vm403, %v2086, 0
      %2117 = vmatprep.subr.bf16.mxu0 0
      %2118 = vmatpush1.bf16.msra.mxu0 0
      %2119 = vmatprep.subr.bf16.mxu0 0
      %2120 = vmatpush1.bf16.msra.mxu0 0
      %2121 = vmatprep.subr.bf16.mxu0 0
      %2122 = vmatpush1.bf16.msra.mxu0 0
      %2123 = vmatprep.subr.bf16.mxu0 0
      %2124 = vmatpush1.bf16.msra.mxu0 0
      %2125 = vmatprep.subr.bf16.mxu0 0
      %2126 = vmatpush1.bf16.msra.mxu0 0
      %2127 = vmatprep.subr.bf16.mxu0 0
      %2128 = vmatpush1.bf16.msra.mxu0 0
      %2129 = vmatprep.subr.bf16.mxu0 0
      %2130 = vmatpush1.bf16.msra.mxu0 0
      %2131 = vmatprep.subr.bf16.mxu0 0
      %2132 = vmatpush1.bf16.msra.mxu0 %v2091
      %2133 = vmatprep.subr.bf16.mxu0 0
      %2134 = vmatpush2.bf16.msra.mxu0 0
      %2135 = vmatprep.subr.bf16.mxu0 0
      %2136 = vmatpush2.bf16.msra.mxu0 0
      %2137 = vmatprep.subr.bf16.mxu0 0
      %2138 = vmatpush2.bf16.msra.mxu0 0
      %2139 = vmatprep.subr.bf16.mxu0 0
      %2140 = vmatpush2.bf16.msra.mxu0 0
      %2141 = vmatprep.subr.bf16.mxu0 0
      %2142 = vmatpush2.bf16.msra.mxu0 0
      %2143 = vmatprep.subr.bf16.mxu0 0
      %2144 = vmatpush2.bf16.msra.mxu0 0
      %2145 = vmatprep.subr.bf16.mxu0 0
      %2146 = vmatpush2.bf16.msra.mxu0 0
      %2147 = vmatprep.subr.bf16.mxu0 0
      %2148 = vmatpush2.bf16.msra.mxu0 0
      %2149 = vmatprep.mubr.bf16.mxu0 0
      %2150 = vmatmul.mubr.bf16.gmra.mxu0 %v2094
      %v2151 = vpop.f32.mrf.mxu0
      %v2152 = vadd.f32 0.0, %v2151
      %v2153 = vpop.f32.mrf.mxu0
      %v2154 = vpop.f32.mrf.mxu0
      %v2155 = vadd.f32 0.0, %v2154
      %v2156 = vpop.f32.mrf.mxu0
      %2157 = vmatprep.mubr.bf16.mxu0 0
      %2158 = vmatmul.mubr.bf16.gmra.mxu0 %v2097
      %v2159 = vpop.f32.mrf.mxu0
      %v2160 = vadd.f32 0.0, %v2159
      %v2161 = vpop.f32.mrf.mxu0
      %v2162 = vpop.f32.mrf.mxu0
      %v2163 = vadd.f32 0.0, %v2162
      %v2164 = vpop.f32.mrf.mxu0
      %2165 = vmatprep.mubr.bf16.mxu0 0
      %2166 = vmatmul.mubr.bf16.gmra.mxu0 %v2100
      %v2167 = vpop.f32.mrf.mxu0
      %v2168 = vadd.f32 0.0, %v2167
      %v2169 = vpop.f32.mrf.mxu0
      %v2170 = vpop.f32.mrf.mxu0
      %v2171 = vadd.f32 0.0, %v2170
      %v2172 = vpop.f32.mrf.mxu0
      %2173 = vmatprep.mubr.bf16.mxu0 0
      %2174 = vmatmul.mubr.bf16.gmra.mxu0 %v2103
      %v2175 = vpop.f32.mrf.mxu0
      %v2176 = vadd.f32 0.0, %v2175
      %v2177 = vpop.f32.mrf.mxu0
      %v2178 = vpop.f32.mrf.mxu0
      %v2179 = vadd.f32 0.0, %v2178
      %v2180 = vpop.f32.mrf.mxu0
      %2181 = vmatprep.mubr.bf16.mxu0 0
      %2182 = vmatmul.mubr.bf16.gmra.mxu0 %v2106
      %v2183 = vpop.f32.mrf.mxu0
      %v2184 = vadd.f32 0.0, %v2183
      %v2185 = vpop.f32.mrf.mxu0
      %v2186 = vpop.f32.mrf.mxu0
      %v2187 = vadd.f32 0.0, %v2186
      %v2188 = vpop.f32.mrf.mxu0
      %2189 = vmatprep.mubr.bf16.mxu0 0
      %2190 = vmatmul.mubr.bf16.gmra.mxu0 %v2109
      %v2191 = vpop.f32.mrf.mxu0
      %v2192 = vadd.f32 0.0, %v2191
      %v2193 = vpop.f32.mrf.mxu0
      %v2194 = vpop.f32.mrf.mxu0
      %v2195 = vadd.f32 0.0, %v2194
      %v2196 = vpop.f32.mrf.mxu0
      %2197 = vmatprep.mubr.bf16.mxu0 0
      %2198 = vmatmul.mubr.bf16.gmra.mxu0 %v2112
      %v2199 = vpop.f32.mrf.mxu0
      %v2200 = vadd.f32 0.0, %v2199
      %v2201 = vpop.f32.mrf.mxu0
      %v2202 = vpop.f32.mrf.mxu0
      %v2203 = vadd.f32 0.0, %v2202
      %v2204 = vpop.f32.mrf.mxu0
      %2205 = vmatprep.mubr.bf16.mxu0 0
      %2206 = vmatmul.mubr.bf16.gmra.mxu0 %v2115
      %v2207 = vpop.f32.mrf.mxu0
      %v2208 = vadd.f32 0.0, %v2207
      %v2209 = vpop.f32.mrf.mxu0
      %v2210 = vpop.f32.mrf.mxu0
      %v2211 = vadd.f32 0.0, %v2210
      %v2212 = vpop.f32.mrf.mxu0
      %2213 = vdwg.mxu0
      %v2214 = vadd.f32 %v2044, %v2152
      %v2215 = vadd.f32 %v2045, %v2155
      %v2216 = vadd.f32 %v2046, %v2160
      %v2217 = vadd.f32 %v2047, %v2163
      %v2218 = vadd.f32 %v2048, %v2168
      %v2219 = vadd.f32 %v2049, %v2171
      %v2220 = vadd.f32 %v2050, %v2176
      %v2221 = vadd.f32 %v2051, %v2179
      %v2222 = vadd.f32 %v2052, %v2184
      %v2223 = vadd.f32 %v2053, %v2187
      %v2224 = vadd.f32 %v2054, %v2192
      %v2225 = vadd.f32 %v2055, %v2195
      %v2226 = vadd.f32 %v2056, %v2200
      %v2227 = vadd.f32 %v2057, %v2203
      %v2228 = vadd.f32 %v2058, %v2208
      %v2229 = vadd.f32 %v2059, %v2211
      %2230 = vst [vmem:[#allocation2] sm:$0xff] %v2214
      %2231 = vst [vmem:[#allocation2 + $0x8] sm:$0xff] %v2215
      %2232 = vst [vmem:[#allocation2 + $0x10] sm:$0xff] %v2216
      %2233 = vst [vmem:[#allocation2 + $0x18] sm:$0xff] %v2217
      %2234 = vst [vmem:[#allocation2 + $0x20] sm:$0xff] %v2218
      %2235 = vst [vmem:[#allocation2 + $0x28] sm:$0xff] %v2219
      %2236 = vst [vmem:[#allocation2 + $0x30] sm:$0xff] %v2220
      %2237 = vst [vmem:[#allocation2 + $0x38] sm:$0xff] %v2221
      %2238 = vst [vmem:[#allocation2 + $0x40] sm:$0xff] %v2222
      %2239 = vst [vmem:[#allocation2 + $0x48] sm:$0xff] %v2223
      %2240 = vst [vmem:[#allocation2 + $0x50] sm:$0xff] %v2224
      %2241 = vst [vmem:[#allocation2 + $0x58] sm:$0xff] %v2225
      %2242 = vst [vmem:[#allocation2 + $0x60] sm:$0xff] %v2226
      %2243 = vst [vmem:[#allocation2 + $0x68] sm:$0xff] %v2227
      %2244 = vst [vmem:[#allocation2 + $0x70] sm:$0xff] %v2228
      %2245 = vst [vmem:[#allocation2 + $0x78] sm:$0xff] %v2229
      %s2246 = scalar_lea.vmem %s285, 24
      %v2247 = vld [vmem:[%s2246] sm:$0xf]
      %v2248 = vld [vmem:[%s2246 + $0x4] sm:$0xf]
      %v2249 = vld [vmem:[%s2246 + $0xc] sm:$0xf]
      %v2250 = vld [vmem:[%s2246 + $0x10] sm:$0xf]
      %v2251 = vld [vmem:[%s2246 + $0x18] sm:$0xf]
      %v2252 = vld [vmem:[%s2246 + $0x1c] sm:$0xf]
      %v2253 = vld [vmem:[%s2246 + $0x24] sm:$0xf]
      %v2254 = vld [vmem:[%s2246 + $0x28] sm:$0xf]
      %v2255 = vld [vmem:[%s2246 + $0x30] sm:$0xf]
      %v2256 = vld [vmem:[%s2246 + $0x34] sm:$0xf]
      %v2257 = vld [vmem:[%s2246 + $0x3c] sm:$0xf]
      %v2258 = vld [vmem:[%s2246 + $0x40] sm:$0xf]
      %v2259 = vld [vmem:[%s2246 + $0x48] sm:$0xf]
      %v2260 = vld [vmem:[%s2246 + $0x4c] sm:$0xf]
      %v2261 = vld [vmem:[%s2246 + $0x54] sm:$0xf]
      %v2262 = vld [vmem:[%s2246 + $0x58] sm:$0xf]
      %v2263 = vld [vmem:[#allocation2] sm:$0xff]
      %v2264 = vld [vmem:[#allocation2 + $0x8] sm:$0xff]
      %v2265 = vld [vmem:[#allocation2 + $0x10] sm:$0xff]
      %v2266 = vld [vmem:[#allocation2 + $0x18] sm:$0xff]
      %v2267 = vld [vmem:[#allocation2 + $0x20] sm:$0xff]
      %v2268 = vld [vmem:[#allocation2 + $0x28] sm:$0xff]
      %v2269 = vld [vmem:[#allocation2 + $0x30] sm:$0xff]
      %v2270 = vld [vmem:[#allocation2 + $0x38] sm:$0xff]
      %v2271 = vld [vmem:[#allocation2 + $0x40] sm:$0xff]
      %v2272 = vld [vmem:[#allocation2 + $0x48] sm:$0xff]
      %v2273 = vld [vmem:[#allocation2 + $0x50] sm:$0xff]
      %v2274 = vld [vmem:[#allocation2 + $0x58] sm:$0xff]
      %v2275 = vld [vmem:[#allocation2 + $0x60] sm:$0xff]
      %v2276 = vld [vmem:[#allocation2 + $0x68] sm:$0xff]
      %v2277 = vld [vmem:[#allocation2 + $0x70] sm:$0xff]
      %v2278 = vld [vmem:[#allocation2 + $0x78] sm:$0xff]
      %s2279 = scalar_lea.vmem %s290, 48
      %v2280 = vld [vmem:[%s2279] sm:$0xf]
      %v2281 = vld [vmem:[%s2279 + $0x4] sm:$0xf]
      %v2298 = vunpack.c.l.b16 %v2247
      %v2299 = vunpack.c.l.b16 %v2248
      %v2300 = vunpack.c.l.b16 %v2249
      %v2301 = vunpack.c.l.b16 %v2250
      %v2302 = vunpack.c.l.b16 %v2251
      %v2303 = vunpack.c.l.b16 %v2252
      %v2304 = vunpack.c.l.b16 %v2253
      %v2305 = vunpack.c.l.b16 %v2254
      %v2306 = vunpack.c.l.b16 %v2255
      %v2307 = vunpack.c.l.b16 %v2256
      %v2308 = vunpack.c.l.b16 %v2257
      %v2309 = vunpack.c.l.b16 %v2258
      %v2310 = vunpack.c.l.b16 %v2259
      %v2311 = vunpack.c.l.b16 %v2260
      %v2312 = vunpack.c.l.b16 %v2261
      %v2313 = vunpack.c.l.b16 %v2262
      %v2314 = vpack.c.b16 %v2299, %v2298
      %v2315 = vpack.c.b16 %v2301, %v2300
      %v2316 = vpack.c.b16 %v2303, %v2302
      %v2317 = vpack.c.b16 %v2305, %v2304
      %v2318 = vpack.c.b16 %v2307, %v2306
      %v2319 = vpack.c.b16 %v2309, %v2308
      %v2320 = vpack.c.b16 %v2311, %v2310
      %v2321 = vpack.c.b16 %v2313, %v2312
      %v2324 = vunpack.c.l.b16 %v2280
      %v2325 = vunpack.c.l.b16 %v2281
      %v2326 = vpack.c.b16 %v2325, %v2324
      %v2329 = vsel %vm403, %v2314, 0
      %v2332 = vsel %vm403, %v2315, 0
      %v2335 = vsel %vm403, %v2316, 0
      %v2338 = vsel %vm403, %v2317, 0
      %v2341 = vsel %vm403, %v2318, 0
      %v2344 = vsel %vm403, %v2319, 0
      %v2347 = vsel %vm403, %v2320, 0
      %v2350 = vsel %vm403, %v2321, 0
      %2352 = vmatprep.subr.bf16.mxu0 0
      %2353 = vmatpush1.bf16.msra.mxu0 0
      %2354 = vmatprep.subr.bf16.mxu0 0
      %2355 = vmatpush1.bf16.msra.mxu0 0
      %2356 = vmatprep.subr.bf16.mxu0 0
      %2357 = vmatpush1.bf16.msra.mxu0 0
      %2358 = vmatprep.subr.bf16.mxu0 0
      %2359 = vmatpush1.bf16.msra.mxu0 0
      %2360 = vmatprep.subr.bf16.mxu0 0
      %2361 = vmatpush1.bf16.msra.mxu0 0
      %2362 = vmatprep.subr.bf16.mxu0 0
      %2363 = vmatpush1.bf16.msra.mxu0 0
      %2364 = vmatprep.subr.bf16.mxu0 0
      %2365 = vmatpush1.bf16.msra.mxu0 0
      %2366 = vmatprep.subr.bf16.mxu0 0
      %2367 = vmatpush1.bf16.msra.mxu0 %v2326
      %2368 = vmatprep.subr.bf16.mxu0 0
      %2369 = vmatpush2.bf16.msra.mxu0 0
      %2370 = vmatprep.subr.bf16.mxu0 0
      %2371 = vmatpush2.bf16.msra.mxu0 0
      %2372 = vmatprep.subr.bf16.mxu0 0
      %2373 = vmatpush2.bf16.msra.mxu0 0
      %2374 = vmatprep.subr.bf16.mxu0 0
      %2375 = vmatpush2.bf16.msra.mxu0 0
      %2376 = vmatprep.subr.bf16.mxu0 0
      %2377 = vmatpush2.bf16.msra.mxu0 0
      %2378 = vmatprep.subr.bf16.mxu0 0
      %2379 = vmatpush2.bf16.msra.mxu0 0
      %2380 = vmatprep.subr.bf16.mxu0 0
      %2381 = vmatpush2.bf16.msra.mxu0 0
      %2382 = vmatprep.subr.bf16.mxu0 0
      %2383 = vmatpush2.bf16.msra.mxu0 0
      %2384 = vmatprep.mubr.bf16.mxu0 0
      %2385 = vmatmul.mubr.bf16.gmra.mxu0 %v2329
      %v2386 = vpop.f32.mrf.mxu0
      %v2387 = vadd.f32 0.0, %v2386
      %v2388 = vpop.f32.mrf.mxu0
      %v2389 = vpop.f32.mrf.mxu0
      %v2390 = vadd.f32 0.0, %v2389
      %v2391 = vpop.f32.mrf.mxu0
      %2392 = vmatprep.mubr.bf16.mxu0 0
      %2393 = vmatmul.mubr.bf16.gmra.mxu0 %v2332
      %v2394 = vpop.f32.mrf.mxu0
      %v2395 = vadd.f32 0.0, %v2394
      %v2396 = vpop.f32.mrf.mxu0
      %v2397 = vpop.f32.mrf.mxu0
      %v2398 = vadd.f32 0.0, %v2397
      %v2399 = vpop.f32.mrf.mxu0
      %2400 = vmatprep.mubr.bf16.mxu0 0
      %2401 = vmatmul.mubr.bf16.gmra.mxu0 %v2335
      %v2402 = vpop.f32.mrf.mxu0
      %v2403 = vadd.f32 0.0, %v2402
      %v2404 = vpop.f32.mrf.mxu0
      %v2405 = vpop.f32.mrf.mxu0
      %v2406 = vadd.f32 0.0, %v2405
      %v2407 = vpop.f32.mrf.mxu0
      %2408 = vmatprep.mubr.bf16.mxu0 0
      %2409 = vmatmul.mubr.bf16.gmra.mxu0 %v2338
      %v2410 = vpop.f32.mrf.mxu0
      %v2411 = vadd.f32 0.0, %v2410
      %v2412 = vpop.f32.mrf.mxu0
      %v2413 = vpop.f32.mrf.mxu0
      %v2414 = vadd.f32 0.0, %v2413
      %v2415 = vpop.f32.mrf.mxu0
      %2416 = vmatprep.mubr.bf16.mxu0 0
      %2417 = vmatmul.mubr.bf16.gmra.mxu0 %v2341
      %v2418 = vpop.f32.mrf.mxu0
      %v2419 = vadd.f32 0.0, %v2418
      %v2420 = vpop.f32.mrf.mxu0
      %v2421 = vpop.f32.mrf.mxu0
      %v2422 = vadd.f32 0.0, %v2421
      %v2423 = vpop.f32.mrf.mxu0
      %2424 = vmatprep.mubr.bf16.mxu0 0
      %2425 = vmatmul.mubr.bf16.gmra.mxu0 %v2344
      %v2426 = vpop.f32.mrf.mxu0
      %v2427 = vadd.f32 0.0, %v2426
      %v2428 = vpop.f32.mrf.mxu0
      %v2429 = vpop.f32.mrf.mxu0
      %v2430 = vadd.f32 0.0, %v2429
      %v2431 = vpop.f32.mrf.mxu0
      %2432 = vmatprep.mubr.bf16.mxu0 0
      %2433 = vmatmul.mubr.bf16.gmra.mxu0 %v2347
      %v2434 = vpop.f32.mrf.mxu0
      %v2435 = vadd.f32 0.0, %v2434
      %v2436 = vpop.f32.mrf.mxu0
      %v2437 = vpop.f32.mrf.mxu0
      %v2438 = vadd.f32 0.0, %v2437
      %v2439 = vpop.f32.mrf.mxu0
      %2440 = vmatprep.mubr.bf16.mxu0 0
      %2441 = vmatmul.mubr.bf16.gmra.mxu0 %v2350
      %v2442 = vpop.f32.mrf.mxu0
      %v2443 = vadd.f32 0.0, %v2442
      %v2444 = vpop.f32.mrf.mxu0
      %v2445 = vpop.f32.mrf.mxu0
      %v2446 = vadd.f32 0.0, %v2445
      %v2447 = vpop.f32.mrf.mxu0
      %2448 = vdwg.mxu0
      %v2449 = vadd.f32 %v2263, %v2387
      %v2450 = vadd.f32 %v2264, %v2390
      %v2451 = vadd.f32 %v2265, %v2395
      %v2452 = vadd.f32 %v2266, %v2398
      %v2453 = vadd.f32 %v2267, %v2403
      %v2454 = vadd.f32 %v2268, %v2406
      %v2455 = vadd.f32 %v2269, %v2411
      %v2456 = vadd.f32 %v2270, %v2414
      %v2457 = vadd.f32 %v2271, %v2419
      %v2458 = vadd.f32 %v2272, %v2422
      %v2459 = vadd.f32 %v2273, %v2427
      %v2460 = vadd.f32 %v2274, %v2430
      %v2461 = vadd.f32 %v2275, %v2435
      %v2462 = vadd.f32 %v2276, %v2438
      %v2463 = vadd.f32 %v2277, %v2443
      %v2464 = vadd.f32 %v2278, %v2446
      %2465 = vst [vmem:[#allocation2] sm:$0xff] %v2449
      %2466 = vst [vmem:[#allocation2 + $0x8] sm:$0xff] %v2450
      %2467 = vst [vmem:[#allocation2 + $0x10] sm:$0xff] %v2451
      %2468 = vst [vmem:[#allocation2 + $0x18] sm:$0xff] %v2452
      %2469 = vst [vmem:[#allocation2 + $0x20] sm:$0xff] %v2453
      %2470 = vst [vmem:[#allocation2 + $0x28] sm:$0xff] %v2454
      %2471 = vst [vmem:[#allocation2 + $0x30] sm:$0xff] %v2455
      %2472 = vst [vmem:[#allocation2 + $0x38] sm:$0xff] %v2456
      %2473 = vst [vmem:[#allocation2 + $0x40] sm:$0xff] %v2457
      %2474 = vst [vmem:[#allocation2 + $0x48] sm:$0xff] %v2458
      %2475 = vst [vmem:[#allocation2 + $0x50] sm:$0xff] %v2459
      %2476 = vst [vmem:[#allocation2 + $0x58] sm:$0xff] %v2460
      %2477 = vst [vmem:[#allocation2 + $0x60] sm:$0xff] %v2461
      %2478 = vst [vmem:[#allocation2 + $0x68] sm:$0xff] %v2462
      %2479 = vst [vmem:[#allocation2 + $0x70] sm:$0xff] %v2463
      %2480 = vst [vmem:[#allocation2 + $0x78] sm:$0xff] %v2464
      %v2481 = vld [vmem:[%s2246] sm:$0xf]
      %v2482 = vld [vmem:[%s2246 + $0x4] sm:$0xf]
      %v2483 = vld [vmem:[%s2246 + $0x8] sm:$0x1]
      %v2484 = vld [vmem:[%s2246 + $0xc] sm:$0xf]
      %v2485 = vld [vmem:[%s2246 + $0x10] sm:$0xf]
      %v2486 = vld [vmem:[%s2246 + $0x14] sm:$0x1]
      %v2487 = vld [vmem:[%s2246 + $0x18] sm:$0xf]
      %v2488 = vld [vmem:[%s2246 + $0x1c] sm:$0xf]
      %v2489 = vld [vmem:[%s2246 + $0x20] sm:$0x1]
      %v2490 = vld [vmem:[%s2246 + $0x24] sm:$0xf]
      %v2491 = vld [vmem:[%s2246 + $0x28] sm:$0xf]
      %v2492 = vld [vmem:[%s2246 + $0x2c] sm:$0x1]
      %v2493 = vld [vmem:[%s2246 + $0x30] sm:$0xf]
      %v2494 = vld [vmem:[%s2246 + $0x34] sm:$0xf]
      %v2495 = vld [vmem:[%s2246 + $0x38] sm:$0x1]
      %v2496 = vld [vmem:[%s2246 + $0x3c] sm:$0xf]
      %v2497 = vld [vmem:[%s2246 + $0x40] sm:$0xf]
      %v2498 = vld [vmem:[%s2246 + $0x44] sm:$0x1]
      %v2499 = vld [vmem:[%s2246 + $0x48] sm:$0xf]
      %v2500 = vld [vmem:[%s2246 + $0x4c] sm:$0xf]
      %v2501 = vld [vmem:[%s2246 + $0x50] sm:$0x1]
      %v2502 = vld [vmem:[%s2246 + $0x54] sm:$0xf]
      %v2503 = vld [vmem:[%s2246 + $0x58] sm:$0xf]
      %v2504 = vld [vmem:[%s2246 + $0x5c] sm:$0x1]
      %v2506 = vshrl.u32 %v2481, 16
      %v2508 = vrot.slane %v2506, 4
      %v2509 = vshll.u32 %v2481, 16
      %v2511 = vrot.slane %v2509, 5
      %v2512 = vor.u32 %v2508, %v2511
      %v2513 = vrot.slane %v2512, 4
      %v2515 = vshll.u32 %v2482, 16
      %v2517 = vrot.slane %v2515, 5
      %v2518 = vsel %vm583, %v2513, %v2517
      %v2519 = vshrl.u32 %v2482, 16
      %v2521 = vrot.slane %v2519, 4
      %v2522 = vor.u32 %v2521, %v2517
      %v2523 = vrot.slane %v2522, 4
      %v2525 = vshll.u32 %v2483, 16
      %v2527 = vrot.slane %v2525, 5
      %v2528 = vsel %vm583, %v2523, %v2527
      %v2530 = vshrl.u32 %v2484, 16
      %v2532 = vrot.slane %v2530, 4
      %v2533 = vshll.u32 %v2484, 16
      %v2535 = vrot.slane %v2533, 5
      %v2536 = vor.u32 %v2532, %v2535
      %v2537 = vrot.slane %v2536, 4
      %v2539 = vshll.u32 %v2485, 16
      %v2541 = vrot.slane %v2539, 5
      %v2542 = vsel %vm583, %v2537, %v2541
      %v2543 = vshrl.u32 %v2485, 16
      %v2545 = vrot.slane %v2543, 4
      %v2546 = vor.u32 %v2545, %v2541
      %v2547 = vrot.slane %v2546, 4
      %v2549 = vshll.u32 %v2486, 16
      %v2551 = vrot.slane %v2549, 5
      %v2552 = vsel %vm583, %v2547, %v2551
      %v2554 = vshrl.u32 %v2487, 16
      %v2556 = vrot.slane %v2554, 4
      %v2557 = vshll.u32 %v2487, 16
      %v2559 = vrot.slane %v2557, 5
      %v2560 = vor.u32 %v2556, %v2559
      %v2561 = vrot.slane %v2560, 4
      %v2563 = vshll.u32 %v2488, 16
      %v2565 = vrot.slane %v2563, 5
      %v2566 = vsel %vm583, %v2561, %v2565
      %v2567 = vshrl.u32 %v2488, 16
      %v2569 = vrot.slane %v2567, 4
      %v2570 = vor.u32 %v2569, %v2565
      %v2571 = vrot.slane %v2570, 4
      %v2573 = vshll.u32 %v2489, 16
      %v2575 = vrot.slane %v2573, 5
      %v2576 = vsel %vm583, %v2571, %v2575
      %v2578 = vshrl.u32 %v2490, 16
      %v2580 = vrot.slane %v2578, 4
      %v2581 = vshll.u32 %v2490, 16
      %v2583 = vrot.slane %v2581, 5
      %v2584 = vor.u32 %v2580, %v2583
      %v2585 = vrot.slane %v2584, 4
      %v2587 = vshll.u32 %v2491, 16
      %v2589 = vrot.slane %v2587, 5
      %v2590 = vsel %vm583, %v2585, %v2589
      %v2591 = vshrl.u32 %v2491, 16
      %v2593 = vrot.slane %v2591, 4
      %v2594 = vor.u32 %v2593, %v2589
      %v2595 = vrot.slane %v2594, 4
      %v2597 = vshll.u32 %v2492, 16
      %v2599 = vrot.slane %v2597, 5
      %v2600 = vsel %vm583, %v2595, %v2599
      %v2602 = vshrl.u32 %v2493, 16
      %v2604 = vrot.slane %v2602, 4
      %v2605 = vshll.u32 %v2493, 16
      %v2607 = vrot.slane %v2605, 5
      %v2608 = vor.u32 %v2604, %v2607
      %v2609 = vrot.slane %v2608, 4
      %v2611 = vshll.u32 %v2494, 16
      %v2613 = vrot.slane %v2611, 5
      %v2614 = vsel %vm583, %v2609, %v2613
      %v2615 = vshrl.u32 %v2494, 16
      %v2617 = vrot.slane %v2615, 4
      %v2618 = vor.u32 %v2617, %v2613
      %v2619 = vrot.slane %v2618, 4
      %v2621 = vshll.u32 %v2495, 16
      %v2623 = vrot.slane %v2621, 5
      %v2624 = vsel %vm583, %v2619, %v2623
      %v2626 = vshrl.u32 %v2496, 16
      %v2628 = vrot.slane %v2626, 4
      %v2629 = vshll.u32 %v2496, 16
      %v2631 = vrot.slane %v2629, 5
      %v2632 = vor.u32 %v2628, %v2631
      %v2633 = vrot.slane %v2632, 4
      %v2635 = vshll.u32 %v2497, 16
      %v2637 = vrot.slane %v2635, 5
      %v2638 = vsel %vm583, %v2633, %v2637
      %v2639 = vshrl.u32 %v2497, 16
      %v2641 = vrot.slane %v2639, 4
      %v2642 = vor.u32 %v2641, %v2637
      %v2643 = vrot.slane %v2642, 4
      %v2645 = vshll.u32 %v2498, 16
      %v2647 = vrot.slane %v2645, 5
      %v2648 = vsel %vm583, %v2643, %v2647
      %v2650 = vshrl.u32 %v2499, 16
      %v2652 = vrot.slane %v2650, 4
      %v2653 = vshll.u32 %v2499, 16
      %v2655 = vrot.slane %v2653, 5
      %v2656 = vor.u32 %v2652, %v2655
      %v2657 = vrot.slane %v2656, 4
      %v2659 = vshll.u32 %v2500, 16
      %v2661 = vrot.slane %v2659, 5
      %v2662 = vsel %vm583, %v2657, %v2661
      %v2663 = vshrl.u32 %v2500, 16
      %v2665 = vrot.slane %v2663, 4
      %v2666 = vor.u32 %v2665, %v2661
      %v2667 = vrot.slane %v2666, 4
      %v2669 = vshll.u32 %v2501, 16
      %v2671 = vrot.slane %v2669, 5
      %v2672 = vsel %vm583, %v2667, %v2671
      %v2674 = vshrl.u32 %v2502, 16
      %v2676 = vrot.slane %v2674, 4
      %v2677 = vshll.u32 %v2502, 16
      %v2679 = vrot.slane %v2677, 5
      %v2680 = vor.u32 %v2676, %v2679
      %v2681 = vrot.slane %v2680, 4
      %v2683 = vshll.u32 %v2503, 16
      %v2685 = vrot.slane %v2683, 5
      %v2686 = vsel %vm583, %v2681, %v2685
      %v2687 = vshrl.u32 %v2503, 16
      %v2689 = vrot.slane %v2687, 4
      %v2690 = vor.u32 %v2689, %v2685
      %v2691 = vrot.slane %v2690, 4
      %v2693 = vshll.u32 %v2504, 16
      %v2695 = vrot.slane %v2693, 5
      %v2696 = vsel %vm583, %v2691, %v2695
      %v2697 = vld [vmem:[#allocation2] sm:$0xff]
      %v2698 = vld [vmem:[#allocation2 + $0x8] sm:$0xff]
      %v2699 = vld [vmem:[#allocation2 + $0x10] sm:$0xff]
      %v2700 = vld [vmem:[#allocation2 + $0x18] sm:$0xff]
      %v2701 = vld [vmem:[#allocation2 + $0x20] sm:$0xff]
      %v2702 = vld [vmem:[#allocation2 + $0x28] sm:$0xff]
      %v2703 = vld [vmem:[#allocation2 + $0x30] sm:$0xff]
      %v2704 = vld [vmem:[#allocation2 + $0x38] sm:$0xff]
      %v2705 = vld [vmem:[#allocation2 + $0x40] sm:$0xff]
      %v2706 = vld [vmem:[#allocation2 + $0x48] sm:$0xff]
      %v2707 = vld [vmem:[#allocation2 + $0x50] sm:$0xff]
      %v2708 = vld [vmem:[#allocation2 + $0x58] sm:$0xff]
      %v2709 = vld [vmem:[#allocation2 + $0x60] sm:$0xff]
      %v2710 = vld [vmem:[#allocation2 + $0x68] sm:$0xff]
      %v2711 = vld [vmem:[#allocation2 + $0x70] sm:$0xff]
      %v2712 = vld [vmem:[#allocation2 + $0x78] sm:$0xff]
      %s2713 = scalar_lea.vmem %s290, 56
      %v2714 = vld [vmem:[%s2713] sm:$0xf]
      %v2715 = vld [vmem:[%s2713 + $0x4] sm:$0xf]
      %v2716 = vunpack.c.l.b16 %v2518
      %v2717 = vunpack.c.l.b16 %v2528
      %v2718 = vunpack.c.l.b16 %v2542
      %v2719 = vunpack.c.l.b16 %v2552
      %v2720 = vunpack.c.l.b16 %v2566
      %v2721 = vunpack.c.l.b16 %v2576
      %v2722 = vunpack.c.l.b16 %v2590
      %v2723 = vunpack.c.l.b16 %v2600
      %v2724 = vunpack.c.l.b16 %v2614
      %v2725 = vunpack.c.l.b16 %v2624
      %v2726 = vunpack.c.l.b16 %v2638
      %v2727 = vunpack.c.l.b16 %v2648
      %v2728 = vunpack.c.l.b16 %v2662
      %v2729 = vunpack.c.l.b16 %v2672
      %v2730 = vunpack.c.l.b16 %v2686
      %v2731 = vunpack.c.l.b16 %v2696
      %v2732 = vpack.c.b16 %v2717, %v2716
      %v2733 = vpack.c.b16 %v2719, %v2718
      %v2734 = vpack.c.b16 %v2721, %v2720
      %v2735 = vpack.c.b16 %v2723, %v2722
      %v2736 = vpack.c.b16 %v2725, %v2724
      %v2737 = vpack.c.b16 %v2727, %v2726
      %v2738 = vpack.c.b16 %v2729, %v2728
      %v2739 = vpack.c.b16 %v2731, %v2730
      %v2742 = vunpack.c.l.b16 %v2714
      %v2743 = vunpack.c.l.b16 %v2715
      %v2744 = vpack.c.b16 %v2743, %v2742
      %v2747 = vsel %vm403, %v2732, 0
      %v2750 = vsel %vm403, %v2733, 0
      %v2753 = vsel %vm403, %v2734, 0
      %v2756 = vsel %vm403, %v2735, 0
      %v2759 = vsel %vm403, %v2736, 0
      %v2762 = vsel %vm403, %v2737, 0
      %v2765 = vsel %vm403, %v2738, 0
      %v2768 = vsel %vm403, %v2739, 0
      %2770 = vmatprep.subr.bf16.mxu0 0
      %2771 = vmatpush1.bf16.msra.mxu0 0
      %2772 = vmatprep.subr.bf16.mxu0 0
      %2773 = vmatpush1.bf16.msra.mxu0 0
      %2774 = vmatprep.subr.bf16.mxu0 0
      %2775 = vmatpush1.bf16.msra.mxu0 0
      %2776 = vmatprep.subr.bf16.mxu0 0
      %2777 = vmatpush1.bf16.msra.mxu0 0
      %2778 = vmatprep.subr.bf16.mxu0 0
      %2779 = vmatpush1.bf16.msra.mxu0 0
      %2780 = vmatprep.subr.bf16.mxu0 0
      %2781 = vmatpush1.bf16.msra.mxu0 0
      %2782 = vmatprep.subr.bf16.mxu0 0
      %2783 = vmatpush1.bf16.msra.mxu0 0
      %2784 = vmatprep.subr.bf16.mxu0 0
      %2785 = vmatpush1.bf16.msra.mxu0 %v2744
      %2786 = vmatprep.subr.bf16.mxu0 0
      %2787 = vmatpush2.bf16.msra.mxu0 0
      %2788 = vmatprep.subr.bf16.mxu0 0
      %2789 = vmatpush2.bf16.msra.mxu0 0
      %2790 = vmatprep.subr.bf16.mxu0 0
      %2791 = vmatpush2.bf16.msra.mxu0 0
      %2792 = vmatprep.subr.bf16.mxu0 0
      %2793 = vmatpush2.bf16.msra.mxu0 0
      %2794 = vmatprep.subr.bf16.mxu0 0
      %2795 = vmatpush2.bf16.msra.mxu0 0
      %2796 = vmatprep.subr.bf16.mxu0 0
      %2797 = vmatpush2.bf16.msra.mxu0 0
      %2798 = vmatprep.subr.bf16.mxu0 0
      %2799 = vmatpush2.bf16.msra.mxu0 0
      %2800 = vmatprep.subr.bf16.mxu0 0
      %2801 = vmatpush2.bf16.msra.mxu0 0
      %2802 = vmatprep.mubr.bf16.mxu0 0
      %2803 = vmatmul.mubr.bf16.gmra.mxu0 %v2747
      %v2804 = vpop.f32.mrf.mxu0
      %v2805 = vadd.f32 0.0, %v2804
      %v2806 = vpop.f32.mrf.mxu0
      %v2807 = vpop.f32.mrf.mxu0
      %v2808 = vadd.f32 0.0, %v2807
      %v2809 = vpop.f32.mrf.mxu0
      %2810 = vmatprep.mubr.bf16.mxu0 0
      %2811 = vmatmul.mubr.bf16.gmra.mxu0 %v2750
      %v2812 = vpop.f32.mrf.mxu0
      %v2813 = vadd.f32 0.0, %v2812
      %v2814 = vpop.f32.mrf.mxu0
      %v2815 = vpop.f32.mrf.mxu0
      %v2816 = vadd.f32 0.0, %v2815
      %v2817 = vpop.f32.mrf.mxu0
      %2818 = vmatprep.mubr.bf16.mxu0 0
      %2819 = vmatmul.mubr.bf16.gmra.mxu0 %v2753
      %v2820 = vpop.f32.mrf.mxu0
      %v2821 = vadd.f32 0.0, %v2820
      %v2822 = vpop.f32.mrf.mxu0
      %v2823 = vpop.f32.mrf.mxu0
      %v2824 = vadd.f32 0.0, %v2823
      %v2825 = vpop.f32.mrf.mxu0
      %2826 = vmatprep.mubr.bf16.mxu0 0
      %2827 = vmatmul.mubr.bf16.gmra.mxu0 %v2756
      %v2828 = vpop.f32.mrf.mxu0
      %v2829 = vadd.f32 0.0, %v2828
      %v2830 = vpop.f32.mrf.mxu0
      %v2831 = vpop.f32.mrf.mxu0
      %v2832 = vadd.f32 0.0, %v2831
      %v2833 = vpop.f32.mrf.mxu0
      %2834 = vmatprep.mubr.bf16.mxu0 0
      %2835 = vmatmul.mubr.bf16.gmra.mxu0 %v2759
      %v2836 = vpop.f32.mrf.mxu0
      %v2837 = vadd.f32 0.0, %v2836
      %v2838 = vpop.f32.mrf.mxu0
      %v2839 = vpop.f32.mrf.mxu0
      %v2840 = vadd.f32 0.0, %v2839
      %v2841 = vpop.f32.mrf.mxu0
      %2842 = vmatprep.mubr.bf16.mxu0 0
      %2843 = vmatmul.mubr.bf16.gmra.mxu0 %v2762
      %v2844 = vpop.f32.mrf.mxu0
      %v2845 = vadd.f32 0.0, %v2844
      %v2846 = vpop.f32.mrf.mxu0
      %v2847 = vpop.f32.mrf.mxu0
      %v2848 = vadd.f32 0.0, %v2847
      %v2849 = vpop.f32.mrf.mxu0
      %2850 = vmatprep.mubr.bf16.mxu0 0
      %2851 = vmatmul.mubr.bf16.gmra.mxu0 %v2765
      %v2852 = vpop.f32.mrf.mxu0
      %v2853 = vadd.f32 0.0, %v2852
      %v2854 = vpop.f32.mrf.mxu0
      %v2855 = vpop.f32.mrf.mxu0
      %v2856 = vadd.f32 0.0, %v2855
      %v2857 = vpop.f32.mrf.mxu0
      %2858 = vmatprep.mubr.bf16.mxu0 0
      %2859 = vmatmul.mubr.bf16.gmra.mxu0 %v2768
      %v2860 = vpop.f32.mrf.mxu0
      %v2861 = vadd.f32 0.0, %v2860
      %v2862 = vpop.f32.mrf.mxu0
      %v2863 = vpop.f32.mrf.mxu0
      %v2864 = vadd.f32 0.0, %v2863
      %v2865 = vpop.f32.mrf.mxu0
      %2866 = vdwg.mxu0
      %v2867 = vadd.f32 %v2697, %v2805
      %v2868 = vadd.f32 %v2698, %v2808
      %v2869 = vadd.f32 %v2699, %v2813
      %v2870 = vadd.f32 %v2700, %v2816
      %v2871 = vadd.f32 %v2701, %v2821
      %v2872 = vadd.f32 %v2702, %v2824
      %v2873 = vadd.f32 %v2703, %v2829
      %v2874 = vadd.f32 %v2704, %v2832
      %v2875 = vadd.f32 %v2705, %v2837
      %v2876 = vadd.f32 %v2706, %v2840
      %v2877 = vadd.f32 %v2707, %v2845
      %v2878 = vadd.f32 %v2708, %v2848
      %v2879 = vadd.f32 %v2709, %v2853
      %v2880 = vadd.f32 %v2710, %v2856
      %v2881 = vadd.f32 %v2711, %v2861
      %v2882 = vadd.f32 %v2712, %v2864
      %2883 = vst [vmem:[#allocation2] sm:$0xff] %v2867
      %2884 = vst [vmem:[#allocation2 + $0x8] sm:$0xff] %v2868
      %2885 = vst [vmem:[#allocation2 + $0x10] sm:$0xff] %v2869
      %2886 = vst [vmem:[#allocation2 + $0x18] sm:$0xff] %v2870
      %2887 = vst [vmem:[#allocation2 + $0x20] sm:$0xff] %v2871
      %2888 = vst [vmem:[#allocation2 + $0x28] sm:$0xff] %v2872
      %2889 = vst [vmem:[#allocation2 + $0x30] sm:$0xff] %v2873
      %2890 = vst [vmem:[#allocation2 + $0x38] sm:$0xff] %v2874
      %2891 = vst [vmem:[#allocation2 + $0x40] sm:$0xff] %v2875
      %2892 = vst [vmem:[#allocation2 + $0x48] sm:$0xff] %v2876
      %2893 = vst [vmem:[#allocation2 + $0x50] sm:$0xff] %v2877
      %2894 = vst [vmem:[#allocation2 + $0x58] sm:$0xff] %v2878
      %2895 = vst [vmem:[#allocation2 + $0x60] sm:$0xff] %v2879
      %2896 = vst [vmem:[#allocation2 + $0x68] sm:$0xff] %v2880
      %2897 = vst [vmem:[#allocation2 + $0x70] sm:$0xff] %v2881
      %2898 = vst [vmem:[#allocation2 + $0x78] sm:$0xff] %v2882
      %v2899 = vld [vmem:[%s2246] sm:$0xe]
      %v2900 = vld [vmem:[%s2246 + $0x4] sm:$0xf]
      %v2901 = vld [vmem:[%s2246 + $0x8] sm:$0x1]
      %v2902 = vld [vmem:[%s2246 + $0xc] sm:$0xe]
      %v2903 = vld [vmem:[%s2246 + $0x10] sm:$0xf]
      %v2904 = vld [vmem:[%s2246 + $0x14] sm:$0x1]
      %v2905 = vld [vmem:[%s2246 + $0x18] sm:$0xe]
      %v2906 = vld [vmem:[%s2246 + $0x1c] sm:$0xf]
      %v2907 = vld [vmem:[%s2246 + $0x20] sm:$0x1]
      %v2908 = vld [vmem:[%s2246 + $0x24] sm:$0xe]
      %v2909 = vld [vmem:[%s2246 + $0x28] sm:$0xf]
      %v2910 = vld [vmem:[%s2246 + $0x2c] sm:$0x1]
      %v2911 = vld [vmem:[%s2246 + $0x30] sm:$0xe]
      %v2912 = vld [vmem:[%s2246 + $0x34] sm:$0xf]
      %v2913 = vld [vmem:[%s2246 + $0x38] sm:$0x1]
      %v2914 = vld [vmem:[%s2246 + $0x3c] sm:$0xe]
      %v2915 = vld [vmem:[%s2246 + $0x40] sm:$0xf]
      %v2916 = vld [vmem:[%s2246 + $0x44] sm:$0x1]
      %v2917 = vld [vmem:[%s2246 + $0x48] sm:$0xe]
      %v2918 = vld [vmem:[%s2246 + $0x4c] sm:$0xf]
      %v2919 = vld [vmem:[%s2246 + $0x50] sm:$0x1]
      %v2920 = vld [vmem:[%s2246 + $0x54] sm:$0xe]
      %v2921 = vld [vmem:[%s2246 + $0x58] sm:$0xf]
      %v2922 = vld [vmem:[%s2246 + $0x5c] sm:$0x1]
      %v2947 = vrot.slane %v2899, 5
      %v2948 = vrot.slane %v2947, 4
      %v2949 = vrot.slane %v2900, 5
      %v2950 = vsel %vm1028, %v2948, %v2949
      %v2951 = vrot.slane %v2949, 4
      %v2952 = vrot.slane %v2901, 5
      %v2953 = vsel %vm1028, %v2951, %v2952
      %v2954 = vrot.slane %v2902, 5
      %v2955 = vrot.slane %v2954, 4
      %v2956 = vrot.slane %v2903, 5
      %v2957 = vsel %vm1028, %v2955, %v2956
      %v2958 = vrot.slane %v2956, 4
      %v2959 = vrot.slane %v2904, 5
      %v2960 = vsel %vm1028, %v2958, %v2959
      %v2961 = vrot.slane %v2905, 5
      %v2962 = vrot.slane %v2961, 4
      %v2963 = vrot.slane %v2906, 5
      %v2964 = vsel %vm1028, %v2962, %v2963
      %v2965 = vrot.slane %v2963, 4
      %v2966 = vrot.slane %v2907, 5
      %v2967 = vsel %vm1028, %v2965, %v2966
      %v2968 = vrot.slane %v2908, 5
      %v2969 = vrot.slane %v2968, 4
      %v2970 = vrot.slane %v2909, 5
      %v2971 = vsel %vm1028, %v2969, %v2970
      %v2972 = vrot.slane %v2970, 4
      %v2973 = vrot.slane %v2910, 5
      %v2974 = vsel %vm1028, %v2972, %v2973
      %v2975 = vrot.slane %v2911, 5
      %v2976 = vrot.slane %v2975, 4
      %v2977 = vrot.slane %v2912, 5
      %v2978 = vsel %vm1028, %v2976, %v2977
      %v2979 = vrot.slane %v2977, 4
      %v2980 = vrot.slane %v2913, 5
      %v2981 = vsel %vm1028, %v2979, %v2980
      %v2982 = vrot.slane %v2914, 5
      %v2983 = vrot.slane %v2982, 4
      %v2984 = vrot.slane %v2915, 5
      %v2985 = vsel %vm1028, %v2983, %v2984
      %v2986 = vrot.slane %v2984, 4
      %v2987 = vrot.slane %v2916, 5
      %v2988 = vsel %vm1028, %v2986, %v2987
      %v2989 = vrot.slane %v2917, 5
      %v2990 = vrot.slane %v2989, 4
      %v2991 = vrot.slane %v2918, 5
      %v2992 = vsel %vm1028, %v2990, %v2991
      %v2993 = vrot.slane %v2991, 4
      %v2994 = vrot.slane %v2919, 5
      %v2995 = vsel %vm1028, %v2993, %v2994
      %v2996 = vrot.slane %v2920, 5
      %v2997 = vrot.slane %v2996, 4
      %v2998 = vrot.slane %v2921, 5
      %v2999 = vsel %vm1028, %v2997, %v2998
      %v3000 = vrot.slane %v2998, 4
      %v3001 = vrot.slane %v2922, 5
      %v3002 = vsel %vm1028, %v3000, %v3001
      %v3003 = vld [vmem:[#allocation2] sm:$0xff]
      %v3004 = vld [vmem:[#allocation2 + $0x8] sm:$0xff]
      %v3005 = vld [vmem:[#allocation2 + $0x10] sm:$0xff]
      %v3006 = vld [vmem:[#allocation2 + $0x18] sm:$0xff]
      %v3007 = vld [vmem:[#allocation2 + $0x20] sm:$0xff]
      %v3008 = vld [vmem:[#allocation2 + $0x28] sm:$0xff]
      %v3009 = vld [vmem:[#allocation2 + $0x30] sm:$0xff]
      %v3010 = vld [vmem:[#allocation2 + $0x38] sm:$0xff]
      %v3011 = vld [vmem:[#allocation2 + $0x40] sm:$0xff]
      %v3012 = vld [vmem:[#allocation2 + $0x48] sm:$0xff]
      %v3013 = vld [vmem:[#allocation2 + $0x50] sm:$0xff]
      %v3014 = vld [vmem:[#allocation2 + $0x58] sm:$0xff]
      %v3015 = vld [vmem:[#allocation2 + $0x60] sm:$0xff]
      %v3016 = vld [vmem:[#allocation2 + $0x68] sm:$0xff]
      %v3017 = vld [vmem:[#allocation2 + $0x70] sm:$0xff]
      %v3018 = vld [vmem:[#allocation2 + $0x78] sm:$0xff]
      %s3019 = scalar_lea.vmem %s290, 64
      %v3020 = vld [vmem:[%s3019] sm:$0xf]
      %v3021 = vld [vmem:[%s3019 + $0x4] sm:$0xf]
      %v3022 = vunpack.c.l.b16 %v2950
      %v3023 = vunpack.c.l.b16 %v2953
      %v3024 = vunpack.c.l.b16 %v2957
      %v3025 = vunpack.c.l.b16 %v2960
      %v3026 = vunpack.c.l.b16 %v2964
      %v3027 = vunpack.c.l.b16 %v2967
      %v3028 = vunpack.c.l.b16 %v2971
      %v3029 = vunpack.c.l.b16 %v2974
      %v3030 = vunpack.c.l.b16 %v2978
      %v3031 = vunpack.c.l.b16 %v2981
      %v3032 = vunpack.c.l.b16 %v2985
      %v3033 = vunpack.c.l.b16 %v2988
      %v3034 = vunpack.c.l.b16 %v2992
      %v3035 = vunpack.c.l.b16 %v2995
      %v3036 = vunpack.c.l.b16 %v2999
      %v3037 = vunpack.c.l.b16 %v3002
      %v3038 = vpack.c.b16 %v3023, %v3022
      %v3039 = vpack.c.b16 %v3025, %v3024
      %v3040 = vpack.c.b16 %v3027, %v3026
      %v3041 = vpack.c.b16 %v3029, %v3028
      %v3042 = vpack.c.b16 %v3031, %v3030
      %v3043 = vpack.c.b16 %v3033, %v3032
      %v3044 = vpack.c.b16 %v3035, %v3034
      %v3045 = vpack.c.b16 %v3037, %v3036
      %v3048 = vunpack.c.l.b16 %v3020
      %v3049 = vunpack.c.l.b16 %v3021
      %v3050 = vpack.c.b16 %v3049, %v3048
      %v3053 = vsel %vm403, %v3038, 0
      %v3056 = vsel %vm403, %v3039, 0
      %v3059 = vsel %vm403, %v3040, 0
      %v3062 = vsel %vm403, %v3041, 0
      %v3065 = vsel %vm403, %v3042, 0
      %v3068 = vsel %vm403, %v3043, 0
      %v3071 = vsel %vm403, %v3044, 0
      %v3074 = vsel %vm403, %v3045, 0
      %3076 = vmatprep.subr.bf16.mxu0 0
      %3077 = vmatpush1.bf16.msra.mxu0 0
      %3078 = vmatprep.subr.bf16.mxu0 0
      %3079 = vmatpush1.bf16.msra.mxu0 0
      %3080 = vmatprep.subr.bf16.mxu0 0
      %3081 = vmatpush1.bf16.msra.mxu0 0
      %3082 = vmatprep.subr.bf16.mxu0 0
      %3083 = vmatpush1.bf16.msra.mxu0 0
      %3084 = vmatprep.subr.bf16.mxu0 0
      %3085 = vmatpush1.bf16.msra.mxu0 0
      %3086 = vmatprep.subr.bf16.mxu0 0
      %3087 = vmatpush1.bf16.msra.mxu0 0
      %3088 = vmatprep.subr.bf16.mxu0 0
      %3089 = vmatpush1.bf16.msra.mxu0 0
      %3090 = vmatprep.subr.bf16.mxu0 0
      %3091 = vmatpush1.bf16.msra.mxu0 %v3050
      %3092 = vmatprep.subr.bf16.mxu0 0
      %3093 = vmatpush2.bf16.msra.mxu0 0
      %3094 = vmatprep.subr.bf16.mxu0 0
      %3095 = vmatpush2.bf16.msra.mxu0 0
      %3096 = vmatprep.subr.bf16.mxu0 0
      %3097 = vmatpush2.bf16.msra.mxu0 0
      %3098 = vmatprep.subr.bf16.mxu0 0
      %3099 = vmatpush2.bf16.msra.mxu0 0
      %3100 = vmatprep.subr.bf16.mxu0 0
      %3101 = vmatpush2.bf16.msra.mxu0 0
      %3102 = vmatprep.subr.bf16.mxu0 0
      %3103 = vmatpush2.bf16.msra.mxu0 0
      %3104 = vmatprep.subr.bf16.mxu0 0
      %3105 = vmatpush2.bf16.msra.mxu0 0
      %3106 = vmatprep.subr.bf16.mxu0 0
      %3107 = vmatpush2.bf16.msra.mxu0 0
      %3108 = vmatprep.mubr.bf16.mxu0 0
      %3109 = vmatmul.mubr.bf16.gmra.mxu0 %v3053
      %v3110 = vpop.f32.mrf.mxu0
      %v3111 = vadd.f32 0.0, %v3110
      %v3112 = vpop.f32.mrf.mxu0
      %v3113 = vpop.f32.mrf.mxu0
      %v3114 = vadd.f32 0.0, %v3113
      %v3115 = vpop.f32.mrf.mxu0
      %3116 = vmatprep.mubr.bf16.mxu0 0
      %3117 = vmatmul.mubr.bf16.gmra.mxu0 %v3056
      %v3118 = vpop.f32.mrf.mxu0
      %v3119 = vadd.f32 0.0, %v3118
      %v3120 = vpop.f32.mrf.mxu0
      %v3121 = vpop.f32.mrf.mxu0
      %v3122 = vadd.f32 0.0, %v3121
      %v3123 = vpop.f32.mrf.mxu0
      %3124 = vmatprep.mubr.bf16.mxu0 0
      %3125 = vmatmul.mubr.bf16.gmra.mxu0 %v3059
      %v3126 = vpop.f32.mrf.mxu0
      %v3127 = vadd.f32 0.0, %v3126
      %v3128 = vpop.f32.mrf.mxu0
      %v3129 = vpop.f32.mrf.mxu0
      %v3130 = vadd.f32 0.0, %v3129
      %v3131 = vpop.f32.mrf.mxu0
      %3132 = vmatprep.mubr.bf16.mxu0 0
      %3133 = vmatmul.mubr.bf16.gmra.mxu0 %v3062
      %v3134 = vpop.f32.mrf.mxu0
      %v3135 = vadd.f32 0.0, %v3134
      %v3136 = vpop.f32.mrf.mxu0
      %v3137 = vpop.f32.mrf.mxu0
      %v3138 = vadd.f32 0.0, %v3137
      %v3139 = vpop.f32.mrf.mxu0
      %3140 = vmatprep.mubr.bf16.mxu0 0
      %3141 = vmatmul.mubr.bf16.gmra.mxu0 %v3065
      %v3142 = vpop.f32.mrf.mxu0
      %v3143 = vadd.f32 0.0, %v3142
      %v3144 = vpop.f32.mrf.mxu0
      %v3145 = vpop.f32.mrf.mxu0
      %v3146 = vadd.f32 0.0, %v3145
      %v3147 = vpop.f32.mrf.mxu0
      %3148 = vmatprep.mubr.bf16.mxu0 0
      %3149 = vmatmul.mubr.bf16.gmra.mxu0 %v3068
      %v3150 = vpop.f32.mrf.mxu0
      %v3151 = vadd.f32 0.0, %v3150
      %v3152 = vpop.f32.mrf.mxu0
      %v3153 = vpop.f32.mrf.mxu0
      %v3154 = vadd.f32 0.0, %v3153
      %v3155 = vpop.f32.mrf.mxu0
      %3156 = vmatprep.mubr.bf16.mxu0 0
      %3157 = vmatmul.mubr.bf16.gmra.mxu0 %v3071
      %v3158 = vpop.f32.mrf.mxu0
      %v3159 = vadd.f32 0.0, %v3158
      %v3160 = vpop.f32.mrf.mxu0
      %v3161 = vpop.f32.mrf.mxu0
      %v3162 = vadd.f32 0.0, %v3161
      %v3163 = vpop.f32.mrf.mxu0
      %3164 = vmatprep.mubr.bf16.mxu0 0
      %3165 = vmatmul.mubr.bf16.gmra.mxu0 %v3074
      %v3166 = vpop.f32.mrf.mxu0
      %v3167 = vadd.f32 0.0, %v3166
      %v3168 = vpop.f32.mrf.mxu0
      %v3169 = vpop.f32.mrf.mxu0
      %v3170 = vadd.f32 0.0, %v3169
      %v3171 = vpop.f32.mrf.mxu0
      %3172 = vdwg.mxu0
      %v3173 = vadd.f32 %v3003, %v3111
      %v3174 = vadd.f32 %v3004, %v3114
      %v3175 = vadd.f32 %v3005, %v3119
      %v3176 = vadd.f32 %v3006, %v3122
      %v3177 = vadd.f32 %v3007, %v3127
      %v3178 = vadd.f32 %v3008, %v3130
      %v3179 = vadd.f32 %v3009, %v3135
      %v3180 = vadd.f32 %v3010, %v3138
      %v3181 = vadd.f32 %v3011, %v3143
      %v3182 = vadd.f32 %v3012, %v3146
      %v3183 = vadd.f32 %v3013, %v3151
      %v3184 = vadd.f32 %v3014, %v3154
      %v3185 = vadd.f32 %v3015, %v3159
      %v3186 = vadd.f32 %v3016, %v3162
      %v3187 = vadd.f32 %v3017, %v3167
      %v3188 = vadd.f32 %v3018, %v3170
      %3189 = vst [vmem:[#allocation2] sm:$0xff] %v3173
      %3190 = vst [vmem:[#allocation2 + $0x8] sm:$0xff] %v3174
      %3191 = vst [vmem:[#allocation2 + $0x10] sm:$0xff] %v3175
      %3192 = vst [vmem:[#allocation2 + $0x18] sm:$0xff] %v3176
      %3193 = vst [vmem:[#allocation2 + $0x20] sm:$0xff] %v3177
      %3194 = vst [vmem:[#allocation2 + $0x28] sm:$0xff] %v3178
      %3195 = vst [vmem:[#allocation2 + $0x30] sm:$0xff] %v3179
      %3196 = vst [vmem:[#allocation2 + $0x38] sm:$0xff] %v3180
      %3197 = vst [vmem:[#allocation2 + $0x40] sm:$0xff] %v3181
      %3198 = vst [vmem:[#allocation2 + $0x48] sm:$0xff] %v3182
      %3199 = vst [vmem:[#allocation2 + $0x50] sm:$0xff] %v3183
      %3200 = vst [vmem:[#allocation2 + $0x58] sm:$0xff] %v3184
      %3201 = vst [vmem:[#allocation2 + $0x60] sm:$0xff] %v3185
      %3202 = vst [vmem:[#allocation2 + $0x68] sm:$0xff] %v3186
      %3203 = vst [vmem:[#allocation2 + $0x70] sm:$0xff] %v3187
      %3204 = vst [vmem:[#allocation2 + $0x78] sm:$0xff] %v3188
      // Predicated region
      $region45: #{tpu_custom_call.1} parent=39 // pred_check
        %p3205 = pneg %p303
      $region46: #{tpu_custom_call.1} parent=39 // pred_check_branch
        %3207 = sbr.rel (%p3205) target = $region48
      $region47: #{tpu_custom_call.1} parent=39 // pred_region
        %v3208 = vld [vmem:[#allocation2] sm:$0xff]
        %v3209 = vld [vmem:[#allocation2 + $0x8] sm:$0xff]
        %v3210 = vld [vmem:[#allocation2 + $0x10] sm:$0xff]
        %v3211 = vld [vmem:[#allocation2 + $0x18] sm:$0xff]
        %v3212 = vld [vmem:[#allocation2 + $0x20] sm:$0xff]
        %v3213 = vld [vmem:[#allocation2 + $0x28] sm:$0xff]
        %v3214 = vld [vmem:[#allocation2 + $0x30] sm:$0xff]
        %v3215 = vld [vmem:[#allocation2 + $0x38] sm:$0xff]
        %v3216 = vld [vmem:[#allocation2 + $0x40] sm:$0xff]
        %v3217 = vld [vmem:[#allocation2 + $0x48] sm:$0xff]
        %v3218 = vld [vmem:[#allocation2 + $0x50] sm:$0xff]
        %v3219 = vld [vmem:[#allocation2 + $0x58] sm:$0xff]
        %v3220 = vld [vmem:[#allocation2 + $0x60] sm:$0xff]
        %v3221 = vld [vmem:[#allocation2 + $0x68] sm:$0xff]
        %v3222 = vld [vmem:[#allocation2 + $0x70] sm:$0xff]
        %v3223 = vld [vmem:[#allocation2 + $0x78] sm:$0xff]
        %v3224 = vld [vmem:[%s2] sm:$0x1]
        %v3226 = vlaneseq
        %v3227 = vshrl.u32 %v3226, 7
        %v3228 = vsub.s32 0, %v3227
        %v3229 = vrot.slane %v3224, %v3228
        %v3231 = vadd.f32 %v3208, %v3229
        %v3232 = vadd.f32 %v3209, %v3229
        %v3233 = vadd.f32 %v3210, %v3229
        %v3234 = vadd.f32 %v3211, %v3229
        %v3235 = vadd.f32 %v3212, %v3229
        %v3236 = vadd.f32 %v3213, %v3229
        %v3237 = vadd.f32 %v3214, %v3229
        %v3238 = vadd.f32 %v3215, %v3229
        %v3239 = vadd.f32 %v3216, %v3229
        %v3240 = vadd.f32 %v3217, %v3229
        %v3241 = vadd.f32 %v3218, %v3229
        %v3242 = vadd.f32 %v3219, %v3229
        %v3243 = vadd.f32 %v3220, %v3229
        %v3244 = vadd.f32 %v3221, %v3229
        %v3245 = vadd.f32 %v3222, %v3229
        %v3246 = vadd.f32 %v3223, %v3229
        %v3247 = vmax.f32 %v3231, 0.0
        %v3248 = vmax.f32 %v3232, 0.0
        %v3249 = vmax.f32 %v3233, 0.0
        %v3250 = vmax.f32 %v3234, 0.0
        %v3251 = vmax.f32 %v3235, 0.0
        %v3252 = vmax.f32 %v3236, 0.0
        %v3253 = vmax.f32 %v3237, 0.0
        %v3254 = vmax.f32 %v3238, 0.0
        %v3255 = vmax.f32 %v3239, 0.0
        %v3256 = vmax.f32 %v3240, 0.0
        %v3257 = vmax.f32 %v3241, 0.0
        %v3258 = vmax.f32 %v3242, 0.0
        %v3259 = vmax.f32 %v3243, 0.0
        %v3260 = vmax.f32 %v3244, 0.0
        %v3261 = vmax.f32 %v3245, 0.0
        %v3262 = vmax.f32 %v3246, 0.0
        %v3263 = vpack.c.bf16 %v3248, %v3247
        %v3264 = vpack.c.bf16 %v3250, %v3249
        %v3265 = vpack.c.bf16 %v3252, %v3251
        %v3266 = vpack.c.bf16 %v3254, %v3253
        %v3267 = vpack.c.bf16 %v3256, %v3255
        %v3268 = vpack.c.bf16 %v3258, %v3257
        %v3269 = vpack.c.bf16 %v3260, %v3259
        %v3270 = vpack.c.bf16 %v3262, %v3261
        %v3271 = vld [vmem:[%s3] sm:$0xf]
        %v3272 = vld [vmem:[%s3 + $0x4] sm:$0xf]
        %v3273 = vld [vmem:[%s3 + $0x8] sm:$0xf]
        %v3274 = vld [vmem:[%s3 + $0xc] sm:$0xf]
        %v3275 = vld [vmem:[%s3 + $0x10] sm:$0xf]
        %v3276 = vld [vmem:[%s3 + $0x14] sm:$0xf]
        %v3277 = vld [vmem:[%s3 + $0x18] sm:$0xf]
        %v3278 = vld [vmem:[%s3 + $0x1c] sm:$0xf]
        %v3279 = vld [vmem:[%s3 + $0x20] sm:$0xf]
        %v3280 = vld [vmem:[%s3 + $0x24] sm:$0xf]
        %v3281 = vld [vmem:[%s3 + $0x28] sm:$0xf]
        %v3282 = vld [vmem:[%s3 + $0x2c] sm:$0xf]
        %v3283 = vld [vmem:[%s3 + $0x30] sm:$0xf]
        %v3284 = vld [vmem:[%s3 + $0x34] sm:$0xf]
        %v3285 = vld [vmem:[%s3 + $0x38] sm:$0xf]
        %v3286 = vld [vmem:[%s3 + $0x3c] sm:$0xf]
        %v3287 = vld [vmem:[%s4] sm:$0x1]
        %v3289 = vlaneseq
        %v3290 = vshrl.u32 %v3289, 7
        %v3291 = vsub.s32 0, %v3290
        %v3292 = vrot.slane %v3287, %v3291
        %v3310 = vunpack.c.l.b16 %v3271
        %v3311 = vunpack.c.l.b16 %v3272
        %v3312 = vunpack.c.l.b16 %v3273
        %v3313 = vunpack.c.l.b16 %v3274
        %v3314 = vunpack.c.l.b16 %v3275
        %v3315 = vunpack.c.l.b16 %v3276
        %v3316 = vunpack.c.l.b16 %v3277
        %v3317 = vunpack.c.l.b16 %v3278
        %v3318 = vunpack.c.l.b16 %v3279
        %v3319 = vunpack.c.l.b16 %v3280
        %v3320 = vunpack.c.l.b16 %v3281
        %v3321 = vunpack.c.l.b16 %v3282
        %v3322 = vunpack.c.l.b16 %v3283
        %v3323 = vunpack.c.l.b16 %v3284
        %v3324 = vunpack.c.l.b16 %v3285
        %v3325 = vunpack.c.l.b16 %v3286
        %v3326 = vpack.c.b16 %v3311, %v3310
        %v3327 = vpack.c.b16 %v3313, %v3312
        %v3328 = vpack.c.b16 %v3315, %v3314
        %v3329 = vpack.c.b16 %v3317, %v3316
        %v3330 = vpack.c.b16 %v3319, %v3318
        %v3331 = vpack.c.b16 %v3321, %v3320
        %v3332 = vpack.c.b16 %v3323, %v3322
        %v3333 = vpack.c.b16 %v3325, %v3324
        %3342 = vmatprep.subr.bf16.mxu0 0
        %3343 = vmatpush1.bf16.msra.mxu0 %v3333
        %3344 = vmatprep.subr.bf16.mxu0 0
        %3345 = vmatpush1.bf16.msra.mxu0 %v3332
        %3346 = vmatprep.subr.bf16.mxu0 0
        %3347 = vmatpush1.bf16.msra.mxu0 %v3331
        %3348 = vmatprep.subr.bf16.mxu0 0
        %3349 = vmatpush1.bf16.msra.mxu0 %v3330
        %3350 = vmatprep.subr.bf16.mxu0 0
        %3351 = vmatpush1.bf16.msra.mxu0 %v3329
        %3352 = vmatprep.subr.bf16.mxu0 0
        %3353 = vmatpush1.bf16.msra.mxu0 %v3328
        %3354 = vmatprep.subr.bf16.mxu0 0
        %3355 = vmatpush1.bf16.msra.mxu0 %v3327
        %3356 = vmatprep.subr.bf16.mxu0 0
        %3357 = vmatpush1.bf16.msra.mxu0 %v3326
        %3358 = vmatprep.subr.bf16.mxu0 0
        %3359 = vmatpush2.bf16.msra.mxu0 0
        %3360 = vmatprep.subr.bf16.mxu0 0
        %3361 = vmatpush2.bf16.msra.mxu0 0
        %3362 = vmatprep.subr.bf16.mxu0 0
        %3363 = vmatpush2.bf16.msra.mxu0 0
        %3364 = vmatprep.subr.bf16.mxu0 0
        %3365 = vmatpush2.bf16.msra.mxu0 0
        %3366 = vmatprep.subr.bf16.mxu0 0
        %3367 = vmatpush2.bf16.msra.mxu0 0
        %3368 = vmatprep.subr.bf16.mxu0 0
        %3369 = vmatpush2.bf16.msra.mxu0 0
        %3370 = vmatprep.subr.bf16.mxu0 0
        %3371 = vmatpush2.bf16.msra.mxu0 0
        %3372 = vmatprep.subr.bf16.mxu0 0
        %3373 = vmatpush2.bf16.msra.mxu0 0
        %3374 = vmatprep.mubr.bf16.mxu0 0
        %3375 = vmatmul.mubr.bf16.gmra.mxu0 %v3263
        %v3376 = vpop.f32.mrf.mxu0
        %v3377 = vadd.f32 %v3292, %v3376
        %v3378 = vpop.f32.mrf.mxu0
        %v3379 = vpop.f32.mrf.mxu0
        %v3380 = vadd.f32 %v3292, %v3379
        %v3381 = vpop.f32.mrf.mxu0
        %3382 = vmatprep.mubr.bf16.mxu0 0
        %3383 = vmatmul.mubr.bf16.gmra.mxu0 %v3264
        %v3384 = vpop.f32.mrf.mxu0
        %v3385 = vadd.f32 %v3292, %v3384
        %v3386 = vpop.f32.mrf.mxu0
        %v3387 = vpop.f32.mrf.mxu0
        %v3388 = vadd.f32 %v3292, %v3387
        %v3389 = vpop.f32.mrf.mxu0
        %3390 = vmatprep.mubr.bf16.mxu0 0
        %3391 = vmatmul.mubr.bf16.gmra.mxu0 %v3265
        %v3392 = vpop.f32.mrf.mxu0
        %v3393 = vadd.f32 %v3292, %v3392
        %v3394 = vpop.f32.mrf.mxu0
        %v3395 = vpop.f32.mrf.mxu0
        %v3396 = vadd.f32 %v3292, %v3395
        %v3397 = vpop.f32.mrf.mxu0
        %3398 = vmatprep.mubr.bf16.mxu0 0
        %3399 = vmatmul.mubr.bf16.gmra.mxu0 %v3266
        %v3400 = vpop.f32.mrf.mxu0
        %v3401 = vadd.f32 %v3292, %v3400
        %v3402 = vpop.f32.mrf.mxu0
        %v3403 = vpop.f32.mrf.mxu0
        %v3404 = vadd.f32 %v3292, %v3403
        %v3405 = vpop.f32.mrf.mxu0
        %3406 = vmatprep.mubr.bf16.mxu0 0
        %3407 = vmatmul.mubr.bf16.gmra.mxu0 %v3267
        %v3408 = vpop.f32.mrf.mxu0
        %v3409 = vadd.f32 %v3292, %v3408
        %v3410 = vpop.f32.mrf.mxu0
        %v3411 = vpop.f32.mrf.mxu0
        %v3412 = vadd.f32 %v3292, %v3411
        %v3413 = vpop.f32.mrf.mxu0
        %3414 = vmatprep.mubr.bf16.mxu0 0
        %3415 = vmatmul.mubr.bf16.gmra.mxu0 %v3268
        %v3416 = vpop.f32.mrf.mxu0
        %v3417 = vadd.f32 %v3292, %v3416
        %v3418 = vpop.f32.mrf.mxu0
        %v3419 = vpop.f32.mrf.mxu0
        %v3420 = vadd.f32 %v3292, %v3419
        %v3421 = vpop.f32.mrf.mxu0
        %3422 = vmatprep.mubr.bf16.mxu0 0
        %3423 = vmatmul.mubr.bf16.gmra.mxu0 %v3269
        %v3424 = vpop.f32.mrf.mxu0
        %v3425 = vadd.f32 %v3292, %v3424
        %v3426 = vpop.f32.mrf.mxu0
        %v3427 = vpop.f32.mrf.mxu0
        %v3428 = vadd.f32 %v3292, %v3427
        %v3429 = vpop.f32.mrf.mxu0
        %3430 = vmatprep.mubr.bf16.mxu0 0
        %3431 = vmatmul.mubr.bf16.gmra.mxu0 %v3270
        %v3432 = vpop.f32.mrf.mxu0
        %v3433 = vadd.f32 %v3292, %v3432
        %v3434 = vpop.f32.mrf.mxu0
        %v3435 = vpop.f32.mrf.mxu0
        %v3436 = vadd.f32 %v3292, %v3435
        %v3437 = vpop.f32.mrf.mxu0
        %3438 = vdwg.mxu0
        %v3439 = vpack.c.bf16 %v3380, %v3377
        %v3440 = vpack.c.bf16 %v3388, %v3385
        %v3441 = vpack.c.bf16 %v3396, %v3393
        %v3442 = vpack.c.bf16 %v3404, %v3401
        %v3443 = vpack.c.bf16 %v3412, %v3409
        %v3444 = vpack.c.bf16 %v3420, %v3417
        %v3445 = vpack.c.bf16 %v3428, %v3425
        %v3446 = vpack.c.bf16 %v3436, %v3433
        %v3455 = vunpack.c.l.b16 %v3439
        %v3456 = vunpack.c.h.b16 %v3439
        %v3457 = vunpack.c.l.b16 %v3440
        %v3458 = vunpack.c.h.b16 %v3440
        %v3459 = vunpack.c.l.b16 %v3441
        %v3460 = vunpack.c.h.b16 %v3441
        %v3461 = vunpack.c.l.b16 %v3442
        %v3462 = vunpack.c.h.b16 %v3442
        %v3463 = vunpack.c.l.b16 %v3443
        %v3464 = vunpack.c.h.b16 %v3443
        %v3465 = vunpack.c.l.b16 %v3444
        %v3466 = vunpack.c.h.b16 %v3444
        %v3467 = vunpack.c.l.b16 %v3445
        %v3468 = vunpack.c.h.b16 %v3445
        %v3469 = vunpack.c.l.b16 %v3446
        %v3470 = vunpack.c.h.b16 %v3446
        %v3471 = vpack.c.b16 %v3455, %v3455
        %v3472 = vpack.c.b16 %v3456, %v3456
        %v3473 = vpack.c.b16 %v3457, %v3457
        %v3474 = vpack.c.b16 %v3458, %v3458
        %v3475 = vpack.c.b16 %v3459, %v3459
        %v3476 = vpack.c.b16 %v3460, %v3460
        %v3477 = vpack.c.b16 %v3461, %v3461
        %v3478 = vpack.c.b16 %v3462, %v3462
        %v3479 = vpack.c.b16 %v3463, %v3463
        %v3480 = vpack.c.b16 %v3464, %v3464
        %v3481 = vpack.c.b16 %v3465, %v3465
        %v3482 = vpack.c.b16 %v3466, %v3466
        %v3483 = vpack.c.b16 %v3467, %v3467
        %v3484 = vpack.c.b16 %v3468, %v3468
        %v3485 = vpack.c.b16 %v3469, %v3469
        %v3486 = vpack.c.b16 %v3470, %v3470
        %vm3503 = vcmask 60416
        %3504 = vst.msk [vmem:[%s300] sm:$0xf] %vm3503, %v3471
        %3505 = vst.msk [vmem:[%s300 + $0x4] sm:$0xf] %vm3503, %v3472
        %3506 = vst.msk [vmem:[%s300 + $0x8] sm:$0xf] %vm3503, %v3473
        %3507 = vst.msk [vmem:[%s300 + $0xc] sm:$0xf] %vm3503, %v3474
        %3508 = vst.msk [vmem:[%s300 + $0x10] sm:$0xf] %vm3503, %v3475
        %3509 = vst.msk [vmem:[%s300 + $0x14] sm:$0xf] %vm3503, %v3476
        %3510 = vst.msk [vmem:[%s300 + $0x18] sm:$0xf] %vm3503, %v3477
        %3511 = vst.msk [vmem:[%s300 + $0x1c] sm:$0xf] %vm3503, %v3478
        %3512 = vst.msk [vmem:[%s300 + $0x20] sm:$0xf] %vm3503, %v3479
        %3513 = vst.msk [vmem:[%s300 + $0x24] sm:$0xf] %vm3503, %v3480
        %3514 = vst.msk [vmem:[%s300 + $0x28] sm:$0xf] %vm3503, %v3481
        %3515 = vst.msk [vmem:[%s300 + $0x2c] sm:$0xf] %vm3503, %v3482
        %3516 = vst.msk [vmem:[%s300 + $0x30] sm:$0xf] %vm3503, %v3483
        %3517 = vst.msk [vmem:[%s300 + $0x34] sm:$0xf] %vm3503, %v3484
        %3518 = vst.msk [vmem:[%s300 + $0x38] sm:$0xf] %vm3503, %v3485
        %3519 = vst.msk [vmem:[%s300 + $0x3c] sm:$0xf] %vm3503, %v3486
      $region48: #{tpu_custom_call.1} parent=39 // pred_fallthru
        _
      %s3520 = smul.u32 16, %s22
      %p3521 = scmp.lt.s32.totalorder %s21, 1
      %s3522 = scalar_select %p3521, %s21, 1
      %p3523 = scmp.lt.s32.totalorder %s3520, 31
      %s3524 = scalar_select %p3523, %s3520, 31
      %s3525 = smul.addr %s3522, 32
      %s3526 = sadd.s32 %s3524, %s3525
      %s3527 = smul.addr %s3526, 4
      %s3528 = scalar_lea.vmem %s5, %s3527
      // Predicated region
      $region49: #{tpu_custom_call.1} parent=39 // pred_check
        %p3529 = pneg %p174
      $region50: #{tpu_custom_call.1} parent=39 // pred_check_branch
        %3531 = sbr.rel (%p3529) target = $region52
      $region51: #{tpu_custom_call.1} parent=39 // pred_region
        %s3532 = smul.u32 16, %s22
      $region52: #{tpu_custom_call.1} parent=39 // pred_fallthru
        _
    $region40: #{tpu_custom_call.1} parent=5 // pred_fallthru
      _
    %p3533 = scmp.le.s32.totalorder 2, %s11
    // Predicated region
    $region53: #{tpu_custom_call.1} parent=5 // pred_check
      %p3534 = pneg %p3533
    $region54: #{tpu_custom_call.1} parent=5 // pred_check_branch
      %3536 = sbr.rel (%p3534) target = $region56
    $region55: #{tpu_custom_call.1} parent=5 // pred_region
      %s3537 = ssub.s32 %s11, 2
      // Predicated region
      $region57: #{tpu_custom_call.1} parent=55 // pred_check
        %p3538 = pneg %p180
      $region58: #{tpu_custom_call.1} parent=55 // pred_check_branch
        %3540 = sbr.rel (%p3538) target = $region60
      $region59: #{tpu_custom_call.1} parent=55 // pred_region
        %s3541 = smul.u32 16, %s25
        %p3542 = scmp.lt.s32.totalorder %s24, 1
        %s3543 = scalar_select %p3542, %s24, 1
        %p3544 = scmp.lt.s32.totalorder %s3541, 31
        %s3545 = scalar_select %p3544, %s3541, 31
        %s3546 = smul.addr %s3543, 32
        %s3547 = sadd.s32 %s3545, %s3546
        %s3548 = smul.addr %s3547, 4
        %s3549 = scalar_lea.vmem %s5, %s3548
      $region60: #{tpu_custom_call.1} parent=55 // pred_fallthru
        _
    $region56: #{tpu_custom_call.1} parent=5 // pred_fallthru
      _
  $region6: #{tpu_custom_call.1} parent=0 // loop_footer
    %s15 = sadd.s32 1, %s11
  $region7: #{tpu_custom_call.1} parent=0 // loop_footer_branch
    %10 = sbr.rel target = $region3
  $region8: #{tpu_custom_call.1} parent=0 // loop_exit
    _

</llo_original>
